<compile_context>
chip_gen: v7x
topology: tpu7x:2x2x1
jax: 0.10.0
libtpu: 0.0.40
codegen_flags: <defaults>
</compile_context>

<pallas_src>
import math
from functools import partial

import numpy as np
import jax
import jax.numpy as jnp
from jax.experimental import pallas as pl
from jax.experimental.pallas import tpu as pltpu

# ----------------------------------------------------------------------------- config
CH_DIV = 16
LABEL_NUM = 81
NUM_DEFAULTS = [4, 6, 6, 6, 4, 4]
OUT_CHANNELS = [1024 // CH_DIV, 512 // CH_DIV, 512 // CH_DIV,
                256 // CH_DIV, 256 // CH_DIV, 256 // CH_DIV]          # [64,32,32,16,16,16]
ADDL_MID = [256 // CH_DIV, 256 // CH_DIV, 128 // CH_DIV,
            128 // CH_DIV, 128 // CH_DIV]                              # [16,16,8,8,8]
CONV4_3_CH = 256 // CH_DIV                                             # 16
CONV5_3_CH = 512 // CH_DIV                                             # 32
STEM_CH = 64 // CH_DIV                                                 # 4
LAYER_PLANES = (64 // CH_DIV, 128 // CH_DIV, 256 // CH_DIV)            # (4, 8, 16)
LAYER_BLOCKS = (3, 4, 6)       # resnet50 layer1..layer3 bottleneck counts
LAYER_STRIDES = (1, 2, 1)      # layer3 stride forced to 1 (SSD conv4_block1 modification)
EXPANSION = 4

_ROW_TILE = 4096                     # rows per tile for single-tap (1x1) convs
_MT_ROW_TILE = 512                   # rows per tile for multi-tap (kxk) convs
_VMEM_LIMIT = 32 * 1024 * 1024       # <= v7x scoped default; every call fits with big margin
_ACT_DTYPE = jnp.bfloat16            # activation / MXU operand dtype (accumulation is f32)


def _round_up(x, m):
    return (x + m - 1) // m * m


# ----------------------------------------------------------------------------- Pallas kernels
def _conv1_kernel(x_ref, w_ref, b_ref, o_ref, *, relu):
    """Single-tap (1x1 / pre-gathered) conv: one matmul + shift (+ReLU), f32 accumulate."""
    y = jnp.dot(x_ref[0], w_ref[...], preferred_element_type=jnp.float32) + b_ref[...]
    if relu:
        y = jnp.maximum(y, 0.0)
    o_ref[0] = y.astype(o_ref.dtype)


def _conv1_res_kernel(x_ref, w_ref, b_ref, r_ref, o_ref, *, relu):
    """Same as _conv1_kernel plus a fused residual add."""
    y = (jnp.dot(x_ref[0], w_ref[...], preferred_element_type=jnp.float32)
         + b_ref[...] + r_ref[0].astype(jnp.float32))
    if relu:
        y = jnp.maximum(y, 0.0)
    o_ref[0] = y.astype(o_ref.dtype)


def _conv_tap_kernel(x_ref, w_ref, b_ref, o_ref, *, offsets, tm, win, relu):
    """Row-tiled kxk stride-1 conv over the flat-row padded image resident in VMEM.

    An aligned dynamic window of the image is loaded, the kh*kw taps are built with static
    shifted slices and concatenated along the contraction dim so the whole conv is a single
    MXU matmul per row tile (no per-tap result pops / VPU accumulator passes)."""
    row0 = pl.multiple_of(pl.program_id(1) * tm, 8)
    xwin = x_ref[0, pl.ds(row0, win), :]                                  # (win, Kc)
    xcat = jnp.concatenate([xwin[o:o + tm] for o in offsets], axis=-1)    # (tm, T*Kc)
    y = jnp.dot(xcat, w_ref[...], preferred_element_type=jnp.float32) + b_ref[...]
    if relu:
        y = jnp.maximum(y, 0.0)
    o_ref[0] = y.astype(o_ref.dtype)


def _bottleneck_kernel(x_ref, m_ref, w1_ref, b1_ref, w2_ref, b2_ref, w3_ref, b3_ref,
                       o_ref, *, wp, m2s, planes, has_down):
    """Fully fused stride-1 bottleneck: 1x1(+downsample) -> 3x3 -> 1x1 + residual + ReLU.

    Input arrives in padded flat-row layout (Hp*Wp rows).  conv1 is applied to every padded
    row and the padding ring is zeroed with a precomputed mask so the in-VMEM 3x3 sees the
    correct zero padding.  All intermediates stay in VMEM; BN is folded into the weights."""
    x = x_ref[0]                                                          # (Rp8, Cin)
    y0 = jnp.dot(x, w1_ref[...], preferred_element_type=jnp.float32) + b1_ref[...]
    y1 = (jnp.maximum(y0[:, :planes], 0.0) * m_ref[...]).astype(x.dtype)
    offs = tuple(a * wp + b for a in range(3) for b in range(3))
    xcat = jnp.concatenate([y1[o:o + m2s] for o in offs], axis=-1)        # (m2s, 9*planes)
    y2 = jnp.dot(xcat, w2_ref[...], preferred_element_type=jnp.float32) + b2_ref[...]
    y2 = jnp.maximum(y2, 0.0).astype(x.dtype)
    y3 = jnp.dot(y2, w3_ref[...], preferred_element_type=jnp.float32) + b3_ref[...]
    if has_down:
        res = y0[:, planes:][wp + 1:wp + 1 + m2s]                         # downsample(x), shifted
    else:
        res = x[wp + 1:wp + 1 + m2s].astype(jnp.float32)                  # identity, shifted
    o_ref[0] = jnp.maximum(y3 + res, 0.0).astype(o_ref.dtype)


def _maxpool_kernel(p_ref, o_ref, *, combos, m):
    """MaxPool2d(3, stride=2, padding=1): max over 9 (phase, shift) slices of the 2x2
    space-to-depth phase images (channels stay on lanes, no HBM tap inflation)."""
    acc = None
    for ph, off in combos:
        v = p_ref[0, ph, off:off + m, :].astype(jnp.float32)
        acc = v if acc is None else jnp.maximum(acc, v)
    o_ref[0] = acc.astype(o_ref.dtype)


# ----------------------------------------------------------------------------- Pallas wrappers
def _conv_mm(x_rows, w_taps, shift, *, offsets, m_out, relu, residual=None,
             out_dtype=_ACT_DTYPE):
    """Fused matmul-affine over flat rows.

    x_rows (N, R, Kc); w_taps (T, Kc, Cout) with BN scale folded; shift (Cout,) f32.
    Multi-tap calls keep the whole flattened padded image resident in VMEM and row-tile the
    output; taps are concatenated along the contraction dim inside the kernel (one matmul
    per tile).  Single-tap calls stream large row tiles."""
    n, r, kc = x_rows.shape
    t, _, cout = w_taps.shape
    multi_tap = len(offsets) > 1
    max_off = max(offsets)

    if multi_tap:
        assert residual is None
        tm = min(_MT_ROW_TILE, _round_up(m_out, 8))
        n_tiles = -(-m_out // tm)
        off_pad = _round_up(max_off, 8)
        win = tm + off_pad
        r_need = n_tiles * tm + off_pad
    else:
        tm = min(_ROW_TILE, _round_up(m_out, 8))
        n_tiles = -(-m_out // tm)
        r_need = n_tiles * tm
    m_pad = n_tiles * tm

    if r < r_need:                      # single pad: covers bottom spatial pad + alignment
        x_rows = jnp.pad(x_rows, ((0, 0), (0, r_need - r), (0, 0)))
    elif r > r_need:
        x_rows = x_rows[:, :r_need, :]
    x_rows = x_rows.astype(_ACT_DTYPE)
    w_flat = w_taps.reshape(t * kc, cout).astype(_ACT_DTYPE)
    shift = shift.reshape(1, cout).astype(jnp.float32)

    if multi_tap:
        in_specs = [pl.BlockSpec((1, r_need, kc), lambda i, j: (i, 0, 0)),   # resident image
                    pl.BlockSpec((t * kc, cout), lambda i, j: (0, 0)),
                    pl.BlockSpec((1, cout), lambda i, j: (0, 0))]
        args = [x_rows, w_flat, shift]
        kernel = partial(_conv_tap_kernel, offsets=tuple(offsets), tm=tm, win=win, relu=relu)
    else:
        in_specs = [pl.BlockSpec((1, tm, kc), lambda i, j: (i, j, 0)),       # streamed rows
                    pl.BlockSpec((t * kc, cout), lambda i, j: (0, 0)),
                    pl.BlockSpec((1, cout), lambda i, j: (0, 0))]
        args = [x_rows, w_flat, shift]
        if residual is None:
            kernel = partial(_conv1_kernel, relu=relu)
        else:
            if residual.shape[1] < m_pad:
                residual = jnp.pad(residual, ((0, 0), (0, m_pad - residual.shape[1]), (0, 0)))
            in_specs.append(pl.BlockSpec((1, tm, cout), lambda i, j: (i, j, 0)))
            args.append(residual.astype(_ACT_DTYPE))
            kernel = partial(_conv1_res_kernel, relu=relu)

    out = pl.pallas_call(
        kernel,
        out_shape=jax.ShapeDtypeStruct((n, m_pad, cout), out_dtype),
        grid_spec=pltpu.PrefetchScalarGridSpec(
            num_scalar_prefetch=0,
            grid=(n, n_tiles),
            in_specs=in_specs,
            out_specs=pl.BlockSpec((1, tm, cout), lambda i, j: (i, j, 0)),
        ),
        compiler_params=pltpu.CompilerParams(
            dimension_semantics=("parallel", "parallel"),
            vmem_limit_bytes=_VMEM_LIMIT),
    )(*args)
    return out[:, :m_out, :]


def _fold_bn(gamma, beta, mean, var, conv_bias=None, eps=1e-5):
    # TODO(synk): BatchNorm reproduced in inference (running-stats) mode only; training-mode
    # batch statistics are not computed.
    s = gamma / jnp.sqrt(var + eps)
    b = beta - mean * s
    if conv_bias is not None:
        b = b + conv_bias * s
    return s, b


def conv2d(x, w, shift, *, scale=None, stride=1, padding=0, relu=False, residual=None,
           out_dtype=_ACT_DTYPE):
    """NHWC convolution with torch.nn.Conv2d semantics.  BN scale folded into the weights;
    shift / residual / ReLU run in the Pallas kernel epilogue in f32."""
    n, h, wi, cin = x.shape
    cout, _, kh, kw = w.shape
    if scale is not None:
        w = w * scale[:, None, None, None]
    ho = (h + 2 * padding - kh) // stride + 1
    wo = (wi + 2 * padding - kw) // stride + 1
    x = x.astype(_ACT_DTYPE)

    if kh == 1 and kw == 1:
        xs = x[:, ::stride, ::stride, :][:, :ho, :wo, :] if stride > 1 else x
        rows = xs.reshape(n, ho * wo, cin)
        wt = jnp.transpose(w, (2, 3, 1, 0)).reshape(1, cin, cout)
        res = None if residual is None else residual.reshape(n, ho * wo, cout)
        y = _conv_mm(rows, wt, shift, offsets=(0,), m_out=ho * wo, relu=relu,
                     residual=res, out_dtype=out_dtype)
        return y.reshape(n, ho, wo, cout)

    if stride == 1:
        # stride-1 kxk conv over flat rows; bottom spatial pad merged into _conv_mm's row pad.
        wp = wi + 2 * padding
        if padding > 0:
            x = jnp.pad(x, ((0, 0), (padding, 0), (padding, padding), (0, 0)))
        rows = x.reshape(n, (h + padding) * wp, cin)
        wt = jnp.transpose(w, (2, 3, 1, 0)).reshape(kh * kw, cin, cout)
        offsets = tuple(a * wp + b for a in range(kh) for b in range(kw))
        y = _conv_mm(rows, wt, shift, offsets=offsets, m_out=ho * wp, relu=relu,
                     out_dtype=out_dtype)
        return y.reshape(n, ho, wp, cout)[:, :, :wo, :]

    # strided kxk conv: space-to-depth turns it into a stride-1 multi-tap conv (no HBM im2col).
    s = stride
    hp, wpd = h + 2 * padding, wi + 2 * padding
    hp_e, wp_e = _round_up(hp, s), _round_up(wpd, s)
    xp = jnp.pad(x, ((0, 0), (padding, padding + hp_e - hp),
                     (padding, padding + wp_e - wpd), (0, 0)))
    h2, w2 = hp_e // s, wp_e // s
    xs = xp.reshape(n, h2, s, w2, s, cin).transpose(0, 1, 3, 2, 4, 5).reshape(n, h2 * w2,
                                                                              s * s * cin)
    q = -(-kh // s)
    wpad = jnp.pad(w, ((0, 0), (0, 0), (0, q * s - kh), (0, q * s - kw)))
    wt = wpad.reshape(cout, cin, q, s, q, s).transpose(2, 4, 3, 5, 1, 0).reshape(
        q * q, s * s * cin, cout)
    offsets = tuple(a * w2 + b for a in range(q) for b in range(q))
    y = _conv_mm(xs, wt, shift, offsets=offsets, m_out=ho * w2, relu=relu,
                 out_dtype=out_dtype)
    return y.reshape(n, ho, w2, cout)[:, :, :wo, :]


def conv_transpose2d_2x2(x, w, bias):
    """torch.nn.ConvTranspose2d(kernel_size=2, stride=2), NHWC.  w: (Cin, Cout, 2, 2)."""
    n, h, wi, cin = x.shape
    cout = w.shape[1]
    wmat = jnp.transpose(w, (0, 2, 3, 1)).reshape(1, cin, 4 * cout)   # (ci, (a,b,co))
    y = _conv_mm(x.astype(_ACT_DTYPE).reshape(n, h * wi, cin), wmat, jnp.tile(bias, 4),
                 offsets=(0,), m_out=h * wi, relu=False)
    y = y.reshape(n, h, wi, 2, 2, cout).transpose(0, 1, 3, 2, 4, 5)
    return y.reshape(n, 2 * h, 2 * wi, cout)


def maxpool2d(x):
    """torch.nn.MaxPool2d(3, stride=2, padding=1): 2x2 phase images + in-kernel shifted max."""
    n, h, wi, c = x.shape
    ho, wo = (h - 1) // 2 + 1, (wi - 1) // 2 + 1
    neg = jnp.finfo(x.dtype).min
    hp_e, wp_e = _round_up(h + 2, 2), _round_up(wi + 2, 2)
    xp = jnp.pad(x, ((0, 0), (1, hp_e - h - 1), (1, wp_e - wi - 1), (0, 0)),
                 constant_values=neg)
    h2, w2 = hp_e // 2, wp_e // 2
    ph = xp.reshape(n, h2, 2, w2, 2, c).transpose(0, 2, 4, 1, 3, 5).reshape(n, 4, h2 * w2, c)
    m_out = ho * w2
    m_pad = _round_up(m_out, 8)
    combos = tuple(((dy % 2) * 2 + (dx % 2), (dy // 2) * w2 + (dx // 2))
                   for dy in range(3) for dx in range(3))
    r_need = _round_up(m_pad + max(off for _, off in combos), 8)
    if ph.shape[2] < r_need:
        ph = jnp.pad(ph, ((0, 0), (0, 0), (0, r_need - ph.shape[2]), (0, 0)),
                     constant_values=neg)
    out = pl.pallas_call(
        partial(_maxpool_kernel, combos=combos, m=m_pad),
        out_shape=jax.ShapeDtypeStruct((n, m_pad, c), x.dtype),
        grid_spec=pltpu.PrefetchScalarGridSpec(
            num_scalar_prefetch=0,
            grid=(n,),
            in_specs=[pl.BlockSpec((1, 4, r_need, c), lambda i: (i, 0, 0, 0))],
            out_specs=pl.BlockSpec((1, m_pad, c), lambda i: (i, 0, 0)),
        ),
        compiler_params=pltpu.CompilerParams(dimension_semantics=("parallel",),
                                             vmem_limit_bytes=_VMEM_LIMIT),
    )(ph)
    return out[:, :m_out, :].reshape(n, ho, w2, c)[:, :, :wo, :]


def bottleneck_fused(x, p, *, has_down):
    """One pallas_call for a stride-1 bottleneck (conv1[+downsample] -> conv2 -> conv3+res)."""
    n, h, w, cin = x.shape
    planes = p["w1"].shape[0]
    c4 = planes * EXPANSION
    wp = w + 2
    s1, b1 = _fold_bn(**p["bn1"])
    s2, b2 = _fold_bn(**p["bn2"])
    s3, b3 = _fold_bn(**p["bn3"])
    w1 = (p["w1"][:, :, 0, 0] * s1[:, None]).T                       # (cin, planes)
    if has_down:
        sd, bd = _fold_bn(**p["dbn"])
        dw = (p["dw"][:, :, 0, 0] * sd[:, None]).T                   # (cin, c4)
        w1c = jnp.concatenate([w1, dw], axis=1)
        b1c = jnp.concatenate([b1, bd])
    else:
        w1c, b1c = w1, b1
    w2 = jnp.transpose(p["w2"] * s2[:, None, None, None], (2, 3, 1, 0)).reshape(9 * planes,
                                                                                planes)
    w3 = (p["w3"][:, :, 0, 0] * s3[:, None]).T                       # (planes, c4)

    m2 = h * wp
    m2s = _round_up(m2, 8)
    rp8 = _round_up(m2s + 2 * wp + 2, 8)

    xp = jnp.pad(x.astype(_ACT_DTYPE), ((0, 0), (1, 0), (1, 1), (0, 0)))
    xp = xp.reshape(n, (h + 1) * wp, cin)
    xp = jnp.pad(xp, ((0, 0), (0, rp8 - xp.shape[1]), (0, 0)))        # bottom pad + alignment

    rr = np.arange(rp8)
    col = rr % wp
    interior = (rr >= wp) & (rr < (h + 1) * wp) & (col >= 1) & (col <= w)
    mask = jnp.asarray(interior.astype(np.float32)[:, None])          # static padding-ring mask

    c1 = w1c.shape[1]
    kernel = partial(_bottleneck_kernel, wp=wp, m2s=m2s, planes=planes, has_down=has_down)
    out = pl.pallas_call(
        kernel,
        out_shape=jax.ShapeDtypeStruct((n, m2s, c4), _ACT_DTYPE),
        grid_spec=pltpu.PrefetchScalarGridSpec(
            num_scalar_prefetch=0,
            grid=(n,),
            in_specs=[pl.BlockSpec((1, rp8, cin), lambda i: (i, 0, 0)),
                      pl.BlockSpec((rp8, 1), lambda i: (0, 0)),
                      pl.BlockSpec((cin, c1), lambda i: (0, 0)),
                      pl.BlockSpec((1, c1), lambda i: (0, 0)),
                      pl.BlockSpec((9 * planes, planes), lambda i: (0, 0)),
                      pl.BlockSpec((1, planes), lambda i: (0, 0)),
                      pl.BlockSpec((planes, c4), lambda i: (0, 0)),
                      pl.BlockSpec((1, c4), lambda i: (0, 0))],
            out_specs=pl.BlockSpec((1, m2s, c4), lambda i: (i, 0, 0)),
        ),
        compiler_params=pltpu.CompilerParams(dimension_semantics=("parallel",),
                                             vmem_limit_bytes=_VMEM_LIMIT),
    )(xp, mask,
      w1c.astype(_ACT_DTYPE), b1c.reshape(1, -1).astype(jnp.float32),
      w2.astype(_ACT_DTYPE), b2.reshape(1, -1).astype(jnp.float32),
      w3.astype(_ACT_DTYPE), b3.reshape(1, -1).astype(jnp.float32))
    return out[:, :m2, :].reshape(n, h, wp, c4)[:, :, :w, :]


# ----------------------------------------------------------------------------- parameters
_key = [jax.random.PRNGKey(1234)]


def _next_key():
    _key[0], k = jax.random.split(_key[0])
    return k


def _xavier(shape, fan_in, fan_out):
    a = math.sqrt(6.0 / (fan_in + fan_out))
    return jax.random.uniform(_next_key(), shape, jnp.float32, -a, a)


def _conv_w(cin, cout, k):
    return _xavier((cout, cin, k, k), cin * k * k, cout * k * k)


def _bias(c):
    return 0.01 * jax.random.normal(_next_key(), (c,), jnp.float32)


def _bn(c):
    return dict(
        gamma=1.0 + 0.1 * jax.random.normal(_next_key(), (c,), jnp.float32),
        beta=0.1 * jax.random.normal(_next_key(), (c,), jnp.float32),
        mean=0.1 * jax.random.normal(_next_key(), (c,), jnp.float32),
        var=0.5 + 0.5 * jax.random.uniform(_next_key(), (c,), jnp.float32),
    )


def _bottleneck(cin, planes, downsample):
    p = dict(w1=_conv_w(cin, planes, 1), bn1=_bn(planes),
             w2=_conv_w(planes, planes, 3), bn2=_bn(planes),
             w3=_conv_w(planes, planes * EXPANSION, 1), bn3=_bn(planes * EXPANSION))
    if downsample:
        p["dw"] = _conv_w(cin, planes * EXPANSION, 1)
        p["dbn"] = _bn(planes * EXPANSION)
    return p


def _layer(cin, planes, blocks):
    blks = [_bottleneck(cin, planes, downsample=True)]
    for _ in range(blocks - 1):
        blks.append(_bottleneck(planes * EXPANSION, planes, downsample=False))
    return blks


def init_params():
    backbone = dict(
        conv1_w=_conv_w(3, STEM_CH, 7),
        bn1=_bn(STEM_CH),
        layer1=_layer(STEM_CH, LAYER_PLANES[0], LAYER_BLOCKS[0]),
        layer2=_layer(LAYER_PLANES[0] * EXPANSION, LAYER_PLANES[1], LAYER_BLOCKS[1]),
        layer3=_layer(LAYER_PLANES[1] * EXPANSION, LAYER_PLANES[2], LAYER_BLOCKS[2]),
    )
    fusion = dict(
        tconv_w=_xavier((CONV5_3_CH, CONV4_3_CH, 2, 2), CONV5_3_CH * 4, CONV4_3_CH * 4),
        tconv_b=_bias(CONV4_3_CH),
        f53_w=_conv_w(CONV4_3_CH, CONV4_3_CH, 3), f53_b=_bias(CONV4_3_CH), f53_bn=_bn(CONV4_3_CH),
        f43_w=_conv_w(CONV4_3_CH, CONV4_3_CH, 3), f43_b=_bias(CONV4_3_CH), f43_bn=_bn(CONV4_3_CH),
        con_w=_conv_w(2 * CONV4_3_CH, CONV4_3_CH, 1), con_b=_bias(CONV4_3_CH),
    )
    additional = []
    for cin, cout, mid in zip(OUT_CHANNELS[:-1], OUT_CHANNELS[1:], ADDL_MID):
        additional.append(dict(w1=_conv_w(cin, mid, 1), bn1=_bn(mid),
                               w2=_conv_w(mid, cout, 3), bn2=_bn(cout)))
    # NOTE: the reference forward feeds 7 maps into the 6 heads that SSD300 built for
    # out_channels; with the fused map inserted at position 0 the declared head in-channels
    # no longer match the maps they receive, and Python's zip silently drops the 7th map.
    # We size each head for the feature map it actually receives and keep the zip truncation.
    head_in = [CONV4_3_CH] + OUT_CHANNELS[:-1]
    heads = []
    for nd, cin in zip(NUM_DEFAULTS, head_in):
        heads.append(dict(loc_w=_conv_w(cin, nd * 4, 3), loc_b=_bias(nd * 4),
                          conf_w=_conv_w(cin, nd * LABEL_NUM, 3), conf_b=_bias(nd * LABEL_NUM)))
    return dict(backbone=backbone, fusion=fusion, additional=additional, heads=heads)


# ----------------------------------------------------------------------------- forward pass
def bottleneck_unfused(x, p, stride):
    """Only used for the single stride-2 bottleneck (layer2 block 0)."""
    s1, b1 = _fold_bn(**p["bn1"])
    out = conv2d(x, p["w1"], b1, scale=s1, relu=True)
    s2, b2 = _fold_bn(**p["bn2"])
    out = conv2d(out, p["w2"], b2, scale=s2, stride=stride, padding=1, relu=True)
    if "dw" in p:
        sd, bd = _fold_bn(**p["dbn"])
        identity = conv2d(x, p["dw"], bd, scale=sd, stride=stride)
    else:
        identity = x
    s3, b3 = _fold_bn(**p["bn3"])
    return conv2d(out, p["w3"], b3, scale=s3, relu=True, residual=identity)


def resnet_layer_forward(x, blocks, stride):
    for i, blk in enumerate(blocks):
        s = stride if i == 0 else 1
        if s == 1:
            x = bottleneck_fused(x, blk, has_down=("dw" in blk))
        else:
            x = bottleneck_unfused(x, blk, s)
    return x


def additional_block_forward(x, p, i):
    # TODO(synk): 1x1 -> 3x3 pair left as two pallas_calls (stride-2 fusion not worth it here).
    stride, pad = (2, 1) if i < 3 else (1, 0)
    s1, b1 = _fold_bn(**p["bn1"])
    x = conv2d(x, p["w1"], b1, scale=s1, relu=True)
    s2, b2 = _fold_bn(**p["bn2"])
    return conv2d(x, p["w2"], b2, scale=s2, stride=stride, padding=pad, relu=True)


def bbox_view(feeds, heads):
    locs, confs = [], []
    for s, hd in zip(feeds, heads):                   # zip truncates, exactly as the reference
        n = s.shape[0]
        nd4 = hd["loc_w"].shape[0]
        # loc + conf fused into a single lane-dense conv, emitted in f32; split afterwards.
        w_cat = jnp.concatenate([hd["loc_w"], hd["conf_w"]], axis=0)
        b_cat = jnp.concatenate([hd["loc_b"], hd["conf_b"]], axis=0)
        y = conv2d(s, w_cat, b_cat, padding=1, out_dtype=jnp.float32)
        l, c = y[..., :nd4], y[..., nd4:]
        # NHWC -> NCHW, then the exact PyTorch reshape(N, 4, -1) / reshape(N, 81, -1).
        locs.append(jnp.transpose(l, (0, 3, 1, 2)).reshape(n, 4, -1))
        confs.append(jnp.transpose(c, (0, 3, 1, 2)).reshape(n, LABEL_NUM, -1))
    return (jnp.concatenate(locs, axis=2).astype(jnp.float32),
            jnp.concatenate(confs, axis=2).astype(jnp.float32))


def feature_fusion_ssd300_forward(params, x_nchw):
    bp = params["backbone"]
    x = jnp.transpose(x_nchw, (0, 2, 3, 1))                            # NCHW -> NHWC
    # ResNet stem: conv1(7x7/s2) + bn1 + relu via space-to-depth multi-tap conv, then maxpool.
    s, b = _fold_bn(**bp["bn1"])
    x = conv2d(x, bp["conv1_w"], b, scale=s, stride=2, padding=3, relu=True)
    x = maxpool2d(x)
    feat_l1 = x = resnet_layer_forward(x, bp["layer1"], LAYER_STRIDES[0])   # features[-3]
    feat_l2 = x = resnet_layer_forward(x, bp["layer2"], LAYER_STRIDES[1])   # features[-2]
    feat_l3 = x = resnet_layer_forward(x, bp["layer3"], LAYER_STRIDES[2])   # features[-1]

    fp = params["fusion"]
    # fusion_layers_4_3(features[-3]) : Conv3x3(+bias) -> BN -> ReLU
    s, b = _fold_bn(**fp["f43_bn"], conv_bias=fp["f43_b"])
    f43 = conv2d(feat_l1, fp["f43_w"], b, scale=s, padding=1, relu=True)
    # fusion_layers_5_3(features[-2]) : ConvTranspose(2,2,s2) -> Conv3x3(+bias) -> BN -> ReLU
    up = conv_transpose2d_2x2(feat_l2, fp["tconv_w"], fp["tconv_b"])
    s, b = _fold_bn(**fp["f53_bn"], conv_bias=fp["f53_b"])
    f53 = conv2d(up, fp["f53_w"], b, scale=s, padding=1, relu=True)
    fused = jnp.concatenate([f43, f53], axis=-1)                       # channel concat (dim=1 NCHW)
    fused = conv2d(fused, fp["con_w"], fp["con_b"])                    # fusion_layers_con (1x1)

    additional_x = feat_l3
    detection_feed = [fused, additional_x]
    for i, blk in enumerate(params["additional"]):
        additional_x = additional_block_forward(additional_x, blk, i)
        detection_feed.append(additional_x)

    return bbox_view(detection_feed, params["heads"])


# ----------------------------------------------------------------------------- main
if __name__ == "__main__":
    params = init_params()
    x = jax.random.normal(jax.random.PRNGKey(0), (2, 3, 288, 288), dtype=jnp.float32)

    fwd = jax.jit(feature_fusion_ssd300_forward)
    locs, confs = jax.block_until_ready(fwd(params, x))

    # spatial pyramid: fused 72x72(nd=4), 36x36(nd=6), 18x18(nd=6), 9x9(nd=6), 5x5(nd=4), 3x3(nd=4)
    expected_anchors = 4 * 72 * 72 + 6 * 36 * 36 + 6 * 18 * 18 + 6 * 9 * 9 + 4 * 5 * 5 + 4 * 3 * 3
    assert locs.shape == (2, 4, expected_anchors) and locs.dtype == jnp.float32
    assert confs.shape == (2, LABEL_NUM, expected_anchors) and confs.dtype == jnp.float32
    assert bool(jnp.isfinite(locs).all()) and bool(jnp.isfinite(confs).all())
    print("KERNEL_OK")
</pallas_src>

<mosaic_0001>
module attributes {stable_mosaic.version = 11 : i64} {
  func.func @_conv_tap_kernel(%arg0: i32, %arg1: i32, %arg2: memref<1x21952x12xbf16, #tpu.memory_space<vmem>>, %arg3: memref<192x4xbf16, #tpu.memory_space<vmem>>, %arg4: memref<1x4xf32, #tpu.memory_space<vmem>>, %arg5: memref<1x512x4xbf16, #tpu.memory_space<vmem>>) attributes {dimension_semantics = [#tpu.dimension_semantics<parallel>, #tpu.dimension_semantics<parallel>], iteration_bounds = array<i64: 2, 42>, scalar_prefetch = 0 : i64, scratch_operands = 0 : i64, tpu.core_type = #tpu.core_type<tc>, window_params = [{transform_indices = @transform_0, window_bounds = array<i64: 1, 21952, 12>}, {pipeline_mode = #tpu.pipeline_mode<synchronous>, transform_indices = @transform_1, window_bounds = array<i64: 192, 4>}, {pipeline_mode = #tpu.pipeline_mode<synchronous>, transform_indices = @transform_2, window_bounds = array<i64: 1, 4>}, {transform_indices = @transform_3, window_bounds = array<i64: 1, 512, 4>}]} {
    %c512_i32 = arith.constant 512 : i32
    %0 = arith.muli %arg1, %c512_i32 : i32
    %1 = tpu.assume_multiple %0, 8 : i32
    %c0 = arith.constant 0 : index
    %2 = arith.index_cast %1 : i32 to index
    %c0_0 = arith.constant 0 : index
    %3 = vector.load %arg2[%c0, %2, %c0_0] : memref<1x21952x12xbf16, #tpu.memory_space<vmem>>, vector<1x960x12xbf16>
    %4 = vector.shape_cast %3 : vector<1x960x12xbf16> to vector<960x12xbf16>
    %5 = vector.extract_strided_slice %4 {offsets = [0, 0], sizes = [512, 12], strides = [1, 1]} : vector<960x12xbf16> to vector<512x12xbf16>
    %6 = vector.extract_strided_slice %4 {offsets = [1, 0], sizes = [512, 12], strides = [1, 1]} : vector<960x12xbf16> to vector<512x12xbf16>
    %7 = vector.extract_strided_slice %4 {offsets = [2, 0], sizes = [512, 12], strides = [1, 1]} : vector<960x12xbf16> to vector<512x12xbf16>
    %8 = vector.extract_strided_slice %4 {offsets = [3, 0], sizes = [512, 12], strides = [1, 1]} : vector<960x12xbf16> to vector<512x12xbf16>
    %9 = vector.extract_strided_slice %4 {offsets = [147, 0], sizes = [512, 12], strides = [1, 1]} : vector<960x12xbf16> to vector<512x12xbf16>
    %10 = vector.extract_strided_slice %4 {offsets = [148, 0], sizes = [512, 12], strides = [1, 1]} : vector<960x12xbf16> to vector<512x12xbf16>
    %11 = vector.extract_strided_slice %4 {offsets = [149, 0], sizes = [512, 12], strides = [1, 1]} : vector<960x12xbf16> to vector<512x12xbf16>
    %12 = vector.extract_strided_slice %4 {offsets = [150, 0], sizes = [512, 12], strides = [1, 1]} : vector<960x12xbf16> to vector<512x12xbf16>
    %13 = vector.extract_strided_slice %4 {offsets = [294, 0], sizes = [512, 12], strides = [1, 1]} : vector<960x12xbf16> to vector<512x12xbf16>
    %14 = vector.extract_strided_slice %4 {offsets = [295, 0], sizes = [512, 12], strides = [1, 1]} : vector<960x12xbf16> to vector<512x12xbf16>
    %15 = vector.extract_strided_slice %4 {offsets = [296, 0], sizes = [512, 12], strides = [1, 1]} : vector<960x12xbf16> to vector<512x12xbf16>
    %16 = vector.extract_strided_slice %4 {offsets = [297, 0], sizes = [512, 12], strides = [1, 1]} : vector<960x12xbf16> to vector<512x12xbf16>
    %17 = vector.extract_strided_slice %4 {offsets = [441, 0], sizes = [512, 12], strides = [1, 1]} : vector<960x12xbf16> to vector<512x12xbf16>
    %18 = vector.extract_strided_slice %4 {offsets = [442, 0], sizes = [512, 12], strides = [1, 1]} : vector<960x12xbf16> to vector<512x12xbf16>
    %19 = vector.extract_strided_slice %4 {offsets = [443, 0], sizes = [512, 12], strides = [1, 1]} : vector<960x12xbf16> to vector<512x12xbf16>
    %20 = vector.extract_strided_slice %4 {offsets = [444, 0], sizes = [512, 12], strides = [1, 1]} : vector<960x12xbf16> to vector<512x12xbf16>
    %21 = tpu.concatenate %5, %6, %7, %8, %9, %10, %11, %12, %13, %14, %15, %16, %17, %18, %19, %20 in 1 : vector<512x12xbf16>, vector<512x12xbf16>, vector<512x12xbf16>, vector<512x12xbf16>, vector<512x12xbf16>, vector<512x12xbf16>, vector<512x12xbf16>, vector<512x12xbf16>, vector<512x12xbf16>, vector<512x12xbf16>, vector<512x12xbf16>, vector<512x12xbf16>, vector<512x12xbf16>, vector<512x12xbf16>, vector<512x12xbf16>, vector<512x12xbf16> -> vector<512x192xbf16>
    %c0_1 = arith.constant 0 : index
    %c0_2 = arith.constant 0 : index
    %22 = vector.load %arg3[%c0_1, %c0_2] : memref<192x4xbf16, #tpu.memory_space<vmem>>, vector<192x4xbf16>
    %cst = arith.constant dense<0.000000e+00> : vector<512x4xf32>
    %23 = tpu.matmul %21, %22, %cst {dimension_numbers = #tpu.dot_dimension_numbers<[1], [0], [0], [1], [0, 0, 1, 1], [], []>} : vector<512x192xbf16>, vector<192x4xbf16>, vector<512x4xf32> -> vector<512x4xf32>
    %c0_3 = arith.constant 0 : index
    %c0_4 = arith.constant 0 : index
    %24 = vector.load %arg4[%c0_3, %c0_4] : memref<1x4xf32, #tpu.memory_space<vmem>>, vector<1x4xf32>
    %25 = vector.broadcast %24 : vector<1x4xf32> to vector<512x4xf32>
    %26 = arith.addf %23, %25 : vector<512x4xf32>
    %cst_5 = arith.constant 0.000000e+00 : f32
    %27 = vector.broadcast %cst_5 : f32 to vector<512x4xf32>
    %28 = arith.maximumf %26, %27 : vector<512x4xf32>
    %29 = arith.truncf %28 : vector<512x4xf32> to vector<512x4xbf16>
    %c0_6 = arith.constant 0 : index
    %c0_7 = arith.constant 0 : index
    %c0_8 = arith.constant 0 : index
    %30 = vector.load %arg5[%c0_6, %c0_7, %c0_8] : memref<1x512x4xbf16, #tpu.memory_space<vmem>>, vector<1x512x4xbf16>
    %31 = vector.shape_cast %30 : vector<1x512x4xbf16> to vector<512x4xbf16>
    %32 = vector.shape_cast %29 : vector<512x4xbf16> to vector<1x512x4xbf16>
    tpu.vector_store %arg5[%c0_6, %c0_7, %c0_8], %32 {strides = array<i32>} : memref<1x512x4xbf16, #tpu.memory_space<vmem>>, vector<1x512x4xbf16>,
    return
  }
  func.func @transform_0(%arg0: i32, %arg1: i32) -> (i32, i32, i32) {
    %c0_i32 = arith.constant 0 : i32
    %c0_i32_0 = arith.constant 0 : i32
    %c0_i32_1 = arith.constant 0 : i32
    return %arg0, %c0_i32, %c0_i32_0 : i32, i32, i32
  }
  func.func @transform_1(%arg0: i32, %arg1: i32) -> (i32, i32) {
    %c0_i32 = arith.constant 0 : i32
    %c0_i32_0 = arith.constant 0 : i32
    %c0_i32_1 = arith.constant 0 : i32
    return %c0_i32, %c0_i32_0 : i32, i32
  }
  func.func @transform_2(%arg0: i32, %arg1: i32) -> (i32, i32) {
    %c0_i32 = arith.constant 0 : i32
    %c0_i32_0 = arith.constant 0 : i32
    %c0_i32_1 = arith.constant 0 : i32
    return %c0_i32, %c0_i32_0 : i32, i32
  }
  func.func @transform_3(%arg0: i32, %arg1: i32) -> (i32, i32, i32) {
    %c0_i32 = arith.constant 0 : i32
    %c0_i32_0 = arith.constant 0 : i32
    return %arg0, %arg1, %c0_i32 : i32, i32, i32
  }
}

module attributes {stable_mosaic.version = 11 : i64} {
  func.func @_maxpool_kernel(%arg0: i32, %arg1: memref<1x4x5336x4xbf16, #tpu.memory_space<vmem>>, %arg2: memref<1x5256x4xbf16, #tpu.memory_space<vmem>>) attributes {dimension_semantics = [#tpu.dimension_semantics<parallel>], iteration_bounds = array<i64: 2>, scalar_prefetch = 0 : i64, scratch_operands = 0 : i64, tpu.core_type = #tpu.core_type<tc>, window_params = [{transform_indices = @transform_0, window_bounds = array<i64: 1, 4, 5336, 4>}, {transform_indices = @transform_1, window_bounds = array<i64: 1, 5256, 4>}]} {
    %c0 = arith.constant 0 : index
    %c0_0 = arith.constant 0 : index
    %c0_1 = arith.constant 0 : index
    %c0_2 = arith.constant 0 : index
    %0 = vector.load %arg1[%c0, %c0_0, %c0_1, %c0_2] : memref<1x4x5336x4xbf16, #tpu.memory_space<vmem>>, vector<1x1x5256x4xbf16>
    %1 = vector.shape_cast %0 : vector<1x1x5256x4xbf16> to vector<5256x4xbf16>
    %2 = arith.extf %1 : vector<5256x4xbf16> to vector<5256x4xf32>
    %c0_3 = arith.constant 0 : index
    %c1 = arith.constant 1 : index
    %c0_4 = arith.constant 0 : index
    %c0_5 = arith.constant 0 : index
    %3 = vector.load %arg1[%c0_3, %c1, %c0_4, %c0_5] : memref<1x4x5336x4xbf16, #tpu.memory_space<vmem>>, vector<1x1x5256x4xbf16>
    %4 = vector.shape_cast %3 : vector<1x1x5256x4xbf16> to vector<5256x4xbf16>
    %5 = arith.extf %4 : vector<5256x4xbf16> to vector<5256x4xf32>
    %6 = arith.maximumf %2, %5 : vector<5256x4xf32>
    %c0_6 = arith.constant 0 : index
    %c0_7 = arith.constant 0 : index
    %c1_8 = arith.constant 1 : index
    %c0_9 = arith.constant 0 : index
    %7 = vector.load %arg1[%c0_6, %c0_7, %c1_8, %c0_9] : memref<1x4x5336x4xbf16, #tpu.memory_space<vmem>>, vector<1x1x5256x4xbf16>
    %8 = vector.shape_cast %7 : vector<1x1x5256x4xbf16> to vector<5256x4xbf16>
    %9 = arith.extf %8 : vector<5256x4xbf16> to vector<5256x4xf32>
    %10 = arith.maximumf %6, %9 : vector<5256x4xf32>
    %c0_10 = arith.constant 0 : index
    %c2 = arith.constant 2 : index
    %c0_11 = arith.constant 0 : index
    %c0_12 = arith.constant 0 : index
    %11 = vector.load %arg1[%c0_10, %c2, %c0_11, %c0_12] : memref<1x4x5336x4xbf16, #tpu.memory_space<vmem>>, vector<1x1x5256x4xbf16>
    %12 = vector.shape_cast %11 : vector<1x1x5256x4xbf16> to vector<5256x4xbf16>
    %13 = arith.extf %12 : vector<5256x4xbf16> to vector<5256x4xf32>
    %14 = arith.maximumf %10, %13 : vector<5256x4xf32>
    %c0_13 = arith.constant 0 : index
    %c3 = arith.constant 3 : index
    %c0_14 = arith.constant 0 : index
    %c0_15 = arith.constant 0 : index
    %15 = vector.load %arg1[%c0_13, %c3, %c0_14, %c0_15] : memref<1x4x5336x4xbf16, #tpu.memory_space<vmem>>, vector<1x1x5256x4xbf16>
    %16 = vector.shape_cast %15 : vector<1x1x5256x4xbf16> to vector<5256x4xbf16>
    %17 = arith.extf %16 : vector<5256x4xbf16> to vector<5256x4xf32>
    %18 = arith.maximumf %14, %17 : vector<5256x4xf32>
    %c0_16 = arith.constant 0 : index
    %c2_17 = arith.constant 2 : index
    %c1_18 = arith.constant 1 : index
    %c0_19 = arith.constant 0 : index
    %19 = vector.load %arg1[%c0_16, %c2_17, %c1_18, %c0_19] : memref<1x4x5336x4xbf16, #tpu.memory_space<vmem>>, vector<1x1x5256x4xbf16>
    %20 = vector.shape_cast %19 : vector<1x1x5256x4xbf16> to vector<5256x4xbf16>
    %21 = arith.extf %20 : vector<5256x4xbf16> to vector<5256x4xf32>
    %22 = arith.maximumf %18, %21 : vector<5256x4xf32>
    %c0_20 = arith.constant 0 : index
    %c0_21 = arith.constant 0 : index
    %c73 = arith.constant 73 : index
    %c0_22 = arith.constant 0 : index
    %23 = vector.load %arg1[%c0_20, %c0_21, %c73, %c0_22] : memref<1x4x5336x4xbf16, #tpu.memory_space<vmem>>, vector<1x1x5256x4xbf16>
    %24 = vector.shape_cast %23 : vector<1x1x5256x4xbf16> to vector<5256x4xbf16>
    %25 = arith.extf %24 : vector<5256x4xbf16> to vector<5256x4xf32>
    %26 = arith.maximumf %22, %25 : vector<5256x4xf32>
    %c0_23 = arith.constant 0 : index
    %c1_24 = arith.constant 1 : index
    %c73_25 = arith.constant 73 : index
    %c0_26 = arith.constant 0 : index
    %27 = vector.load %arg1[%c0_23, %c1_24, %c73_25, %c0_26] : memref<1x4x5336x4xbf16, #tpu.memory_space<vmem>>, vector<1x1x5256x4xbf16>
    %28 = vector.shape_cast %27 : vector<1x1x5256x4xbf16> to vector<5256x4xbf16>
    %29 = arith.extf %28 : vector<5256x4xbf16> to vector<5256x4xf32>
    %30 = arith.maximumf %26, %29 : vector<5256x4xf32>
    %c0_27 = arith.constant 0 : index
    %c0_28 = arith.constant 0 : index
    %c74 = arith.constant 74 : index
    %c0_29 = arith.constant 0 : index
    %31 = vector.load %arg1[%c0_27, %c0_28, %c74, %c0_29] : memref<1x4x5336x4xbf16, #tpu.memory_space<vmem>>, vector<1x1x5256x4xbf16>
    %32 = vector.shape_cast %31 : vector<1x1x5256x4xbf16> to vector<5256x4xbf16>
    %33 = arith.extf %32 : vector<5256x4xbf16> to vector<5256x4xf32>
    %34 = arith.maximumf %30, %33 : vector<5256x4xf32>
    %35 = arith.truncf %34 : vector<5256x4xf32> to vector<5256x4xbf16>
    %c0_30 = arith.constant 0 : index
    %c0_31 = arith.constant 0 : index
    %c0_32 = arith.constant 0 : index
    %36 = vector.load %arg2[%c0_30, %c0_31, %c0_32] : memref<1x5256x4xbf16, #tpu.memory_space<vmem>>, vector<1x5256x4xbf16>
    %37 = vector.shape_cast %36 : vector<1x5256x4xbf16> to vector<5256x4xbf16>
    %38 = vector.shape_cast %35 : vector<5256x4xbf16> to vector<1x5256x4xbf16>
    tpu.vector_store %arg2[%c0_30, %c0_31, %c0_32], %38 {strides = array<i32>} : memref<1x5256x4xbf16, #tpu.memory_space<vmem>>, vector<1x5256x4xbf16>,
    return
  }
  func.func @transform_0(%arg0: i32) -> (i32, i32, i32, i32) {
    %c0_i32 = arith.constant 0 : i32
    %c0_i32_0 = arith.constant 0 : i32
    %c0_i32_1 = arith.constant 0 : i32
    %c0_i32_2 = arith.constant 0 : i32
    return %arg0, %c0_i32, %c0_i32_0, %c0_i32_1 : i32, i32, i32, i32
  }
  func.func @transform_1(%arg0: i32) -> (i32, i32, i32) {
    %c0_i32 = arith.constant 0 : i32
    %c0_i32_0 = arith.constant 0 : i32
    %c0_i32_1 = arith.constant 0 : i32
    return %arg0, %c0_i32, %c0_i32_0 : i32, i32, i32
  }
}

module attributes {stable_mosaic.version = 11 : i64} {
  func.func @_bottleneck_kernel(%arg0: i32, %arg1: memref<1x5480x4xbf16, #tpu.memory_space<vmem>>, %arg2: memref<5480x1xf32, #tpu.memory_space<vmem>>, %arg3: memref<4x20xbf16, #tpu.memory_space<vmem>>, %arg4: memref<1x20xf32, #tpu.memory_space<vmem>>, %arg5: memref<36x4xbf16, #tpu.memory_space<vmem>>, %arg6: memref<1x4xf32, #tpu.memory_space<vmem>>, %arg7: memref<4x16xbf16, #tpu.memory_space<vmem>>, %arg8: memref<1x16xf32, #tpu.memory_space<vmem>>, %arg9: memref<1x5328x16xbf16, #tpu.memory_space<vmem>>) attributes {dimension_semantics = [#tpu.dimension_semantics<parallel>], iteration_bounds = array<i64: 2>, scalar_prefetch = 0 : i64, scratch_operands = 0 : i64, tpu.core_type = #tpu.core_type<tc>, window_params = [{transform_indices = @transform_0, window_bounds = array<i64: 1, 5480, 4>}, {pipeline_mode = #tpu.pipeline_mode<synchronous>, transform_indices = @transform_1, window_bounds = array<i64: 5480, 1>}, {pipeline_mode = #tpu.pipeline_mode<synchronous>, transform_indices = @transform_2, window_bounds = array<i64: 4, 20>}, {pipeline_mode = #tpu.pipeline_mode<synchronous>, transform_indices = @transform_3, window_bounds = array<i64: 1, 20>}, {pipeline_mode = #tpu.pipeline_mode<synchronous>, transform_indices = @transform_4, window_bounds = array<i64: 36, 4>}, {pipeline_mode = #tpu.pipeline_mode<synchronous>, transform_indices = @transform_5, window_bounds = array<i64: 1, 4>}, {pipeline_mode = #tpu.pipeline_mode<synchronous>, transform_indices = @transform_6, window_bounds = array<i64: 4, 16>}, {pipeline_mode = #tpu.pipeline_mode<synchronous>, transform_indices = @transform_7, window_bounds = array<i64: 1, 16>}, {transform_indices = @transform_8, window_bounds = array<i64: 1, 5328, 16>}]} {
    %c0 = arith.constant 0 : index
    %c0_0 = arith.constant 0 : index
    %c0_1 = arith.constant 0 : index
    %0 = vector.load %arg1[%c0, %c0_0, %c0_1] : memref<1x5480x4xbf16, #tpu.memory_space<vmem>>, vector<1x5480x4xbf16>
    %1 = vector.shape_cast %0 : vector<1x5480x4xbf16> to vector<5480x4xbf16>
    %c0_2 = arith.constant 0 : index
    %c0_3 = arith.constant 0 : index
    %2 = vector.load %arg3[%c0_2, %c0_3] : memref<4x20xbf16, #tpu.memory_space<vmem>>, vector<4x20xbf16>
    %cst = arith.constant dense<0.000000e+00> : vector<5480x20xf32>
    %3 = tpu.matmul %1, %2, %cst {dimension_numbers = #tpu.dot_dimension_numbers<[1], [0], [0], [1], [0, 0, 1, 1], [], []>} : vector<5480x4xbf16>, vector<4x20xbf16>, vector<5480x20xf32> -> vector<5480x20xf32>
    %c0_4 = arith.constant 0 : index
    %c0_5 = arith.constant 0 : index
    %4 = vector.load %arg4[%c0_4, %c0_5] : memref<1x20xf32, #tpu.memory_space<vmem>>, vector<1x20xf32>
    %5 = vector.broadcast %4 : vector<1x20xf32> to vector<5480x20xf32>
    %6 = arith.addf %3, %5 : vector<5480x20xf32>
    %7 = vector.extract_strided_slice %6 {offsets = [0, 0], sizes = [5480, 4], strides = [1, 1]} : vector<5480x20xf32> to vector<5480x4xf32>
    %cst_6 = arith.constant 0.000000e+00 : f32
    %8 = vector.broadcast %cst_6 : f32 to vector<5480x4xf32>
    %9 = arith.maximumf %7, %8 : vector<5480x4xf32>
    %c0_7 = arith.constant 0 : index
    %c0_8 = arith.constant 0 : index
    %10 = vector.load %arg2[%c0_7, %c0_8] : memref<5480x1xf32, #tpu.memory_space<vmem>>, vector<5480x1xf32>
    %11 = vector.broadcast %10 : vector<5480x1xf32> to vector<5480x4xf32>
    %12 = arith.mulf %9, %11 : vector<5480x4xf32>
    %13 = arith.truncf %12 : vector<5480x4xf32> to vector<5480x4xbf16>
    %14 = vector.extract_strided_slice %13 {offsets = [0, 0], sizes = [5328, 4], strides = [1, 1]} : vector<5480x4xbf16> to vector<5328x4xbf16>
    %15 = vector.extract_strided_slice %13 {offsets = [1, 0], sizes = [5328, 4], strides = [1, 1]} : vector<5480x4xbf16> to vector<5328x4xbf16>
    %16 = vector.extract_strided_slice %13 {offsets = [2, 0], sizes = [5328, 4], strides = [1, 1]} : vector<5480x4xbf16> to vector<5328x4xbf16>
    %17 = vector.extract_strided_slice %13 {offsets = [74, 0], sizes = [5328, 4], strides = [1, 1]} : vector<5480x4xbf16> to vector<5328x4xbf16>
    %18 = vector.extract_strided_slice %13 {offsets = [75, 0], sizes = [5328, 4], strides = [1, 1]} : vector<5480x4xbf16> to vector<5328x4xbf16>
    %19 = vector.extract_strided_slice %13 {offsets = [76, 0], sizes = [5328, 4], strides = [1, 1]} : vector<5480x4xbf16> to vector<5328x4xbf16>
    %20 = vector.extract_strided_slice %13 {offsets = [148, 0], sizes = [5328, 4], strides = [1, 1]} : vector<5480x4xbf16> to vector<5328x4xbf16>
    %21 = vector.extract_strided_slice %13 {offsets = [149, 0], sizes = [5328, 4], strides = [1, 1]} : vector<5480x4xbf16> to vector<5328x4xbf16>
    %22 = vector.extract_strided_slice %13 {offsets = [150, 0], sizes = [5328, 4], strides = [1, 1]} : vector<5480x4xbf16> to vector<5328x4xbf16>
    %23 = tpu.concatenate %14, %15, %16, %17, %18, %19, %20, %21, %22 in 1 : vector<5328x4xbf16>, vector<5328x4xbf16>, vector<5328x4xbf16>, vector<5328x4xbf16>, vector<5328x4xbf16>, vector<5328x4xbf16>, vector<5328x4xbf16>, vector<5328x4xbf16>, vector<5328x4xbf16> -> vector<5328x36xbf16>
    %c0_9 = arith.constant 0 : index
    %c0_10 = arith.constant 0 : index
    %24 = vector.load %arg5[%c0_9, %c0_10] : memref<36x4xbf16, #tpu.memory_space<vmem>>, vector<36x4xbf16>
    %cst_11 = arith.constant dense<0.000000e+00> : vector<5328x4xf32>
    %25 = tpu.matmul %23, %24, %cst_11 {dimension_numbers = #tpu.dot_dimension_numbers<[1], [0], [0], [1], [0, 0, 1, 1], [], []>} : vector<5328x36xbf16>, vector<36x4xbf16>, vector<5328x4xf32> -> vector<5328x4xf32>
    %c0_12 = arith.constant 0 : index
    %c0_13 = arith.constant 0 : index
    %26 = vector.load %arg6[%c0_12, %c0_13] : memref<1x4xf32, #tpu.memory_space<vmem>>, vector<1x4xf32>
    %27 = vector.broadcast %26 : vector<1x4xf32> to vector<5328x4xf32>
    %28 = arith.addf %25, %27 : vector<5328x4xf32>
    %cst_14 = arith.constant 0.000000e+00 : f32
    %29 = vector.broadcast %cst_14 : f32 to vector<5328x4xf32>
    %30 = arith.maximumf %28, %29 : vector<5328x4xf32>
    %31 = arith.truncf %30 : vector<5328x4xf32> to vector<5328x4xbf16>
    %c0_15 = arith.constant 0 : index
    %c0_16 = arith.constant 0 : index
    %32 = vector.load %arg7[%c0_15, %c0_16] : memref<4x16xbf16, #tpu.memory_space<vmem>>, vector<4x16xbf16>
    %cst_17 = arith.constant dense<0.000000e+00> : vector<5328x16xf32>
    %33 = tpu.matmul %31, %32, %cst_17 {dimension_numbers = #tpu.dot_dimension_numbers<[1], [0], [0], [1], [0, 0, 1, 1], [], []>} : vector<5328x4xbf16>, vector<4x16xbf16>, vector<5328x16xf32> -> vector<5328x16xf32>
    %c0_18 = arith.constant 0 : index
    %c0_19 = arith.constant 0 : index
    %34 = vector.load %arg8[%c0_18, %c0_19] : memref<1x16xf32, #tpu.memory_space<vmem>>, vector<1x16xf32>
    %35 = vector.broadcast %34 : vector<1x16xf32> to vector<5328x16xf32>
    %36 = arith.addf %33, %35 : vector<5328x16xf32>
    %37 = vector.extract_strided_slice %6 {offsets = [0, 4], sizes = [5480, 16], strides = [1, 1]} : vector<5480x20xf32> to vector<5480x16xf32>
    %38 = vector.extract_strided_slice %37 {offsets = [75, 0], sizes = [5328, 16], strides = [1, 1]} : vector<5480x16xf32> to vector<5328x16xf32>
    %39 = arith.addf %36, %38 : vector<5328x16xf32>
    %cst_20 = arith.constant 0.000000e+00 : f32
    %40 = vector.broadcast %cst_20 : f32 to vector<5328x16xf32>
    %41 = arith.maximumf %39, %40 : vector<5328x16xf32>
    %42 = arith.truncf %41 : vector<5328x16xf32> to vector<5328x16xbf16>
    %c0_21 = arith.constant 0 : index
    %c0_22 = arith.constant 0 : index
    %c0_23 = arith.constant 0 : index
    %43 = vector.load %arg9[%c0_21, %c0_22, %c0_23] : memref<1x5328x16xbf16, #tpu.memory_space<vmem>>, vector<1x5328x16xbf16>
    %44 = vector.shape_cast %43 : vector<1x5328x16xbf16> to vector<5328x16xbf16>
    %45 = vector.shape_cast %42 : vector<5328x16xbf16> to vector<1x5328x16xbf16>
    tpu.vector_store %arg9[%c0_21, %c0_22, %c0_23], %45 {strides = array<i32>} : memref<1x5328x16xbf16, #tpu.memory_space<vmem>>, vector<1x5328x16xbf16>,
    return
  }
  func.func @transform_0(%arg0: i32) -> (i32, i32, i32) {
    %c0_i32 = arith.constant 0 : i32
    %c0_i32_0 = arith.constant 0 : i32
    %c0_i32_1 = arith.constant 0 : i32
    return %arg0, %c0_i32, %c0_i32_0 : i32, i32, i32
  }
  func.func @transform_1(%arg0: i32) -> (i32, i32) {
    %c0_i32 = arith.constant 0 : i32
    %c0_i32_0 = arith.constant 0 : i32
    %c0_i32_1 = arith.constant 0 : i32
    return %c0_i32, %c0_i32_0 : i32, i32
  }
  func.func @transform_2(%arg0: i32) -> (i32, i32) {
    %c0_i32 = arith.constant 0 : i32
    %c0_i32_0 = arith.constant 0 : i32
    %c0_i32_1 = arith.constant 0 : i32
    return %c0_i32, %c0_i32_0 : i32, i32
  }
  func.func @transform_3(%arg0: i32) -> (i32, i32) {
    %c0_i32 = arith.constant 0 : i32
    %c0_i32_0 = arith.constant 0 : i32
    %c0_i32_1 = arith.constant 0 : i32
    return %c0_i32, %c0_i32_0 : i32, i32
  }
  func.func @transform_4(%arg0: i32) -> (i32, i32) {
    %c0_i32 = arith.constant 0 : i32
    %c0_i32_0 = arith.constant 0 : i32
    %c0_i32_1 = arith.constant 0 : i32
    return %c0_i32, %c0_i32_0 : i32, i32
  }
  func.func @transform_5(%arg0: i32) -> (i32, i32) {
    %c0_i32 = arith.constant 0 : i32
    %c0_i32_0 = arith.constant 0 : i32
    %c0_i32_1 = arith.constant 0 : i32
    return %c0_i32, %c0_i32_0 : i32, i32
  }
  func.func @transform_6(%arg0: i32) -> (i32, i32) {
    %c0_i32 = arith.constant 0 : i32
    %c0_i32_0 = arith.constant 0 : i32
    %c0_i32_1 = arith.constant 0 : i32
    return %c0_i32, %c0_i32_0 : i32, i32
  }
  func.func @transform_7(%arg0: i32) -> (i32, i32) {
    %c0_i32 = arith.constant 0 : i32
    %c0_i32_0 = arith.constant 0 : i32
    %c0_i32_1 = arith.constant 0 : i32
    return %c0_i32, %c0_i32_0 : i32, i32
  }
  func.func @transform_8(%arg0: i32) -> (i32, i32, i32) {
    %c0_i32 = arith.constant 0 : i32
    %c0_i32_0 = arith.constant 0 : i32
    %c0_i32_1 = arith.constant 0 : i32
    return %arg0, %c0_i32, %c0_i32_0 : i32, i32, i32
  }
}

module attributes {stable_mosaic.version = 11 : i64} {
  func.func @_bottleneck_kernel(%arg0: i32, %arg1: memref<1x5480x16xbf16, #tpu.memory_space<vmem>>, %arg2: memref<5480x1xf32, #tpu.memory_space<vmem>>, %arg3: memref<16x4xbf16, #tpu.memory_space<vmem>>, %arg4: memref<1x4xf32, #tpu.memory_space<vmem>>, %arg5: memref<36x4xbf16, #tpu.memory_space<vmem>>, %arg6: memref<1x4xf32, #tpu.memory_space<vmem>>, %arg7: memref<4x16xbf16, #tpu.memory_space<vmem>>, %arg8: memref<1x16xf32, #tpu.memory_space<vmem>>, %arg9: memref<1x5328x16xbf16, #tpu.memory_space<vmem>>) attributes {dimension_semantics = [#tpu.dimension_semantics<parallel>], iteration_bounds = array<i64: 2>, scalar_prefetch = 0 : i64, scratch_operands = 0 : i64, tpu.core_type = #tpu.core_type<tc>, window_params = [{transform_indices = @transform_0, window_bounds = array<i64: 1, 5480, 16>}, {pipeline_mode = #tpu.pipeline_mode<synchronous>, transform_indices = @transform_1, window_bounds = array<i64: 5480, 1>}, {pipeline_mode = #tpu.pipeline_mode<synchronous>, transform_indices = @transform_2, window_bounds = array<i64: 16, 4>}, {pipeline_mode = #tpu.pipeline_mode<synchronous>, transform_indices = @transform_3, window_bounds = array<i64: 1, 4>}, {pipeline_mode = #tpu.pipeline_mode<synchronous>, transform_indices = @transform_4, window_bounds = array<i64: 36, 4>}, {pipeline_mode = #tpu.pipeline_mode<synchronous>, transform_indices = @transform_5, window_bounds = array<i64: 1, 4>}, {pipeline_mode = #tpu.pipeline_mode<synchronous>, transform_indices = @transform_6, window_bounds = array<i64: 4, 16>}, {pipeline_mode = #tpu.pipeline_mode<synchronous>, transform_indices = @transform_7, window_bounds = array<i64: 1, 16>}, {transform_indices = @transform_8, window_bounds = array<i64: 1, 5328, 16>}]} {
    %c0 = arith.constant 0 : index
    %c0_0 = arith.constant 0 : index
    %c0_1 = arith.constant 0 : index
    %0 = vector.load %arg1[%c0, %c0_0, %c0_1] : memref<1x5480x16xbf16, #tpu.memory_space<vmem>>, vector<1x5480x16xbf16>
    %1 = vector.shape_cast %0 : vector<1x5480x16xbf16> to vector<5480x16xbf16>
    %c0_2 = arith.constant 0 : index
    %c0_3 = arith.constant 0 : index
    %2 = vector.load %arg3[%c0_2, %c0_3] : memref<16x4xbf16, #tpu.memory_space<vmem>>, vector<16x4xbf16>
    %cst = arith.constant dense<0.000000e+00> : vector<5480x4xf32>
    %3 = tpu.matmul %1, %2, %cst {dimension_numbers = #tpu.dot_dimension_numbers<[1], [0], [0], [1], [0, 0, 1, 1], [], []>} : vector<5480x16xbf16>, vector<16x4xbf16>, vector<5480x4xf32> -> vector<5480x4xf32>
    %c0_4 = arith.constant 0 : index
    %c0_5 = arith.constant 0 : index
    %4 = vector.load %arg4[%c0_4, %c0_5] : memref<1x4xf32, #tpu.memory_space<vmem>>, vector<1x4xf32>
    %5 = vector.broadcast %4 : vector<1x4xf32> to vector<5480x4xf32>
    %6 = arith.addf %3, %5 : vector<5480x4xf32>
    %cst_6 = arith.constant 0.000000e+00 : f32
    %7 = vector.broadcast %cst_6 : f32 to vector<5480x4xf32>
    %8 = arith.maximumf %6, %7 : vector<5480x4xf32>
    %c0_7 = arith.constant 0 : index
    %c0_8 = arith.constant 0 : index
    %9 = vector.load %arg2[%c0_7, %c0_8] : memref<5480x1xf32, #tpu.memory_space<vmem>>, vector<5480x1xf32>
    %10 = vector.broadcast %9 : vector<5480x1xf32> to vector<5480x4xf32>
    %11 = arith.mulf %8, %10 : vector<5480x4xf32>
    %12 = arith.truncf %11 : vector<5480x4xf32> to vector<5480x4xbf16>
    %13 = vector.extract_strided_slice %12 {offsets = [0, 0], sizes = [5328, 4], strides = [1, 1]} : vector<5480x4xbf16> to vector<5328x4xbf16>
    %14 = vector.extract_strided_slice %12 {offsets = [1, 0], sizes = [5328, 4], strides = [1, 1]} : vector<5480x4xbf16> to vector<5328x4xbf16>
    %15 = vector.extract_strided_slice %12 {offsets = [2, 0], sizes = [5328, 4], strides = [1, 1]} : vector<5480x4xbf16> to vector<5328x4xbf16>
    %16 = vector.extract_strided_slice %12 {offsets = [74, 0], sizes = [5328, 4], strides = [1, 1]} : vector<5480x4xbf16> to vector<5328x4xbf16>
    %17 = vector.extract_strided_slice %12 {offsets = [75, 0], sizes = [5328, 4], strides = [1, 1]} : vector<5480x4xbf16> to vector<5328x4xbf16>
    %18 = vector.extract_strided_slice %12 {offsets = [76, 0], sizes = [5328, 4], strides = [1, 1]} : vector<5480x4xbf16> to vector<5328x4xbf16>
    %19 = vector.extract_strided_slice %12 {offsets = [148, 0], sizes = [5328, 4], strides = [1, 1]} : vector<5480x4xbf16> to vector<5328x4xbf16>
    %20 = vector.extract_strided_slice %12 {offsets = [149, 0], sizes = [5328, 4], strides = [1, 1]} : vector<5480x4xbf16> to vector<5328x4xbf16>
    %21 = vector.extract_strided_slice %12 {offsets = [150, 0], sizes = [5328, 4], strides = [1, 1]} : vector<5480x4xbf16> to vector<5328x4xbf16>
    %22 = tpu.concatenate %13, %14, %15, %16, %17, %18, %19, %20, %21 in 1 : vector<5328x4xbf16>, vector<5328x4xbf16>, vector<5328x4xbf16>, vector<5328x4xbf16>, vector<5328x4xbf16>, vector<5328x4xbf16>, vector<5328x4xbf16>, vector<5328x4xbf16>, vector<5328x4xbf16> -> vector<5328x36xbf16>
    %c0_9 = arith.constant 0 : index
    %c0_10 = arith.constant 0 : index
    %23 = vector.load %arg5[%c0_9, %c0_10] : memref<36x4xbf16, #tpu.memory_space<vmem>>, vector<36x4xbf16>
    %cst_11 = arith.constant dense<0.000000e+00> : vector<5328x4xf32>
    %24 = tpu.matmul %22, %23, %cst_11 {dimension_numbers = #tpu.dot_dimension_numbers<[1], [0], [0], [1], [0, 0, 1, 1], [], []>} : vector<5328x36xbf16>, vector<36x4xbf16>, vector<5328x4xf32> -> vector<5328x4xf32>
    %c0_12 = arith.constant 0 : index
    %c0_13 = arith.constant 0 : index
    %25 = vector.load %arg6[%c0_12, %c0_13] : memref<1x4xf32, #tpu.memory_space<vmem>>, vector<1x4xf32>
    %26 = vector.broadcast %25 : vector<1x4xf32> to vector<5328x4xf32>
    %27 = arith.addf %24, %26 : vector<5328x4xf32>
    %cst_14 = arith.constant 0.000000e+00 : f32
    %28 = vector.broadcast %cst_14 : f32 to vector<5328x4xf32>
    %29 = arith.maximumf %27, %28 : vector<5328x4xf32>
    %30 = arith.truncf %29 : vector<5328x4xf32> to vector<5328x4xbf16>
    %c0_15 = arith.constant 0 : index
    %c0_16 = arith.constant 0 : index
    %31 = vector.load %arg7[%c0_15, %c0_16] : memref<4x16xbf16, #tpu.memory_space<vmem>>, vector<4x16xbf16>
    %cst_17 = arith.constant dense<0.000000e+00> : vector<5328x16xf32>
    %32 = tpu.matmul %30, %31, %cst_17 {dimension_numbers = #tpu.dot_dimension_numbers<[1], [0], [0], [1], [0, 0, 1, 1], [], []>} : vector<5328x4xbf16>, vector<4x16xbf16>, vector<5328x16xf32> -> vector<5328x16xf32>
    %c0_18 = arith.constant 0 : index
    %c0_19 = arith.constant 0 : index
    %33 = vector.load %arg8[%c0_18, %c0_19] : memref<1x16xf32, #tpu.memory_space<vmem>>, vector<1x16xf32>
    %34 = vector.broadcast %33 : vector<1x16xf32> to vector<5328x16xf32>
    %35 = arith.addf %32, %34 : vector<5328x16xf32>
    %36 = vector.extract_strided_slice %1 {offsets = [75, 0], sizes = [5328, 16], strides = [1, 1]} : vector<5480x16xbf16> to vector<5328x16xbf16>
    %37 = arith.extf %36 : vector<5328x16xbf16> to vector<5328x16xf32>
    %38 = arith.addf %35, %37 : vector<5328x16xf32>
    %cst_20 = arith.constant 0.000000e+00 : f32
    %39 = vector.broadcast %cst_20 : f32 to vector<5328x16xf32>
    %40 = arith.maximumf %38, %39 : vector<5328x16xf32>
    %41 = arith.truncf %40 : vector<5328x16xf32> to vector<5328x16xbf16>
    %c0_21 = arith.constant 0 : index
    %c0_22 = arith.constant 0 : index
    %c0_23 = arith.constant 0 : index
    %42 = vector.load %arg9[%c0_21, %c0_22, %c0_23] : memref<1x5328x16xbf16, #tpu.memory_space<vmem>>, vector<1x5328x16xbf16>
    %43 = vector.shape_cast %42 : vector<1x5328x16xbf16> to vector<5328x16xbf16>
    %44 = vector.shape_cast %41 : vector<5328x16xbf16> to vector<1x5328x16xbf16>
    tpu.vector_store %arg9[%c0_21, %c0_22, %c0_23], %44 {strides = array<i32>} : memref<1x5328x16xbf16, #tpu.memory_space<vmem>>, vector<1x5328x16xbf16>,
    return
  }
  func.func @transform_0(%arg0: i32) -> (i32, i32, i32) {
    %c0_i32 = arith.constant 0 : i32
    %c0_i32_0 = arith.constant 0 : i32
    %c0_i32_1 = arith.constant 0 : i32
    return %arg0, %c0_i32, %c0_i32_0 : i32, i32, i32
  }
  func.func @transform_1(%arg0: i32) -> (i32, i32) {
    %c0_i32 = arith.constant 0 : i32
    %c0_i32_0 = arith.constant 0 : i32
    %c0_i32_1 = arith.constant 0 : i32
    return %c0_i32, %c0_i32_0 : i32, i32
  }
  func.func @transform_2(%arg0: i32) -> (i32, i32) {
    %c0_i32 = arith.constant 0 : i32
    %c0_i32_0 = arith.constant 0 : i32
    %c0_i32_1 = arith.constant 0 : i32
    return %c0_i32, %c0_i32_0 : i32, i32
  }
  func.func @transform_3(%arg0: i32) -> (i32, i32) {
    %c0_i32 = arith.constant 0 : i32
    %c0_i32_0 = arith.constant 0 : i32
    %c0_i32_1 = arith.constant 0 : i32
    return %c0_i32, %c0_i32_0 : i32, i32
  }
  func.func @transform_4(%arg0: i32) -> (i32, i32) {
    %c0_i32 = arith.constant 0 : i32
    %c0_i32_0 = arith.constant 0 : i32
    %c0_i32_1 = arith.constant 0 : i32
    return %c0_i32, %c0_i32_0 : i32, i32
  }
  func.func @transform_5(%arg0: i32) -> (i32, i32) {
    %c0_i32 = arith.constant 0 : i32
    %c0_i32_0 = arith.constant 0 : i32
    %c0_i32_1 = arith.constant 0 : i32
    return %c0_i32, %c0_i32_0 : i32, i32
  }
  func.func @transform_6(%arg0: i32) -> (i32, i32) {
    %c0_i32 = arith.constant 0 : i32
    %c0_i32_0 = arith.constant 0 : i32
    %c0_i32_1 = arith.constant 0 : i32
    return %c0_i32, %c0_i32_0 : i32, i32
  }
  func.func @transform_7(%arg0: i32) -> (i32, i32) {
    %c0_i32 = arith.constant 0 : i32
    %c0_i32_0 = arith.constant 0 : i32
    %c0_i32_1 = arith.constant 0 : i32
    return %c0_i32, %c0_i32_0 : i32, i32
  }
  func.func @transform_8(%arg0: i32) -> (i32, i32, i32) {
    %c0_i32 = arith.constant 0 : i32
    %c0_i32_0 = arith.constant 0 : i32
    %c0_i32_1 = arith.constant 0 : i32
    return %arg0, %c0_i32, %c0_i32_0 : i32, i32, i32
  }
}

module attributes {stable_mosaic.version = 11 : i64} {
  func.func @_conv1_kernel(%arg0: i32, %arg1: i32, %arg2: memref<1x4096x16xbf16, #tpu.memory_space<vmem>>, %arg3: memref<16x8xbf16, #tpu.memory_space<vmem>>, %arg4: memref<1x8xf32, #tpu.memory_space<vmem>>, %arg5: memref<1x4096x8xbf16, #tpu.memory_space<vmem>>) attributes {dimension_semantics = [#tpu.dimension_semantics<parallel>, #tpu.dimension_semantics<parallel>], iteration_bounds = array<i64: 2, 2>, scalar_prefetch = 0 : i64, scratch_operands = 0 : i64, tpu.core_type = #tpu.core_type<tc>, window_params = [{transform_indices = @transform_0, window_bounds = array<i64: 1, 4096, 16>}, {pipeline_mode = #tpu.pipeline_mode<synchronous>, transform_indices = @transform_1, window_bounds = array<i64: 16, 8>}, {pipeline_mode = #tpu.pipeline_mode<synchronous>, transform_indices = @transform_2, window_bounds = array<i64: 1, 8>}, {transform_indices = @transform_3, window_bounds = array<i64: 1, 4096, 8>}]} {
    %c0 = arith.constant 0 : index
    %c0_0 = arith.constant 0 : index
    %c0_1 = arith.constant 0 : index
    %0 = vector.load %arg2[%c0, %c0_0, %c0_1] : memref<1x4096x16xbf16, #tpu.memory_space<vmem>>, vector<1x4096x16xbf16>
    %1 = vector.shape_cast %0 : vector<1x4096x16xbf16> to vector<4096x16xbf16>
    %c0_2 = arith.constant 0 : index
    %c0_3 = arith.constant 0 : index
    %2 = vector.load %arg3[%c0_2, %c0_3] : memref<16x8xbf16, #tpu.memory_space<vmem>>, vector<16x8xbf16>
    %cst = arith.constant dense<0.000000e+00> : vector<4096x8xf32>
    %3 = tpu.matmul %1, %2, %cst {dimension_numbers = #tpu.dot_dimension_numbers<[1], [0], [0], [1], [0, 0, 1, 1], [], []>} : vector<4096x16xbf16>, vector<16x8xbf16>, vector<4096x8xf32> -> vector<4096x8xf32>
    %c0_4 = arith.constant 0 : index
    %c0_5 = arith.constant 0 : index
    %4 = vector.load %arg4[%c0_4, %c0_5] : memref<1x8xf32, #tpu.memory_space<vmem>>, vector<1x8xf32>
    %5 = vector.broadcast %4 : vector<1x8xf32> to vector<4096x8xf32>
    %6 = arith.addf %3, %5 : vector<4096x8xf32>
    %cst_6 = arith.constant 0.000000e+00 : f32
    %7 = vector.broadcast %cst_6 : f32 to vector<4096x8xf32>
    %8 = arith.maximumf %6, %7 : vector<4096x8xf32>
    %9 = arith.truncf %8 : vector<4096x8xf32> to vector<4096x8xbf16>
    %c0_7 = arith.constant 0 : index
    %c0_8 = arith.constant 0 : index
    %c0_9 = arith.constant 0 : index
    %10 = vector.load %arg5[%c0_7, %c0_8, %c0_9] : memref<1x4096x8xbf16, #tpu.memory_space<vmem>>, vector<1x4096x8xbf16>
    %11 = vector.shape_cast %10 : vector<1x4096x8xbf16> to vector<4096x8xbf16>
    %12 = vector.shape_cast %9 : vector<4096x8xbf16> to vector<1x4096x8xbf16>
    tpu.vector_store %arg5[%c0_7, %c0_8, %c0_9], %12 {strides = array<i32>} : memref<1x4096x8xbf16, #tpu.memory_space<vmem>>, vector<1x4096x8xbf16>,
    return
  }
  func.func @transform_0(%arg0: i32, %arg1: i32) -> (i32, i32, i32) {
    %c0_i32 = arith.constant 0 : i32
    %c0_i32_0 = arith.constant 0 : i32
    return %arg0, %arg1, %c0_i32 : i32, i32, i32
  }
  func.func @transform_1(%arg0: i32, %arg1: i32) -> (i32, i32) {
    %c0_i32 = arith.constant 0 : i32
    %c0_i32_0 = arith.constant 0 : i32
    %c0_i32_1 = arith.constant 0 : i32
    return %c0_i32, %c0_i32_0 : i32, i32
  }
  func.func @transform_2(%arg0: i32, %arg1: i32) -> (i32, i32) {
    %c0_i32 = arith.constant 0 : i32
    %c0_i32_0 = arith.constant 0 : i32
    %c0_i32_1 = arith.constant 0 : i32
    return %c0_i32, %c0_i32_0 : i32, i32
  }
  func.func @transform_3(%arg0: i32, %arg1: i32) -> (i32, i32, i32) {
    %c0_i32 = arith.constant 0 : i32
    %c0_i32_0 = arith.constant 0 : i32
    return %arg0, %arg1, %c0_i32 : i32, i32, i32
  }
}

module attributes {stable_mosaic.version = 11 : i64} {
  func.func @_conv_tap_kernel(%arg0: i32, %arg1: i32, %arg2: memref<1x1576x32xbf16, #tpu.memory_space<vmem>>, %arg3: memref<128x8xbf16, #tpu.memory_space<vmem>>, %arg4: memref<1x8xf32, #tpu.memory_space<vmem>>, %arg5: memref<1x512x8xbf16, #tpu.memory_space<vmem>>) attributes {dimension_semantics = [#tpu.dimension_semantics<parallel>, #tpu.dimension_semantics<parallel>], iteration_bounds = array<i64: 2, 3>, scalar_prefetch = 0 : i64, scratch_operands = 0 : i64, tpu.core_type = #tpu.core_type<tc>, window_params = [{transform_indices = @transform_0, window_bounds = array<i64: 1, 1576, 32>}, {pipeline_mode = #tpu.pipeline_mode<synchronous>, transform_indices = @transform_1, window_bounds = array<i64: 128, 8>}, {pipeline_mode = #tpu.pipeline_mode<synchronous>, transform_indices = @transform_2, window_bounds = array<i64: 1, 8>}, {transform_indices = @transform_3, window_bounds = array<i64: 1, 512, 8>}]} {
    %c512_i32 = arith.constant 512 : i32
    %0 = arith.muli %arg1, %c512_i32 : i32
    %1 = tpu.assume_multiple %0, 8 : i32
    %c0 = arith.constant 0 : index
    %2 = arith.index_cast %1 : i32 to index
    %c0_0 = arith.constant 0 : index
    %3 = vector.load %arg2[%c0, %2, %c0_0] : memref<1x1576x32xbf16, #tpu.memory_space<vmem>>, vector<1x552x32xbf16>
    %4 = vector.shape_cast %3 : vector<1x552x32xbf16> to vector<552x32xbf16>
    %5 = vector.extract_strided_slice %4 {offsets = [0, 0], sizes = [512, 32], strides = [1, 1]} : vector<552x32xbf16> to vector<512x32xbf16>
    %6 = vector.extract_strided_slice %4 {offsets = [1, 0], sizes = [512, 32], strides = [1, 1]} : vector<552x32xbf16> to vector<512x32xbf16>
    %7 = vector.extract_strided_slice %4 {offsets = [37, 0], sizes = [512, 32], strides = [1, 1]} : vector<552x32xbf16> to vector<512x32xbf16>
    %8 = vector.extract_strided_slice %4 {offsets = [38, 0], sizes = [512, 32], strides = [1, 1]} : vector<552x32xbf16> to vector<512x32xbf16>
    %9 = tpu.concatenate %5, %6, %7, %8 in 1 : vector<512x32xbf16>, vector<512x32xbf16>, vector<512x32xbf16>, vector<512x32xbf16> -> vector<512x128xbf16>
    %c0_1 = arith.constant 0 : index
    %c0_2 = arith.constant 0 : index
    %10 = vector.load %arg3[%c0_1, %c0_2] : memref<128x8xbf16, #tpu.memory_space<vmem>>, vector<128x8xbf16>
    %cst = arith.constant dense<0.000000e+00> : vector<512x8xf32>
    %11 = tpu.matmul %9, %10, %cst {dimension_numbers = #tpu.dot_dimension_numbers<[1], [0], [0], [1], [0, 0, 1, 1], [], []>} : vector<512x128xbf16>, vector<128x8xbf16>, vector<512x8xf32> -> vector<512x8xf32>
    %c0_3 = arith.constant 0 : index
    %c0_4 = arith.constant 0 : index
    %12 = vector.load %arg4[%c0_3, %c0_4] : memref<1x8xf32, #tpu.memory_space<vmem>>, vector<1x8xf32>
    %13 = vector.broadcast %12 : vector<1x8xf32> to vector<512x8xf32>
    %14 = arith.addf %11, %13 : vector<512x8xf32>
    %cst_5 = arith.constant 0.000000e+00 : f32
    %15 = vector.broadcast %cst_5 : f32 to vector<512x8xf32>
    %16 = arith.maximumf %14, %15 : vector<512x8xf32>
    %17 = arith.truncf %16 : vector<512x8xf32> to vector<512x8xbf16>
    %c0_6 = arith.constant 0 : index
    %c0_7 = arith.constant 0 : index
    %c0_8 = arith.constant 0 : index
    %18 = vector.load %arg5[%c0_6, %c0_7, %c0_8] : memref<1x512x8xbf16, #tpu.memory_space<vmem>>, vector<1x512x8xbf16>
    %19 = vector.shape_cast %18 : vector<1x512x8xbf16> to vector<512x8xbf16>
    %20 = vector.shape_cast %17 : vector<512x8xbf16> to vector<1x512x8xbf16>
    tpu.vector_store %arg5[%c0_6, %c0_7, %c0_8], %20 {strides = array<i32>} : memref<1x512x8xbf16, #tpu.memory_space<vmem>>, vector<1x512x8xbf16>,
    return
  }
  func.func @transform_0(%arg0: i32, %arg1: i32) -> (i32, i32, i32) {
    %c0_i32 = arith.constant 0 : i32
    %c0_i32_0 = arith.constant 0 : i32
    %c0_i32_1 = arith.constant 0 : i32
    return %arg0, %c0_i32, %c0_i32_0 : i32, i32, i32
  }
  func.func @transform_1(%arg0: i32, %arg1: i32) -> (i32, i32) {
    %c0_i32 = arith.constant 0 : i32
    %c0_i32_0 = arith.constant 0 : i32
    %c0_i32_1 = arith.constant 0 : i32
    return %c0_i32, %c0_i32_0 : i32, i32
  }
  func.func @transform_2(%arg0: i32, %arg1: i32) -> (i32, i32) {
    %c0_i32 = arith.constant 0 : i32
    %c0_i32_0 = arith.constant 0 : i32
    %c0_i32_1 = arith.constant 0 : i32
    return %c0_i32, %c0_i32_0 : i32, i32
  }
  func.func @transform_3(%arg0: i32, %arg1: i32) -> (i32, i32, i32) {
    %c0_i32 = arith.constant 0 : i32
    %c0_i32_0 = arith.constant 0 : i32
    return %arg0, %arg1, %c0_i32 : i32, i32, i32
  }
}

module attributes {stable_mosaic.version = 11 : i64} {
  func.func @_conv1_kernel(%arg0: i32, %arg1: i32, %arg2: memref<1x1296x16xbf16, #tpu.memory_space<vmem>>, %arg3: memref<16x32xbf16, #tpu.memory_space<vmem>>, %arg4: memref<1x32xf32, #tpu.memory_space<vmem>>, %arg5: memref<1x1296x32xbf16, #tpu.memory_space<vmem>>) attributes {dimension_semantics = [#tpu.dimension_semantics<parallel>, #tpu.dimension_semantics<parallel>], iteration_bounds = array<i64: 2, 1>, scalar_prefetch = 0 : i64, scratch_operands = 0 : i64, tpu.core_type = #tpu.core_type<tc>, window_params = [{transform_indices = @transform_0, window_bounds = array<i64: 1, 1296, 16>}, {pipeline_mode = #tpu.pipeline_mode<synchronous>, transform_indices = @transform_1, window_bounds = array<i64: 16, 32>}, {pipeline_mode = #tpu.pipeline_mode<synchronous>, transform_indices = @transform_2, window_bounds = array<i64: 1, 32>}, {transform_indices = @transform_3, window_bounds = array<i64: 1, 1296, 32>}]} {
    %c0 = arith.constant 0 : index
    %c0_0 = arith.constant 0 : index
    %c0_1 = arith.constant 0 : index
    %0 = vector.load %arg2[%c0, %c0_0, %c0_1] : memref<1x1296x16xbf16, #tpu.memory_space<vmem>>, vector<1x1296x16xbf16>
    %1 = vector.shape_cast %0 : vector<1x1296x16xbf16> to vector<1296x16xbf16>
    %c0_2 = arith.constant 0 : index
    %c0_3 = arith.constant 0 : index
    %2 = vector.load %arg3[%c0_2, %c0_3] : memref<16x32xbf16, #tpu.memory_space<vmem>>, vector<16x32xbf16>
    %cst = arith.constant dense<0.000000e+00> : vector<1296x32xf32>
    %3 = tpu.matmul %1, %2, %cst {dimension_numbers = #tpu.dot_dimension_numbers<[1], [0], [0], [1], [0, 0, 1, 1], [], []>} : vector<1296x16xbf16>, vector<16x32xbf16>, vector<1296x32xf32> -> vector<1296x32xf32>
    %c0_4 = arith.constant 0 : index
    %c0_5 = arith.constant 0 : index
    %4 = vector.load %arg4[%c0_4, %c0_5] : memref<1x32xf32, #tpu.memory_space<vmem>>, vector<1x32xf32>
    %5 = vector.broadcast %4 : vector<1x32xf32> to vector<1296x32xf32>
    %6 = arith.addf %3, %5 : vector<1296x32xf32>
    %7 = arith.truncf %6 : vector<1296x32xf32> to vector<1296x32xbf16>
    %c0_6 = arith.constant 0 : index
    %c0_7 = arith.constant 0 : index
    %c0_8 = arith.constant 0 : index
    %8 = vector.load %arg5[%c0_6, %c0_7, %c0_8] : memref<1x1296x32xbf16, #tpu.memory_space<vmem>>, vector<1x1296x32xbf16>
    %9 = vector.shape_cast %8 : vector<1x1296x32xbf16> to vector<1296x32xbf16>
    %10 = vector.shape_cast %7 : vector<1296x32xbf16> to vector<1x1296x32xbf16>
    tpu.vector_store %arg5[%c0_6, %c0_7, %c0_8], %10 {strides = array<i32>} : memref<1x1296x32xbf16, #tpu.memory_space<vmem>>, vector<1x1296x32xbf16>,
    return
  }
  func.func @transform_0(%arg0: i32, %arg1: i32) -> (i32, i32, i32) {
    %c0_i32 = arith.constant 0 : i32
    %c0_i32_0 = arith.constant 0 : i32
    return %arg0, %arg1, %c0_i32 : i32, i32, i32
  }
  func.func @transform_1(%arg0: i32, %arg1: i32) -> (i32, i32) {
    %c0_i32 = arith.constant 0 : i32
    %c0_i32_0 = arith.constant 0 : i32
    %c0_i32_1 = arith.constant 0 : i32
    return %c0_i32, %c0_i32_0 : i32, i32
  }
  func.func @transform_2(%arg0: i32, %arg1: i32) -> (i32, i32) {
    %c0_i32 = arith.constant 0 : i32
    %c0_i32_0 = arith.constant 0 : i32
    %c0_i32_1 = arith.constant 0 : i32
    return %c0_i32, %c0_i32_0 : i32, i32
  }
  func.func @transform_3(%arg0: i32, %arg1: i32) -> (i32, i32, i32) {
    %c0_i32 = arith.constant 0 : i32
    %c0_i32_0 = arith.constant 0 : i32
    return %arg0, %arg1, %c0_i32 : i32, i32, i32
  }
}

module attributes {stable_mosaic.version = 11 : i64} {
  func.func @_conv1_res_kernel(%arg0: i32, %arg1: i32, %arg2: memref<1x1296x8xbf16, #tpu.memory_space<vmem>>, %arg3: memref<8x32xbf16, #tpu.memory_space<vmem>>, %arg4: memref<1x32xf32, #tpu.memory_space<vmem>>, %arg5: memref<1x1296x32xbf16, #tpu.memory_space<vmem>>, %arg6: memref<1x1296x32xbf16, #tpu.memory_space<vmem>>) attributes {dimension_semantics = [#tpu.dimension_semantics<parallel>, #tpu.dimension_semantics<parallel>], iteration_bounds = array<i64: 2, 1>, scalar_prefetch = 0 : i64, scratch_operands = 0 : i64, tpu.core_type = #tpu.core_type<tc>, window_params = [{transform_indices = @transform_0, window_bounds = array<i64: 1, 1296, 8>}, {pipeline_mode = #tpu.pipeline_mode<synchronous>, transform_indices = @transform_1, window_bounds = array<i64: 8, 32>}, {pipeline_mode = #tpu.pipeline_mode<synchronous>, transform_indices = @transform_2, window_bounds = array<i64: 1, 32>}, {transform_indices = @transform_3, window_bounds = array<i64: 1, 1296, 32>}, {transform_indices = @transform_4, window_bounds = array<i64: 1, 1296, 32>}]} {
    %c0 = arith.constant 0 : index
    %c0_0 = arith.constant 0 : index
    %c0_1 = arith.constant 0 : index
    %0 = vector.load %arg2[%c0, %c0_0, %c0_1] : memref<1x1296x8xbf16, #tpu.memory_space<vmem>>, vector<1x1296x8xbf16>
    %1 = vector.shape_cast %0 : vector<1x1296x8xbf16> to vector<1296x8xbf16>
    %c0_2 = arith.constant 0 : index
    %c0_3 = arith.constant 0 : index
    %2 = vector.load %arg3[%c0_2, %c0_3] : memref<8x32xbf16, #tpu.memory_space<vmem>>, vector<8x32xbf16>
    %cst = arith.constant dense<0.000000e+00> : vector<1296x32xf32>
    %3 = tpu.matmul %1, %2, %cst {dimension_numbers = #tpu.dot_dimension_numbers<[1], [0], [0], [1], [0, 0, 1, 1], [], []>} : vector<1296x8xbf16>, vector<8x32xbf16>, vector<1296x32xf32> -> vector<1296x32xf32>
    %c0_4 = arith.constant 0 : index
    %c0_5 = arith.constant 0 : index
    %4 = vector.load %arg4[%c0_4, %c0_5] : memref<1x32xf32, #tpu.memory_space<vmem>>, vector<1x32xf32>
    %5 = vector.broadcast %4 : vector<1x32xf32> to vector<1296x32xf32>
    %6 = arith.addf %3, %5 : vector<1296x32xf32>
    %c0_6 = arith.constant 0 : index
    %c0_7 = arith.constant 0 : index
    %c0_8 = arith.constant 0 : index
    %7 = vector.load %arg5[%c0_6, %c0_7, %c0_8] : memref<1x1296x32xbf16, #tpu.memory_space<vmem>>, vector<1x1296x32xbf16>
    %8 = vector.shape_cast %7 : vector<1x1296x32xbf16> to vector<1296x32xbf16>
    %9 = arith.extf %8 : vector<1296x32xbf16> to vector<1296x32xf32>
    %10 = arith.addf %6, %9 : vector<1296x32xf32>
    %cst_9 = arith.constant 0.000000e+00 : f32
    %11 = vector.broadcast %cst_9 : f32 to vector<1296x32xf32>
    %12 = arith.maximumf %10, %11 : vector<1296x32xf32>
    %13 = arith.truncf %12 : vector<1296x32xf32> to vector<1296x32xbf16>
    %c0_10 = arith.constant 0 : index
    %c0_11 = arith.constant 0 : index
    %c0_12 = arith.constant 0 : index
    %14 = vector.load %arg6[%c0_10, %c0_11, %c0_12] : memref<1x1296x32xbf16, #tpu.memory_space<vmem>>, vector<1x1296x32xbf16>
    %15 = vector.shape_cast %14 : vector<1x1296x32xbf16> to vector<1296x32xbf16>
    %16 = vector.shape_cast %13 : vector<1296x32xbf16> to vector<1x1296x32xbf16>
    tpu.vector_store %arg6[%c0_10, %c0_11, %c0_12], %16 {strides = array<i32>} : memref<1x1296x32xbf16, #tpu.memory_space<vmem>>, vector<1x1296x32xbf16>,
    return
  }
  func.func @transform_0(%arg0: i32, %arg1: i32) -> (i32, i32, i32) {
    %c0_i32 = arith.constant 0 : i32
    %c0_i32_0 = arith.constant 0 : i32
    return %arg0, %arg1, %c0_i32 : i32, i32, i32
  }
  func.func @transform_1(%arg0: i32, %arg1: i32) -> (i32, i32) {
    %c0_i32 = arith.constant 0 : i32
    %c0_i32_0 = arith.constant 0 : i32
    %c0_i32_1 = arith.constant 0 : i32
    return %c0_i32, %c0_i32_0 : i32, i32
  }
  func.func @transform_2(%arg0: i32, %arg1: i32) -> (i32, i32) {
    %c0_i32 = arith.constant 0 : i32
    %c0_i32_0 = arith.constant 0 : i32
    %c0_i32_1 = arith.constant 0 : i32
    return %c0_i32, %c0_i32_0 : i32, i32
  }
  func.func @transform_3(%arg0: i32, %arg1: i32) -> (i32, i32, i32) {
    %c0_i32 = arith.constant 0 : i32
    %c0_i32_0 = arith.constant 0 : i32
    return %arg0, %arg1, %c0_i32 : i32, i32, i32
  }
  func.func @transform_4(%arg0: i32, %arg1: i32) -> (i32, i32, i32) {
    %c0_i32 = arith.constant 0 : i32
    %c0_i32_0 = arith.constant 0 : i32
    return %arg0, %arg1, %c0_i32 : i32, i32, i32
  }
}

module attributes {stable_mosaic.version = 11 : i64} {
  func.func @_bottleneck_kernel(%arg0: i32, %arg1: memref<1x1448x32xbf16, #tpu.memory_space<vmem>>, %arg2: memref<1448x1xf32, #tpu.memory_space<vmem>>, %arg3: memref<32x8xbf16, #tpu.memory_space<vmem>>, %arg4: memref<1x8xf32, #tpu.memory_space<vmem>>, %arg5: memref<72x8xbf16, #tpu.memory_space<vmem>>, %arg6: memref<1x8xf32, #tpu.memory_space<vmem>>, %arg7: memref<8x32xbf16, #tpu.memory_space<vmem>>, %arg8: memref<1x32xf32, #tpu.memory_space<vmem>>, %arg9: memref<1x1368x32xbf16, #tpu.memory_space<vmem>>) attributes {dimension_semantics = [#tpu.dimension_semantics<parallel>], iteration_bounds = array<i64: 2>, scalar_prefetch = 0 : i64, scratch_operands = 0 : i64, tpu.core_type = #tpu.core_type<tc>, window_params = [{transform_indices = @transform_0, window_bounds = array<i64: 1, 1448, 32>}, {pipeline_mode = #tpu.pipeline_mode<synchronous>, transform_indices = @transform_1, window_bounds = array<i64: 1448, 1>}, {pipeline_mode = #tpu.pipeline_mode<synchronous>, transform_indices = @transform_2, window_bounds = array<i64: 32, 8>}, {pipeline_mode = #tpu.pipeline_mode<synchronous>, transform_indices = @transform_3, window_bounds = array<i64: 1, 8>}, {pipeline_mode = #tpu.pipeline_mode<synchronous>, transform_indices = @transform_4, window_bounds = array<i64: 72, 8>}, {pipeline_mode = #tpu.pipeline_mode<synchronous>, transform_indices = @transform_5, window_bounds = array<i64: 1, 8>}, {pipeline_mode = #tpu.pipeline_mode<synchronous>, transform_indices = @transform_6, window_bounds = array<i64: 8, 32>}, {pipeline_mode = #tpu.pipeline_mode<synchronous>, transform_indices = @transform_7, window_bounds = array<i64: 1, 32>}, {transform_indices = @transform_8, window_bounds = array<i64: 1, 1368, 32>}]} {
    %c0 = arith.constant 0 : index
    %c0_0 = arith.constant 0 : index
    %c0_1 = arith.constant 0 : index
    %0 = vector.load %arg1[%c0, %c0_0, %c0_1] : memref<1x1448x32xbf16, #tpu.memory_space<vmem>>, vector<1x1448x32xbf16>
    %1 = vector.shape_cast %0 : vector<1x1448x32xbf16> to vector<1448x32xbf16>
    %c0_2 = arith.constant 0 : index
    %c0_3 = arith.constant 0 : index
    %2 = vector.load %arg3[%c0_2, %c0_3] : memref<32x8xbf16, #tpu.memory_space<vmem>>, vector<32x8xbf16>
    %cst = arith.constant dense<0.000000e+00> : vector<1448x8xf32>
    %3 = tpu.matmul %1, %2, %cst {dimension_numbers = #tpu.dot_dimension_numbers<[1], [0], [0], [1], [0, 0, 1, 1], [], []>} : vector<1448x32xbf16>, vector<32x8xbf16>, vector<1448x8xf32> -> vector<1448x8xf32>
    %c0_4 = arith.constant 0 : index
    %c0_5 = arith.constant 0 : index
    %4 = vector.load %arg4[%c0_4, %c0_5] : memref<1x8xf32, #tpu.memory_space<vmem>>, vector<1x8xf32>
    %5 = vector.broadcast %4 : vector<1x8xf32> to vector<1448x8xf32>
    %6 = arith.addf %3, %5 : vector<1448x8xf32>
    %cst_6 = arith.constant 0.000000e+00 : f32
    %7 = vector.broadcast %cst_6 : f32 to vector<1448x8xf32>
    %8 = arith.maximumf %6, %7 : vector<1448x8xf32>
    %c0_7 = arith.constant 0 : index
    %c0_8 = arith.constant 0 : index
    %9 = vector.load %arg2[%c0_7, %c0_8] : memref<1448x1xf32, #tpu.memory_space<vmem>>, vector<1448x1xf32>
    %10 = vector.broadcast %9 : vector<1448x1xf32> to vector<1448x8xf32>
    %11 = arith.mulf %8, %10 : vector<1448x8xf32>
    %12 = arith.truncf %11 : vector<1448x8xf32> to vector<1448x8xbf16>
    %13 = vector.extract_strided_slice %12 {offsets = [0, 0], sizes = [1368, 8], strides = [1, 1]} : vector<1448x8xbf16> to vector<1368x8xbf16>
    %14 = vector.extract_strided_slice %12 {offsets = [1, 0], sizes = [1368, 8], strides = [1, 1]} : vector<1448x8xbf16> to vector<1368x8xbf16>
    %15 = vector.extract_strided_slice %12 {offsets = [2, 0], sizes = [1368, 8], strides = [1, 1]} : vector<1448x8xbf16> to vector<1368x8xbf16>
    %16 = vector.extract_strided_slice %12 {offsets = [38, 0], sizes = [1368, 8], strides = [1, 1]} : vector<1448x8xbf16> to vector<1368x8xbf16>
    %17 = vector.extract_strided_slice %12 {offsets = [39, 0], sizes = [1368, 8], strides = [1, 1]} : vector<1448x8xbf16> to vector<1368x8xbf16>
    %18 = vector.extract_strided_slice %12 {offsets = [40, 0], sizes = [1368, 8], strides = [1, 1]} : vector<1448x8xbf16> to vector<1368x8xbf16>
    %19 = vector.extract_strided_slice %12 {offsets = [76, 0], sizes = [1368, 8], strides = [1, 1]} : vector<1448x8xbf16> to vector<1368x8xbf16>
    %20 = vector.extract_strided_slice %12 {offsets = [77, 0], sizes = [1368, 8], strides = [1, 1]} : vector<1448x8xbf16> to vector<1368x8xbf16>
    %21 = vector.extract_strided_slice %12 {offsets = [78, 0], sizes = [1368, 8], strides = [1, 1]} : vector<1448x8xbf16> to vector<1368x8xbf16>
    %22 = tpu.concatenate %13, %14, %15, %16, %17, %18, %19, %20, %21 in 1 : vector<1368x8xbf16>, vector<1368x8xbf16>, vector<1368x8xbf16>, vector<1368x8xbf16>, vector<1368x8xbf16>, vector<1368x8xbf16>, vector<1368x8xbf16>, vector<1368x8xbf16>, vector<1368x8xbf16> -> vector<1368x72xbf16>
    %c0_9 = arith.constant 0 : index
    %c0_10 = arith.constant 0 : index
    %23 = vector.load %arg5[%c0_9, %c0_10] : memref<72x8xbf16, #tpu.memory_space<vmem>>, vector<72x8xbf16>
    %cst_11 = arith.constant dense<0.000000e+00> : vector<1368x8xf32>
    %24 = tpu.matmul %22, %23, %cst_11 {dimension_numbers = #tpu.dot_dimension_numbers<[1], [0], [0], [1], [0, 0, 1, 1], [], []>} : vector<1368x72xbf16>, vector<72x8xbf16>, vector<1368x8xf32> -> vector<1368x8xf32>
    %c0_12 = arith.constant 0 : index
    %c0_13 = arith.constant 0 : index
    %25 = vector.load %arg6[%c0_12, %c0_13] : memref<1x8xf32, #tpu.memory_space<vmem>>, vector<1x8xf32>
    %26 = vector.broadcast %25 : vector<1x8xf32> to vector<1368x8xf32>
    %27 = arith.addf %24, %26 : vector<1368x8xf32>
    %cst_14 = arith.constant 0.000000e+00 : f32
    %28 = vector.broadcast %cst_14 : f32 to vector<1368x8xf32>
    %29 = arith.maximumf %27, %28 : vector<1368x8xf32>
    %30 = arith.truncf %29 : vector<1368x8xf32> to vector<1368x8xbf16>
    %c0_15 = arith.constant 0 : index
    %c0_16 = arith.constant 0 : index
    %31 = vector.load %arg7[%c0_15, %c0_16] : memref<8x32xbf16, #tpu.memory_space<vmem>>, vector<8x32xbf16>
    %cst_17 = arith.constant dense<0.000000e+00> : vector<1368x32xf32>
    %32 = tpu.matmul %30, %31, %cst_17 {dimension_numbers = #tpu.dot_dimension_numbers<[1], [0], [0], [1], [0, 0, 1, 1], [], []>} : vector<1368x8xbf16>, vector<8x32xbf16>, vector<1368x32xf32> -> vector<1368x32xf32>
    %c0_18 = arith.constant 0 : index
    %c0_19 = arith.constant 0 : index
    %33 = vector.load %arg8[%c0_18, %c0_19] : memref<1x32xf32, #tpu.memory_space<vmem>>, vector<1x32xf32>
    %34 = vector.broadcast %33 : vector<1x32xf32> to vector<1368x32xf32>
    %35 = arith.addf %32, %34 : vector<1368x32xf32>
    %36 = vector.extract_strided_slice %1 {offsets = [39, 0], sizes = [1368, 32], strides = [1, 1]} : vector<1448x32xbf16> to vector<1368x32xbf16>
    %37 = arith.extf %36 : vector<1368x32xbf16> to vector<1368x32xf32>
    %38 = arith.addf %35, %37 : vector<1368x32xf32>
    %cst_20 = arith.constant 0.000000e+00 : f32
    %39 = vector.broadcast %cst_20 : f32 to vector<1368x32xf32>
    %40 = arith.maximumf %38, %39 : vector<1368x32xf32>
    %41 = arith.truncf %40 : vector<1368x32xf32> to vector<1368x32xbf16>
    %c0_21 = arith.constant 0 : index
    %c0_22 = arith.constant 0 : index
    %c0_23 = arith.constant 0 : index
    %42 = vector.load %arg9[%c0_21, %c0_22, %c0_23] : memref<1x1368x32xbf16, #tpu.memory_space<vmem>>, vector<1x1368x32xbf16>
    %43 = vector.shape_cast %42 : vector<1x1368x32xbf16> to vector<1368x32xbf16>
    %44 = vector.shape_cast %41 : vector<1368x32xbf16> to vector<1x1368x32xbf16>
    tpu.vector_store %arg9[%c0_21, %c0_22, %c0_23], %44 {strides = array<i32>} : memref<1x1368x32xbf16, #tpu.memory_space<vmem>>, vector<1x1368x32xbf16>,
    return
  }
  func.func @transform_0(%arg0: i32) -> (i32, i32, i32) {
    %c0_i32 = arith.constant 0 : i32
    %c0_i32_0 = arith.constant 0 : i32
    %c0_i32_1 = arith.constant 0 : i32
    return %arg0, %c0_i32, %c0_i32_0 : i32, i32, i32
  }
  func.func @transform_1(%arg0: i32) -> (i32, i32) {
    %c0_i32 = arith.constant 0 : i32
    %c0_i32_0 = arith.constant 0 : i32
    %c0_i32_1 = arith.constant 0 : i32
    return %c0_i32, %c0_i32_0 : i32, i32
  }
  func.func @transform_2(%arg0: i32) -> (i32, i32) {
    %c0_i32 = arith.constant 0 : i32
    %c0_i32_0 = arith.constant 0 : i32
    %c0_i32_1 = arith.constant 0 : i32
    return %c0_i32, %c0_i32_0 : i32, i32
  }
  func.func @transform_3(%arg0: i32) -> (i32, i32) {
    %c0_i32 = arith.constant 0 : i32
    %c0_i32_0 = arith.constant 0 : i32
    %c0_i32_1 = arith.constant 0 : i32
    return %c0_i32, %c0_i32_0 : i32, i32
  }
  func.func @transform_4(%arg0: i32) -> (i32, i32) {
    %c0_i32 = arith.constant 0 : i32
    %c0_i32_0 = arith.constant 0 : i32
    %c0_i32_1 = arith.constant 0 : i32
    return %c0_i32, %c0_i32_0 : i32, i32
  }
  func.func @transform_5(%arg0: i32) -> (i32, i32) {
    %c0_i32 = arith.constant 0 : i32
    %c0_i32_0 = arith.constant 0 : i32
    %c0_i32_1 = arith.constant 0 : i32
    return %c0_i32, %c0_i32_0 : i32, i32
  }
  func.func @transform_6(%arg0: i32) -> (i32, i32) {
    %c0_i32 = arith.constant 0 : i32
    %c0_i32_0 = arith.constant 0 : i32
    %c0_i32_1 = arith.constant 0 : i32
    return %c0_i32, %c0_i32_0 : i32, i32
  }
  func.func @transform_7(%arg0: i32) -> (i32, i32) {
    %c0_i32 = arith.constant 0 : i32
    %c0_i32_0 = arith.constant 0 : i32
    %c0_i32_1 = arith.constant 0 : i32
    return %c0_i32, %c0_i32_0 : i32, i32
  }
  func.func @transform_8(%arg0: i32) -> (i32, i32, i32) {
    %c0_i32 = arith.constant 0 : i32
    %c0_i32_0 = arith.constant 0 : i32
    %c0_i32_1 = arith.constant 0 : i32
    return %arg0, %c0_i32, %c0_i32_0 : i32, i32, i32
  }
}

module attributes {stable_mosaic.version = 11 : i64} {
  func.func @_conv1_kernel(%arg0: i32, %arg1: i32, %arg2: memref<1x1296x32xbf16, #tpu.memory_space<vmem>>, %arg3: memref<32x64xbf16, #tpu.memory_space<vmem>>, %arg4: memref<1x64xf32, #tpu.memory_space<vmem>>, %arg5: memref<1x1296x64xbf16, #tpu.memory_space<vmem>>) attributes {dimension_semantics = [#tpu.dimension_semantics<parallel>, #tpu.dimension_semantics<parallel>], iteration_bounds = array<i64: 2, 1>, scalar_prefetch = 0 : i64, scratch_operands = 0 : i64, tpu.core_type = #tpu.core_type<tc>, window_params = [{transform_indices = @transform_0, window_bounds = array<i64: 1, 1296, 32>}, {pipeline_mode = #tpu.pipeline_mode<synchronous>, transform_indices = @transform_1, window_bounds = array<i64: 32, 64>}, {pipeline_mode = #tpu.pipeline_mode<synchronous>, transform_indices = @transform_2, window_bounds = array<i64: 1, 64>}, {transform_indices = @transform_3, window_bounds = array<i64: 1, 1296, 64>}]} {
    %c0 = arith.constant 0 : index
    %c0_0 = arith.constant 0 : index
    %c0_1 = arith.constant 0 : index
    %0 = vector.load %arg2[%c0, %c0_0, %c0_1] : memref<1x1296x32xbf16, #tpu.memory_space<vmem>>, vector<1x1296x32xbf16>
    %1 = vector.shape_cast %0 : vector<1x1296x32xbf16> to vector<1296x32xbf16>
    %c0_2 = arith.constant 0 : index
    %c0_3 = arith.constant 0 : index
    %2 = vector.load %arg3[%c0_2, %c0_3] : memref<32x64xbf16, #tpu.memory_space<vmem>>, vector<32x64xbf16>
    %cst = arith.constant dense<0.000000e+00> : vector<1296x64xf32>
    %3 = tpu.matmul %1, %2, %cst {dimension_numbers = #tpu.dot_dimension_numbers<[1], [0], [0], [1], [0, 0, 1, 1], [], []>} : vector<1296x32xbf16>, vector<32x64xbf16>, vector<1296x64xf32> -> vector<1296x64xf32>
    %c0_4 = arith.constant 0 : index
    %c0_5 = arith.constant 0 : index
    %4 = vector.load %arg4[%c0_4, %c0_5] : memref<1x64xf32, #tpu.memory_space<vmem>>, vector<1x64xf32>
    %5 = vector.broadcast %4 : vector<1x64xf32> to vector<1296x64xf32>
    %6 = arith.addf %3, %5 : vector<1296x64xf32>
    %7 = arith.truncf %6 : vector<1296x64xf32> to vector<1296x64xbf16>
    %c0_6 = arith.constant 0 : index
    %c0_7 = arith.constant 0 : index
    %c0_8 = arith.constant 0 : index
    %8 = vector.load %arg5[%c0_6, %c0_7, %c0_8] : memref<1x1296x64xbf16, #tpu.memory_space<vmem>>, vector<1x1296x64xbf16>
    %9 = vector.shape_cast %8 : vector<1x1296x64xbf16> to vector<1296x64xbf16>
    %10 = vector.shape_cast %7 : vector<1296x64xbf16> to vector<1x1296x64xbf16>
    tpu.vector_store %arg5[%c0_6, %c0_7, %c0_8], %10 {strides = array<i32>} : memref<1x1296x64xbf16, #tpu.memory_space<vmem>>, vector<1x1296x64xbf16>,
    return
  }
  func.func @transform_0(%arg0: i32, %arg1: i32) -> (i32, i32, i32) {
    %c0_i32 = arith.constant 0 : i32
    %c0_i32_0 = arith.constant 0 : i32
    return %arg0, %arg1, %c0_i32 : i32, i32, i32
  }
  func.func @transform_1(%arg0: i32, %arg1: i32) -> (i32, i32) {
    %c0_i32 = arith.constant 0 : i32
    %c0_i32_0 = arith.constant 0 : i32
    %c0_i32_1 = arith.constant 0 : i32
    return %c0_i32, %c0_i32_0 : i32, i32
  }
  func.func @transform_2(%arg0: i32, %arg1: i32) -> (i32, i32) {
    %c0_i32 = arith.constant 0 : i32
    %c0_i32_0 = arith.constant 0 : i32
    %c0_i32_1 = arith.constant 0 : i32
    return %c0_i32, %c0_i32_0 : i32, i32
  }
  func.func @transform_3(%arg0: i32, %arg1: i32) -> (i32, i32, i32) {
    %c0_i32 = arith.constant 0 : i32
    %c0_i32_0 = arith.constant 0 : i32
    return %arg0, %arg1, %c0_i32 : i32, i32, i32
  }
}

module attributes {stable_mosaic.version = 11 : i64} {
  func.func @_conv_tap_kernel(%arg0: i32, %arg1: i32, %arg2: memref<1x5784x16xbf16, #tpu.memory_space<vmem>>, %arg3: memref<144x16xbf16, #tpu.memory_space<vmem>>, %arg4: memref<1x16xf32, #tpu.memory_space<vmem>>, %arg5: memref<1x512x16xbf16, #tpu.memory_space<vmem>>) attributes {dimension_semantics = [#tpu.dimension_semantics<parallel>, #tpu.dimension_semantics<parallel>], iteration_bounds = array<i64: 2, 11>, scalar_prefetch = 0 : i64, scratch_operands = 0 : i64, tpu.core_type = #tpu.core_type<tc>, window_params = [{transform_indices = @transform_0, window_bounds = array<i64: 1, 5784, 16>}, {pipeline_mode = #tpu.pipeline_mode<synchronous>, transform_indices = @transform_1, window_bounds = array<i64: 144, 16>}, {pipeline_mode = #tpu.pipeline_mode<synchronous>, transform_indices = @transform_2, window_bounds = array<i64: 1, 16>}, {transform_indices = @transform_3, window_bounds = array<i64: 1, 512, 16>}]} {
    %c512_i32 = arith.constant 512 : i32
    %0 = arith.muli %arg1, %c512_i32 : i32
    %1 = tpu.assume_multiple %0, 8 : i32
    %c0 = arith.constant 0 : index
    %2 = arith.index_cast %1 : i32 to index
    %c0_0 = arith.constant 0 : index
    %3 = vector.load %arg2[%c0, %2, %c0_0] : memref<1x5784x16xbf16, #tpu.memory_space<vmem>>, vector<1x664x16xbf16>
    %4 = vector.shape_cast %3 : vector<1x664x16xbf16> to vector<664x16xbf16>
    %5 = vector.extract_strided_slice %4 {offsets = [0, 0], sizes = [512, 16], strides = [1, 1]} : vector<664x16xbf16> to vector<512x16xbf16>
    %6 = vector.extract_strided_slice %4 {offsets = [1, 0], sizes = [512, 16], strides = [1, 1]} : vector<664x16xbf16> to vector<512x16xbf16>
    %7 = vector.extract_strided_slice %4 {offsets = [2, 0], sizes = [512, 16], strides = [1, 1]} : vector<664x16xbf16> to vector<512x16xbf16>
    %8 = vector.extract_strided_slice %4 {offsets = [74, 0], sizes = [512, 16], strides = [1, 1]} : vector<664x16xbf16> to vector<512x16xbf16>
    %9 = vector.extract_strided_slice %4 {offsets = [75, 0], sizes = [512, 16], strides = [1, 1]} : vector<664x16xbf16> to vector<512x16xbf16>
    %10 = vector.extract_strided_slice %4 {offsets = [76, 0], sizes = [512, 16], strides = [1, 1]} : vector<664x16xbf16> to vector<512x16xbf16>
    %11 = vector.extract_strided_slice %4 {offsets = [148, 0], sizes = [512, 16], strides = [1, 1]} : vector<664x16xbf16> to vector<512x16xbf16>
    %12 = vector.extract_strided_slice %4 {offsets = [149, 0], sizes = [512, 16], strides = [1, 1]} : vector<664x16xbf16> to vector<512x16xbf16>
    %13 = vector.extract_strided_slice %4 {offsets = [150, 0], sizes = [512, 16], strides = [1, 1]} : vector<664x16xbf16> to vector<512x16xbf16>
    %14 = tpu.concatenate %5, %6, %7, %8, %9, %10, %11, %12, %13 in 1 : vector<512x16xbf16>, vector<512x16xbf16>, vector<512x16xbf16>, vector<512x16xbf16>, vector<512x16xbf16>, vector<512x16xbf16>, vector<512x16xbf16>, vector<512x16xbf16>, vector<512x16xbf16> -> vector<512x144xbf16>
    %c0_1 = arith.constant 0 : index
    %c0_2 = arith.constant 0 : index
    %15 = vector.load %arg3[%c0_1, %c0_2] : memref<144x16xbf16, #tpu.memory_space<vmem>>, vector<144x16xbf16>
    %cst = arith.constant dense<0.000000e+00> : vector<512x16xf32>
    %16 = tpu.matmul %14, %15, %cst {dimension_numbers = #tpu.dot_dimension_numbers<[1], [0], [0], [1], [0, 0, 1, 1], [], []>} : vector<512x144xbf16>, vector<144x16xbf16>, vector<512x16xf32> -> vector<512x16xf32>
    %c0_3 = arith.constant 0 : index
    %c0_4 = arith.constant 0 : index
    %17 = vector.load %arg4[%c0_3, %c0_4] : memref<1x16xf32, #tpu.memory_space<vmem>>, vector<1x16xf32>
    %18 = vector.broadcast %17 : vector<1x16xf32> to vector<512x16xf32>
    %19 = arith.addf %16, %18 : vector<512x16xf32>
    %cst_5 = arith.constant 0.000000e+00 : f32
    %20 = vector.broadcast %cst_5 : f32 to vector<512x16xf32>
    %21 = arith.maximumf %19, %20 : vector<512x16xf32>
    %22 = arith.truncf %21 : vector<512x16xf32> to vector<512x16xbf16>
    %c0_6 = arith.constant 0 : index
    %c0_7 = arith.constant 0 : index
    %c0_8 = arith.constant 0 : index
    %23 = vector.load %arg5[%c0_6, %c0_7, %c0_8] : memref<1x512x16xbf16, #tpu.memory_space<vmem>>, vector<1x512x16xbf16>
    %24 = vector.shape_cast %23 : vector<1x512x16xbf16> to vector<512x16xbf16>
    %25 = vector.shape_cast %22 : vector<512x16xbf16> to vector<1x512x16xbf16>
    tpu.vector_store %arg5[%c0_6, %c0_7, %c0_8], %25 {strides = array<i32>} : memref<1x512x16xbf16, #tpu.memory_space<vmem>>, vector<1x512x16xbf16>,
    return
  }
  func.func @transform_0(%arg0: i32, %arg1: i32) -> (i32, i32, i32) {
    %c0_i32 = arith.constant 0 : i32
    %c0_i32_0 = arith.constant 0 : i32
    %c0_i32_1 = arith.constant 0 : i32
    return %arg0, %c0_i32, %c0_i32_0 : i32, i32, i32
  }
  func.func @transform_1(%arg0: i32, %arg1: i32) -> (i32, i32) {
    %c0_i32 = arith.constant 0 : i32
    %c0_i32_0 = arith.constant 0 : i32
    %c0_i32_1 = arith.constant 0 : i32
    return %c0_i32, %c0_i32_0 : i32, i32
  }
  func.func @transform_2(%arg0: i32, %arg1: i32) -> (i32, i32) {
    %c0_i32 = arith.constant 0 : i32
    %c0_i32_0 = arith.constant 0 : i32
    %c0_i32_1 = arith.constant 0 : i32
    return %c0_i32, %c0_i32_0 : i32, i32
  }
  func.func @transform_3(%arg0: i32, %arg1: i32) -> (i32, i32, i32) {
    %c0_i32 = arith.constant 0 : i32
    %c0_i32_0 = arith.constant 0 : i32
    return %arg0, %arg1, %c0_i32 : i32, i32, i32
  }
}

module attributes {stable_mosaic.version = 11 : i64} {
  func.func @_conv1_kernel(%arg0: i32, %arg1: i32, %arg2: memref<1x4096x32xbf16, #tpu.memory_space<vmem>>, %arg3: memref<32x16xbf16, #tpu.memory_space<vmem>>, %arg4: memref<1x16xf32, #tpu.memory_space<vmem>>, %arg5: memref<1x4096x16xbf16, #tpu.memory_space<vmem>>) attributes {dimension_semantics = [#tpu.dimension_semantics<parallel>, #tpu.dimension_semantics<parallel>], iteration_bounds = array<i64: 2, 2>, scalar_prefetch = 0 : i64, scratch_operands = 0 : i64, tpu.core_type = #tpu.core_type<tc>, window_params = [{transform_indices = @transform_0, window_bounds = array<i64: 1, 4096, 32>}, {pipeline_mode = #tpu.pipeline_mode<synchronous>, transform_indices = @transform_1, window_bounds = array<i64: 32, 16>}, {pipeline_mode = #tpu.pipeline_mode<synchronous>, transform_indices = @transform_2, window_bounds = array<i64: 1, 16>}, {transform_indices = @transform_3, window_bounds = array<i64: 1, 4096, 16>}]} {
    %c0 = arith.constant 0 : index
    %c0_0 = arith.constant 0 : index
    %c0_1 = arith.constant 0 : index
    %0 = vector.load %arg2[%c0, %c0_0, %c0_1] : memref<1x4096x32xbf16, #tpu.memory_space<vmem>>, vector<1x4096x32xbf16>
    %1 = vector.shape_cast %0 : vector<1x4096x32xbf16> to vector<4096x32xbf16>
    %c0_2 = arith.constant 0 : index
    %c0_3 = arith.constant 0 : index
    %2 = vector.load %arg3[%c0_2, %c0_3] : memref<32x16xbf16, #tpu.memory_space<vmem>>, vector<32x16xbf16>
    %cst = arith.constant dense<0.000000e+00> : vector<4096x16xf32>
    %3 = tpu.matmul %1, %2, %cst {dimension_numbers = #tpu.dot_dimension_numbers<[1], [0], [0], [1], [0, 0, 1, 1], [], []>} : vector<4096x32xbf16>, vector<32x16xbf16>, vector<4096x16xf32> -> vector<4096x16xf32>
    %c0_4 = arith.constant 0 : index
    %c0_5 = arith.constant 0 : index
    %4 = vector.load %arg4[%c0_4, %c0_5] : memref<1x16xf32, #tpu.memory_space<vmem>>, vector<1x16xf32>
    %5 = vector.broadcast %4 : vector<1x16xf32> to vector<4096x16xf32>
    %6 = arith.addf %3, %5 : vector<4096x16xf32>
    %7 = arith.truncf %6 : vector<4096x16xf32> to vector<4096x16xbf16>
    %c0_6 = arith.constant 0 : index
    %c0_7 = arith.constant 0 : index
    %c0_8 = arith.constant 0 : index
    %8 = vector.load %arg5[%c0_6, %c0_7, %c0_8] : memref<1x4096x16xbf16, #tpu.memory_space<vmem>>, vector<1x4096x16xbf16>
    %9 = vector.shape_cast %8 : vector<1x4096x16xbf16> to vector<4096x16xbf16>
    %10 = vector.shape_cast %7 : vector<4096x16xbf16> to vector<1x4096x16xbf16>
    tpu.vector_store %arg5[%c0_6, %c0_7, %c0_8], %10 {strides = array<i32>} : memref<1x4096x16xbf16, #tpu.memory_space<vmem>>, vector<1x4096x16xbf16>,
    return
  }
  func.func @transform_0(%arg0: i32, %arg1: i32) -> (i32, i32, i32) {
    %c0_i32 = arith.constant 0 : i32
    %c0_i32_0 = arith.constant 0 : i32
    return %arg0, %arg1, %c0_i32 : i32, i32, i32
  }
  func.func @transform_1(%arg0: i32, %arg1: i32) -> (i32, i32) {
    %c0_i32 = arith.constant 0 : i32
    %c0_i32_0 = arith.constant 0 : i32
    %c0_i32_1 = arith.constant 0 : i32
    return %c0_i32, %c0_i32_0 : i32, i32
  }
  func.func @transform_2(%arg0: i32, %arg1: i32) -> (i32, i32) {
    %c0_i32 = arith.constant 0 : i32
    %c0_i32_0 = arith.constant 0 : i32
    %c0_i32_1 = arith.constant 0 : i32
    return %c0_i32, %c0_i32_0 : i32, i32
  }
  func.func @transform_3(%arg0: i32, %arg1: i32) -> (i32, i32, i32) {
    %c0_i32 = arith.constant 0 : i32
    %c0_i32_0 = arith.constant 0 : i32
    return %arg0, %arg1, %c0_i32 : i32, i32, i32
  }
}

module attributes {stable_mosaic.version = 11 : i64} {
  func.func @_conv_tap_kernel(%arg0: i32, %arg1: i32, %arg2: memref<1x5784x16xbf16, #tpu.memory_space<vmem>>, %arg3: memref<144x340xbf16, #tpu.memory_space<vmem>>, %arg4: memref<1x340xf32, #tpu.memory_space<vmem>>, %arg5: memref<1x512x340xf32, #tpu.memory_space<vmem>>) attributes {dimension_semantics = [#tpu.dimension_semantics<parallel>, #tpu.dimension_semantics<parallel>], iteration_bounds = array<i64: 2, 11>, scalar_prefetch = 0 : i64, scratch_operands = 0 : i64, tpu.core_type = #tpu.core_type<tc>, window_params = [{transform_indices = @transform_0, window_bounds = array<i64: 1, 5784, 16>}, {pipeline_mode = #tpu.pipeline_mode<synchronous>, transform_indices = @transform_1, window_bounds = array<i64: 144, 340>}, {pipeline_mode = #tpu.pipeline_mode<synchronous>, transform_indices = @transform_2, window_bounds = array<i64: 1, 340>}, {transform_indices = @transform_3, window_bounds = array<i64: 1, 512, 340>}]} {
    %c512_i32 = arith.constant 512 : i32
    %0 = arith.muli %arg1, %c512_i32 : i32
    %1 = tpu.assume_multiple %0, 8 : i32
    %c0 = arith.constant 0 : index
    %2 = arith.index_cast %1 : i32 to index
    %c0_0 = arith.constant 0 : index
    %3 = vector.load %arg2[%c0, %2, %c0_0] : memref<1x5784x16xbf16, #tpu.memory_space<vmem>>, vector<1x664x16xbf16>
    %4 = vector.shape_cast %3 : vector<1x664x16xbf16> to vector<664x16xbf16>
    %5 = vector.extract_strided_slice %4 {offsets = [0, 0], sizes = [512, 16], strides = [1, 1]} : vector<664x16xbf16> to vector<512x16xbf16>
    %6 = vector.extract_strided_slice %4 {offsets = [1, 0], sizes = [512, 16], strides = [1, 1]} : vector<664x16xbf16> to vector<512x16xbf16>
    %7 = vector.extract_strided_slice %4 {offsets = [2, 0], sizes = [512, 16], strides = [1, 1]} : vector<664x16xbf16> to vector<512x16xbf16>
    %8 = vector.extract_strided_slice %4 {offsets = [74, 0], sizes = [512, 16], strides = [1, 1]} : vector<664x16xbf16> to vector<512x16xbf16>
    %9 = vector.extract_strided_slice %4 {offsets = [75, 0], sizes = [512, 16], strides = [1, 1]} : vector<664x16xbf16> to vector<512x16xbf16>
    %10 = vector.extract_strided_slice %4 {offsets = [76, 0], sizes = [512, 16], strides = [1, 1]} : vector<664x16xbf16> to vector<512x16xbf16>
    %11 = vector.extract_strided_slice %4 {offsets = [148, 0], sizes = [512, 16], strides = [1, 1]} : vector<664x16xbf16> to vector<512x16xbf16>
    %12 = vector.extract_strided_slice %4 {offsets = [149, 0], sizes = [512, 16], strides = [1, 1]} : vector<664x16xbf16> to vector<512x16xbf16>
    %13 = vector.extract_strided_slice %4 {offsets = [150, 0], sizes = [512, 16], strides = [1, 1]} : vector<664x16xbf16> to vector<512x16xbf16>
    %14 = tpu.concatenate %5, %6, %7, %8, %9, %10, %11, %12, %13 in 1 : vector<512x16xbf16>, vector<512x16xbf16>, vector<512x16xbf16>, vector<512x16xbf16>, vector<512x16xbf16>, vector<512x16xbf16>, vector<512x16xbf16>, vector<512x16xbf16>, vector<512x16xbf16> -> vector<512x144xbf16>
    %c0_1 = arith.constant 0 : index
    %c0_2 = arith.constant 0 : index
    %15 = vector.load %arg3[%c0_1, %c0_2] : memref<144x340xbf16, #tpu.memory_space<vmem>>, vector<144x340xbf16>
    %cst = arith.constant dense<0.000000e+00> : vector<512x340xf32>
    %16 = tpu.matmul %14, %15, %cst {dimension_numbers = #tpu.dot_dimension_numbers<[1], [0], [0], [1], [0, 0, 1, 1], [], []>} : vector<512x144xbf16>, vector<144x340xbf16>, vector<512x340xf32> -> vector<512x340xf32>
    %c0_3 = arith.constant 0 : index
    %c0_4 = arith.constant 0 : index
    %17 = vector.load %arg4[%c0_3, %c0_4] : memref<1x340xf32, #tpu.memory_space<vmem>>, vector<1x340xf32>
    %18 = vector.broadcast %17 : vector<1x340xf32> to vector<512x340xf32>
    %19 = arith.addf %16, %18 : vector<512x340xf32>
    %c0_5 = arith.constant 0 : index
    %c0_6 = arith.constant 0 : index
    %c0_7 = arith.constant 0 : index
    %20 = vector.load %arg5[%c0_5, %c0_6, %c0_7] : memref<1x512x340xf32, #tpu.memory_space<vmem>>, vector<1x512x340xf32>
    %21 = vector.shape_cast %20 : vector<1x512x340xf32> to vector<512x340xf32>
    %22 = vector.shape_cast %19 : vector<512x340xf32> to vector<1x512x340xf32>
    tpu.vector_store %arg5[%c0_5, %c0_6, %c0_7], %22 {strides = array<i32>} : memref<1x512x340xf32, #tpu.memory_space<vmem>>, vector<1x512x340xf32>,
    return
  }
  func.func @transform_0(%arg0: i32, %arg1: i32) -> (i32, i32, i32) {
    %c0_i32 = arith.constant 0 : i32
    %c0_i32_0 = arith.constant 0 : i32
    %c0_i32_1 = arith.constant 0 : i32
    return %arg0, %c0_i32, %c0_i32_0 : i32, i32, i32
  }
  func.func @transform_1(%arg0: i32, %arg1: i32) -> (i32, i32) {
    %c0_i32 = arith.constant 0 : i32
    %c0_i32_0 = arith.constant 0 : i32
    %c0_i32_1 = arith.constant 0 : i32
    return %c0_i32, %c0_i32_0 : i32, i32
  }
  func.func @transform_2(%arg0: i32, %arg1: i32) -> (i32, i32) {
    %c0_i32 = arith.constant 0 : i32
    %c0_i32_0 = arith.constant 0 : i32
    %c0_i32_1 = arith.constant 0 : i32
    return %c0_i32, %c0_i32_0 : i32, i32
  }
  func.func @transform_3(%arg0: i32, %arg1: i32) -> (i32, i32, i32) {
    %c0_i32 = arith.constant 0 : i32
    %c0_i32_0 = arith.constant 0 : i32
    return %arg0, %arg1, %c0_i32 : i32, i32, i32
  }
}

module attributes {stable_mosaic.version = 11 : i64} {
  func.func @_bottleneck_kernel(%arg0: i32, %arg1: memref<1x1448x32xbf16, #tpu.memory_space<vmem>>, %arg2: memref<1448x1xf32, #tpu.memory_space<vmem>>, %arg3: memref<32x80xbf16, #tpu.memory_space<vmem>>, %arg4: memref<1x80xf32, #tpu.memory_space<vmem>>, %arg5: memref<144x16xbf16, #tpu.memory_space<vmem>>, %arg6: memref<1x16xf32, #tpu.memory_space<vmem>>, %arg7: memref<16x64xbf16, #tpu.memory_space<vmem>>, %arg8: memref<1x64xf32, #tpu.memory_space<vmem>>, %arg9: memref<1x1368x64xbf16, #tpu.memory_space<vmem>>) attributes {dimension_semantics = [#tpu.dimension_semantics<parallel>], iteration_bounds = array<i64: 2>, scalar_prefetch = 0 : i64, scratch_operands = 0 : i64, tpu.core_type = #tpu.core_type<tc>, window_params = [{transform_indices = @transform_0, window_bounds = array<i64: 1, 1448, 32>}, {pipeline_mode = #tpu.pipeline_mode<synchronous>, transform_indices = @transform_1, window_bounds = array<i64: 1448, 1>}, {pipeline_mode = #tpu.pipeline_mode<synchronous>, transform_indices = @transform_2, window_bounds = array<i64: 32, 80>}, {pipeline_mode = #tpu.pipeline_mode<synchronous>, transform_indices = @transform_3, window_bounds = array<i64: 1, 80>}, {pipeline_mode = #tpu.pipeline_mode<synchronous>, transform_indices = @transform_4, window_bounds = array<i64: 144, 16>}, {pipeline_mode = #tpu.pipeline_mode<synchronous>, transform_indices = @transform_5, window_bounds = array<i64: 1, 16>}, {pipeline_mode = #tpu.pipeline_mode<synchronous>, transform_indices = @transform_6, window_bounds = array<i64: 16, 64>}, {pipeline_mode = #tpu.pipeline_mode<synchronous>, transform_indices = @transform_7, window_bounds = array<i64: 1, 64>}, {transform_indices = @transform_8, window_bounds = array<i64: 1, 1368, 64>}]} {
    %c0 = arith.constant 0 : index
    %c0_0 = arith.constant 0 : index
    %c0_1 = arith.constant 0 : index
    %0 = vector.load %arg1[%c0, %c0_0, %c0_1] : memref<1x1448x32xbf16, #tpu.memory_space<vmem>>, vector<1x1448x32xbf16>
    %1 = vector.shape_cast %0 : vector<1x1448x32xbf16> to vector<1448x32xbf16>
    %c0_2 = arith.constant 0 : index
    %c0_3 = arith.constant 0 : index
    %2 = vector.load %arg3[%c0_2, %c0_3] : memref<32x80xbf16, #tpu.memory_space<vmem>>, vector<32x80xbf16>
    %cst = arith.constant dense<0.000000e+00> : vector<1448x80xf32>
    %3 = tpu.matmul %1, %2, %cst {dimension_numbers = #tpu.dot_dimension_numbers<[1], [0], [0], [1], [0, 0, 1, 1], [], []>} : vector<1448x32xbf16>, vector<32x80xbf16>, vector<1448x80xf32> -> vector<1448x80xf32>
    %c0_4 = arith.constant 0 : index
    %c0_5 = arith.constant 0 : index
    %4 = vector.load %arg4[%c0_4, %c0_5] : memref<1x80xf32, #tpu.memory_space<vmem>>, vector<1x80xf32>
    %5 = vector.broadcast %4 : vector<1x80xf32> to vector<1448x80xf32>
    %6 = arith.addf %3, %5 : vector<1448x80xf32>
    %7 = vector.extract_strided_slice %6 {offsets = [0, 0], sizes = [1448, 16], strides = [1, 1]} : vector<1448x80xf32> to vector<1448x16xf32>
    %cst_6 = arith.constant 0.000000e+00 : f32
    %8 = vector.broadcast %cst_6 : f32 to vector<1448x16xf32>
    %9 = arith.maximumf %7, %8 : vector<1448x16xf32>
    %c0_7 = arith.constant 0 : index
    %c0_8 = arith.constant 0 : index
    %10 = vector.load %arg2[%c0_7, %c0_8] : memref<1448x1xf32, #tpu.memory_space<vmem>>, vector<1448x1xf32>
    %11 = vector.broadcast %10 : vector<1448x1xf32> to vector<1448x16xf32>
    %12 = arith.mulf %9, %11 : vector<1448x16xf32>
    %13 = arith.truncf %12 : vector<1448x16xf32> to vector<1448x16xbf16>
    %14 = vector.extract_strided_slice %13 {offsets = [0, 0], sizes = [1368, 16], strides = [1, 1]} : vector<1448x16xbf16> to vector<1368x16xbf16>
    %15 = vector.extract_strided_slice %13 {offsets = [1, 0], sizes = [1368, 16], strides = [1, 1]} : vector<1448x16xbf16> to vector<1368x16xbf16>
    %16 = vector.extract_strided_slice %13 {offsets = [2, 0], sizes = [1368, 16], strides = [1, 1]} : vector<1448x16xbf16> to vector<1368x16xbf16>
    %17 = vector.extract_strided_slice %13 {offsets = [38, 0], sizes = [1368, 16], strides = [1, 1]} : vector<1448x16xbf16> to vector<1368x16xbf16>
    %18 = vector.extract_strided_slice %13 {offsets = [39, 0], sizes = [1368, 16], strides = [1, 1]} : vector<1448x16xbf16> to vector<1368x16xbf16>
    %19 = vector.extract_strided_slice %13 {offsets = [40, 0], sizes = [1368, 16], strides = [1, 1]} : vector<1448x16xbf16> to vector<1368x16xbf16>
    %20 = vector.extract_strided_slice %13 {offsets = [76, 0], sizes = [1368, 16], strides = [1, 1]} : vector<1448x16xbf16> to vector<1368x16xbf16>
    %21 = vector.extract_strided_slice %13 {offsets = [77, 0], sizes = [1368, 16], strides = [1, 1]} : vector<1448x16xbf16> to vector<1368x16xbf16>
    %22 = vector.extract_strided_slice %13 {offsets = [78, 0], sizes = [1368, 16], strides = [1, 1]} : vector<1448x16xbf16> to vector<1368x16xbf16>
    %23 = tpu.concatenate %14, %15, %16, %17, %18, %19, %20, %21, %22 in 1 : vector<1368x16xbf16>, vector<1368x16xbf16>, vector<1368x16xbf16>, vector<1368x16xbf16>, vector<1368x16xbf16>, vector<1368x16xbf16>, vector<1368x16xbf16>, vector<1368x16xbf16>, vector<1368x16xbf16> -> vector<1368x144xbf16>
    %c0_9 = arith.constant 0 : index
    %c0_10 = arith.constant 0 : index
    %24 = vector.load %arg5[%c0_9, %c0_10] : memref<144x16xbf16, #tpu.memory_space<vmem>>, vector<144x16xbf16>
    %cst_11 = arith.constant dense<0.000000e+00> : vector<1368x16xf32>
    %25 = tpu.matmul %23, %24, %cst_11 {dimension_numbers = #tpu.dot_dimension_numbers<[1], [0], [0], [1], [0, 0, 1, 1], [], []>} : vector<1368x144xbf16>, vector<144x16xbf16>, vector<1368x16xf32> -> vector<1368x16xf32>
    %c0_12 = arith.constant 0 : index
    %c0_13 = arith.constant 0 : index
    %26 = vector.load %arg6[%c0_12, %c0_13] : memref<1x16xf32, #tpu.memory_space<vmem>>, vector<1x16xf32>
    %27 = vector.broadcast %26 : vector<1x16xf32> to vector<1368x16xf32>
    %28 = arith.addf %25, %27 : vector<1368x16xf32>
    %cst_14 = arith.constant 0.000000e+00 : f32
    %29 = vector.broadcast %cst_14 : f32 to vector<1368x16xf32>
    %30 = arith.maximumf %28, %29 : vector<1368x16xf32>
    %31 = arith.truncf %30 : vector<1368x16xf32> to vector<1368x16xbf16>
    %c0_15 = arith.constant 0 : index
    %c0_16 = arith.constant 0 : index
    %32 = vector.load %arg7[%c0_15, %c0_16] : memref<16x64xbf16, #tpu.memory_space<vmem>>, vector<16x64xbf16>
    %cst_17 = arith.constant dense<0.000000e+00> : vector<1368x64xf32>
    %33 = tpu.matmul %31, %32, %cst_17 {dimension_numbers = #tpu.dot_dimension_numbers<[1], [0], [0], [1], [0, 0, 1, 1], [], []>} : vector<1368x16xbf16>, vector<16x64xbf16>, vector<1368x64xf32> -> vector<1368x64xf32>
    %c0_18 = arith.constant 0 : index
    %c0_19 = arith.constant 0 : index
    %34 = vector.load %arg8[%c0_18, %c0_19] : memref<1x64xf32, #tpu.memory_space<vmem>>, vector<1x64xf32>
    %35 = vector.broadcast %34 : vector<1x64xf32> to vector<1368x64xf32>
    %36 = arith.addf %33, %35 : vector<1368x64xf32>
    %37 = vector.extract_strided_slice %6 {offsets = [0, 16], sizes = [1448, 64], strides = [1, 1]} : vector<1448x80xf32> to vector<1448x64xf32>
    %38 = vector.extract_strided_slice %37 {offsets = [39, 0], sizes = [1368, 64], strides = [1, 1]} : vector<1448x64xf32> to vector<1368x64xf32>
    %39 = arith.addf %36, %38 : vector<1368x64xf32>
    %cst_20 = arith.constant 0.000000e+00 : f32
    %40 = vector.broadcast %cst_20 : f32 to vector<1368x64xf32>
    %41 = arith.maximumf %39, %40 : vector<1368x64xf32>
    %42 = arith.truncf %41 : vector<1368x64xf32> to vector<1368x64xbf16>
    %c0_21 = arith.constant 0 : index
    %c0_22 = arith.constant 0 : index
    %c0_23 = arith.constant 0 : index
    %43 = vector.load %arg9[%c0_21, %c0_22, %c0_23] : memref<1x1368x64xbf16, #tpu.memory_space<vmem>>, vector<1x1368x64xbf16>
    %44 = vector.shape_cast %43 : vector<1x1368x64xbf16> to vector<1368x64xbf16>
    %45 = vector.shape_cast %42 : vector<1368x64xbf16> to vector<1x1368x64xbf16>
    tpu.vector_store %arg9[%c0_21, %c0_22, %c0_23], %45 {strides = array<i32>} : memref<1x1368x64xbf16, #tpu.memory_space<vmem>>, vector<1x1368x64xbf16>,
    return
  }
  func.func @transform_0(%arg0: i32) -> (i32, i32, i32) {
    %c0_i32 = arith.constant 0 : i32
    %c0_i32_0 = arith.constant 0 : i32
    %c0_i32_1 = arith.constant 0 : i32
    return %arg0, %c0_i32, %c0_i32_0 : i32, i32, i32
  }
  func.func @transform_1(%arg0: i32) -> (i32, i32) {
    %c0_i32 = arith.constant 0 : i32
    %c0_i32_0 = arith.constant 0 : i32
    %c0_i32_1 = arith.constant 0 : i32
    return %c0_i32, %c0_i32_0 : i32, i32
  }
  func.func @transform_2(%arg0: i32) -> (i32, i32) {
    %c0_i32 = arith.constant 0 : i32
    %c0_i32_0 = arith.constant 0 : i32
    %c0_i32_1 = arith.constant 0 : i32
    return %c0_i32, %c0_i32_0 : i32, i32
  }
  func.func @transform_3(%arg0: i32) -> (i32, i32) {
    %c0_i32 = arith.constant 0 : i32
    %c0_i32_0 = arith.constant 0 : i32
    %c0_i32_1 = arith.constant 0 : i32
    return %c0_i32, %c0_i32_0 : i32, i32
  }
  func.func @transform_4(%arg0: i32) -> (i32, i32) {
    %c0_i32 = arith.constant 0 : i32
    %c0_i32_0 = arith.constant 0 : i32
    %c0_i32_1 = arith.constant 0 : i32
    return %c0_i32, %c0_i32_0 : i32, i32
  }
  func.func @transform_5(%arg0: i32) -> (i32, i32) {
    %c0_i32 = arith.constant 0 : i32
    %c0_i32_0 = arith.constant 0 : i32
    %c0_i32_1 = arith.constant 0 : i32
    return %c0_i32, %c0_i32_0 : i32, i32
  }
  func.func @transform_6(%arg0: i32) -> (i32, i32) {
    %c0_i32 = arith.constant 0 : i32
    %c0_i32_0 = arith.constant 0 : i32
    %c0_i32_1 = arith.constant 0 : i32
    return %c0_i32, %c0_i32_0 : i32, i32
  }
  func.func @transform_7(%arg0: i32) -> (i32, i32) {
    %c0_i32 = arith.constant 0 : i32
    %c0_i32_0 = arith.constant 0 : i32
    %c0_i32_1 = arith.constant 0 : i32
    return %c0_i32, %c0_i32_0 : i32, i32
  }
  func.func @transform_8(%arg0: i32) -> (i32, i32, i32) {
    %c0_i32 = arith.constant 0 : i32
    %c0_i32_0 = arith.constant 0 : i32
    %c0_i32_1 = arith.constant 0 : i32
    return %arg0, %c0_i32, %c0_i32_0 : i32, i32, i32
  }
}

module attributes {stable_mosaic.version = 11 : i64} {
  func.func @_bottleneck_kernel(%arg0: i32, %arg1: memref<1x1448x64xbf16, #tpu.memory_space<vmem>>, %arg2: memref<1448x1xf32, #tpu.memory_space<vmem>>, %arg3: memref<64x16xbf16, #tpu.memory_space<vmem>>, %arg4: memref<1x16xf32, #tpu.memory_space<vmem>>, %arg5: memref<144x16xbf16, #tpu.memory_space<vmem>>, %arg6: memref<1x16xf32, #tpu.memory_space<vmem>>, %arg7: memref<16x64xbf16, #tpu.memory_space<vmem>>, %arg8: memref<1x64xf32, #tpu.memory_space<vmem>>, %arg9: memref<1x1368x64xbf16, #tpu.memory_space<vmem>>) attributes {dimension_semantics = [#tpu.dimension_semantics<parallel>], iteration_bounds = array<i64: 2>, scalar_prefetch = 0 : i64, scratch_operands = 0 : i64, tpu.core_type = #tpu.core_type<tc>, window_params = [{transform_indices = @transform_0, window_bounds = array<i64: 1, 1448, 64>}, {pipeline_mode = #tpu.pipeline_mode<synchronous>, transform_indices = @transform_1, window_bounds = array<i64: 1448, 1>}, {pipeline_mode = #tpu.pipeline_mode<synchronous>, transform_indices = @transform_2, window_bounds = array<i64: 64, 16>}, {pipeline_mode = #tpu.pipeline_mode<synchronous>, transform_indices = @transform_3, window_bounds = array<i64: 1, 16>}, {pipeline_mode = #tpu.pipeline_mode<synchronous>, transform_indices = @transform_4, window_bounds = array<i64: 144, 16>}, {pipeline_mode = #tpu.pipeline_mode<synchronous>, transform_indices = @transform_5, window_bounds = array<i64: 1, 16>}, {pipeline_mode = #tpu.pipeline_mode<synchronous>, transform_indices = @transform_6, window_bounds = array<i64: 16, 64>}, {pipeline_mode = #tpu.pipeline_mode<synchronous>, transform_indices = @transform_7, window_bounds = array<i64: 1, 64>}, {transform_indices = @transform_8, window_bounds = array<i64: 1, 1368, 64>}]} {
    %c0 = arith.constant 0 : index
    %c0_0 = arith.constant 0 : index
    %c0_1 = arith.constant 0 : index
    %0 = vector.load %arg1[%c0, %c0_0, %c0_1] : memref<1x1448x64xbf16, #tpu.memory_space<vmem>>, vector<1x1448x64xbf16>
    %1 = vector.shape_cast %0 : vector<1x1448x64xbf16> to vector<1448x64xbf16>
    %c0_2 = arith.constant 0 : index
    %c0_3 = arith.constant 0 : index
    %2 = vector.load %arg3[%c0_2, %c0_3] : memref<64x16xbf16, #tpu.memory_space<vmem>>, vector<64x16xbf16>
    %cst = arith.constant dense<0.000000e+00> : vector<1448x16xf32>
    %3 = tpu.matmul %1, %2, %cst {dimension_numbers = #tpu.dot_dimension_numbers<[1], [0], [0], [1], [0, 0, 1, 1], [], []>} : vector<1448x64xbf16>, vector<64x16xbf16>, vector<1448x16xf32> -> vector<1448x16xf32>
    %c0_4 = arith.constant 0 : index
    %c0_5 = arith.constant 0 : index
    %4 = vector.load %arg4[%c0_4, %c0_5] : memref<1x16xf32, #tpu.memory_space<vmem>>, vector<1x16xf32>
    %5 = vector.broadcast %4 : vector<1x16xf32> to vector<1448x16xf32>
    %6 = arith.addf %3, %5 : vector<1448x16xf32>
    %cst_6 = arith.constant 0.000000e+00 : f32
    %7 = vector.broadcast %cst_6 : f32 to vector<1448x16xf32>
    %8 = arith.maximumf %6, %7 : vector<1448x16xf32>
    %c0_7 = arith.constant 0 : index
    %c0_8 = arith.constant 0 : index
    %9 = vector.load %arg2[%c0_7, %c0_8] : memref<1448x1xf32, #tpu.memory_space<vmem>>, vector<1448x1xf32>
    %10 = vector.broadcast %9 : vector<1448x1xf32> to vector<1448x16xf32>
    %11 = arith.mulf %8, %10 : vector<1448x16xf32>
    %12 = arith.truncf %11 : vector<1448x16xf32> to vector<1448x16xbf16>
    %13 = vector.extract_strided_slice %12 {offsets = [0, 0], sizes = [1368, 16], strides = [1, 1]} : vector<1448x16xbf16> to vector<1368x16xbf16>
    %14 = vector.extract_strided_slice %12 {offsets = [1, 0], sizes = [1368, 16], strides = [1, 1]} : vector<1448x16xbf16> to vector<1368x16xbf16>
    %15 = vector.extract_strided_slice %12 {offsets = [2, 0], sizes = [1368, 16], strides = [1, 1]} : vector<1448x16xbf16> to vector<1368x16xbf16>
    %16 = vector.extract_strided_slice %12 {offsets = [38, 0], sizes = [1368, 16], strides = [1, 1]} : vector<1448x16xbf16> to vector<1368x16xbf16>
    %17 = vector.extract_strided_slice %12 {offsets = [39, 0], sizes = [1368, 16], strides = [1, 1]} : vector<1448x16xbf16> to vector<1368x16xbf16>
    %18 = vector.extract_strided_slice %12 {offsets = [40, 0], sizes = [1368, 16], strides = [1, 1]} : vector<1448x16xbf16> to vector<1368x16xbf16>
    %19 = vector.extract_strided_slice %12 {offsets = [76, 0], sizes = [1368, 16], strides = [1, 1]} : vector<1448x16xbf16> to vector<1368x16xbf16>
    %20 = vector.extract_strided_slice %12 {offsets = [77, 0], sizes = [1368, 16], strides = [1, 1]} : vector<1448x16xbf16> to vector<1368x16xbf16>
    %21 = vector.extract_strided_slice %12 {offsets = [78, 0], sizes = [1368, 16], strides = [1, 1]} : vector<1448x16xbf16> to vector<1368x16xbf16>
    %22 = tpu.concatenate %13, %14, %15, %16, %17, %18, %19, %20, %21 in 1 : vector<1368x16xbf16>, vector<1368x16xbf16>, vector<1368x16xbf16>, vector<1368x16xbf16>, vector<1368x16xbf16>, vector<1368x16xbf16>, vector<1368x16xbf16>, vector<1368x16xbf16>, vector<1368x16xbf16> -> vector<1368x144xbf16>
    %c0_9 = arith.constant 0 : index
    %c0_10 = arith.constant 0 : index
    %23 = vector.load %arg5[%c0_9, %c0_10] : memref<144x16xbf16, #tpu.memory_space<vmem>>, vector<144x16xbf16>
    %cst_11 = arith.constant dense<0.000000e+00> : vector<1368x16xf32>
    %24 = tpu.matmul %22, %23, %cst_11 {dimension_numbers = #tpu.dot_dimension_numbers<[1], [0], [0], [1], [0, 0, 1, 1], [], []>} : vector<1368x144xbf16>, vector<144x16xbf16>, vector<1368x16xf32> -> vector<1368x16xf32>
    %c0_12 = arith.constant 0 : index
    %c0_13 = arith.constant 0 : index
    %25 = vector.load %arg6[%c0_12, %c0_13] : memref<1x16xf32, #tpu.memory_space<vmem>>, vector<1x16xf32>
    %26 = vector.broadcast %25 : vector<1x16xf32> to vector<1368x16xf32>
    %27 = arith.addf %24, %26 : vector<1368x16xf32>
    %cst_14 = arith.constant 0.000000e+00 : f32
    %28 = vector.broadcast %cst_14 : f32 to vector<1368x16xf32>
    %29 = arith.maximumf %27, %28 : vector<1368x16xf32>
    %30 = arith.truncf %29 : vector<1368x16xf32> to vector<1368x16xbf16>
    %c0_15 = arith.constant 0 : index
    %c0_16 = arith.constant 0 : index
    %31 = vector.load %arg7[%c0_15, %c0_16] : memref<16x64xbf16, #tpu.memory_space<vmem>>, vector<16x64xbf16>
    %cst_17 = arith.constant dense<0.000000e+00> : vector<1368x64xf32>
    %32 = tpu.matmul %30, %31, %cst_17 {dimension_numbers = #tpu.dot_dimension_numbers<[1], [0], [0], [1], [0, 0, 1, 1], [], []>} : vector<1368x16xbf16>, vector<16x64xbf16>, vector<1368x64xf32> -> vector<1368x64xf32>
    %c0_18 = arith.constant 0 : index
    %c0_19 = arith.constant 0 : index
    %33 = vector.load %arg8[%c0_18, %c0_19] : memref<1x64xf32, #tpu.memory_space<vmem>>, vector<1x64xf32>
    %34 = vector.broadcast %33 : vector<1x64xf32> to vector<1368x64xf32>
    %35 = arith.addf %32, %34 : vector<1368x64xf32>
    %36 = vector.extract_strided_slice %1 {offsets = [39, 0], sizes = [1368, 64], strides = [1, 1]} : vector<1448x64xbf16> to vector<1368x64xbf16>
    %37 = arith.extf %36 : vector<1368x64xbf16> to vector<1368x64xf32>
    %38 = arith.addf %35, %37 : vector<1368x64xf32>
    %cst_20 = arith.constant 0.000000e+00 : f32
    %39 = vector.broadcast %cst_20 : f32 to vector<1368x64xf32>
    %40 = arith.maximumf %38, %39 : vector<1368x64xf32>
    %41 = arith.truncf %40 : vector<1368x64xf32> to vector<1368x64xbf16>
    %c0_21 = arith.constant 0 : index
    %c0_22 = arith.constant 0 : index
    %c0_23 = arith.constant 0 : index
    %42 = vector.load %arg9[%c0_21, %c0_22, %c0_23] : memref<1x1368x64xbf16, #tpu.memory_space<vmem>>, vector<1x1368x64xbf16>
    %43 = vector.shape_cast %42 : vector<1x1368x64xbf16> to vector<1368x64xbf16>
    %44 = vector.shape_cast %41 : vector<1368x64xbf16> to vector<1x1368x64xbf16>
    tpu.vector_store %arg9[%c0_21, %c0_22, %c0_23], %44 {strides = array<i32>} : memref<1x1368x64xbf16, #tpu.memory_space<vmem>>, vector<1x1368x64xbf16>,
    return
  }
  func.func @transform_0(%arg0: i32) -> (i32, i32, i32) {
    %c0_i32 = arith.constant 0 : i32
    %c0_i32_0 = arith.constant 0 : i32
    %c0_i32_1 = arith.constant 0 : i32
    return %arg0, %c0_i32, %c0_i32_0 : i32, i32, i32
  }
  func.func @transform_1(%arg0: i32) -> (i32, i32) {
    %c0_i32 = arith.constant 0 : i32
    %c0_i32_0 = arith.constant 0 : i32
    %c0_i32_1 = arith.constant 0 : i32
    return %c0_i32, %c0_i32_0 : i32, i32
  }
  func.func @transform_2(%arg0: i32) -> (i32, i32) {
    %c0_i32 = arith.constant 0 : i32
    %c0_i32_0 = arith.constant 0 : i32
    %c0_i32_1 = arith.constant 0 : i32
    return %c0_i32, %c0_i32_0 : i32, i32
  }
  func.func @transform_3(%arg0: i32) -> (i32, i32) {
    %c0_i32 = arith.constant 0 : i32
    %c0_i32_0 = arith.constant 0 : i32
    %c0_i32_1 = arith.constant 0 : i32
    return %c0_i32, %c0_i32_0 : i32, i32
  }
  func.func @transform_4(%arg0: i32) -> (i32, i32) {
    %c0_i32 = arith.constant 0 : i32
    %c0_i32_0 = arith.constant 0 : i32
    %c0_i32_1 = arith.constant 0 : i32
    return %c0_i32, %c0_i32_0 : i32, i32
  }
  func.func @transform_5(%arg0: i32) -> (i32, i32) {
    %c0_i32 = arith.constant 0 : i32
    %c0_i32_0 = arith.constant 0 : i32
    %c0_i32_1 = arith.constant 0 : i32
    return %c0_i32, %c0_i32_0 : i32, i32
  }
  func.func @transform_6(%arg0: i32) -> (i32, i32) {
    %c0_i32 = arith.constant 0 : i32
    %c0_i32_0 = arith.constant 0 : i32
    %c0_i32_1 = arith.constant 0 : i32
    return %c0_i32, %c0_i32_0 : i32, i32
  }
  func.func @transform_7(%arg0: i32) -> (i32, i32) {
    %c0_i32 = arith.constant 0 : i32
    %c0_i32_0 = arith.constant 0 : i32
    %c0_i32_1 = arith.constant 0 : i32
    return %c0_i32, %c0_i32_0 : i32, i32
  }
  func.func @transform_8(%arg0: i32) -> (i32, i32, i32) {
    %c0_i32 = arith.constant 0 : i32
    %c0_i32_0 = arith.constant 0 : i32
    %c0_i32_1 = arith.constant 0 : i32
    return %arg0, %c0_i32, %c0_i32_0 : i32, i32, i32
  }
}

module attributes {stable_mosaic.version = 11 : i64} {
  func.func @_conv_tap_kernel(%arg0: i32, %arg1: i32, %arg2: memref<1x1616x64xbf16, #tpu.memory_space<vmem>>, %arg3: memref<576x510xbf16, #tpu.memory_space<vmem>>, %arg4: memref<1x510xf32, #tpu.memory_space<vmem>>, %arg5: memref<1x512x510xf32, #tpu.memory_space<vmem>>) attributes {dimension_semantics = [#tpu.dimension_semantics<parallel>, #tpu.dimension_semantics<parallel>], iteration_bounds = array<i64: 2, 3>, scalar_prefetch = 0 : i64, scratch_operands = 0 : i64, tpu.core_type = #tpu.core_type<tc>, window_params = [{transform_indices = @transform_0, window_bounds = array<i64: 1, 1616, 64>}, {pipeline_mode = #tpu.pipeline_mode<synchronous>, transform_indices = @transform_1, window_bounds = array<i64: 576, 510>}, {pipeline_mode = #tpu.pipeline_mode<synchronous>, transform_indices = @transform_2, window_bounds = array<i64: 1, 510>}, {transform_indices = @transform_3, window_bounds = array<i64: 1, 512, 510>}]} {
    %c512_i32 = arith.constant 512 : i32
    %0 = arith.muli %arg1, %c512_i32 : i32
    %1 = tpu.assume_multiple %0, 8 : i32
    %c0 = arith.constant 0 : index
    %2 = arith.index_cast %1 : i32 to index
    %c0_0 = arith.constant 0 : index
    %3 = vector.load %arg2[%c0, %2, %c0_0] : memref<1x1616x64xbf16, #tpu.memory_space<vmem>>, vector<1x592x64xbf16>
    %4 = vector.shape_cast %3 : vector<1x592x64xbf16> to vector<592x64xbf16>
    %5 = vector.extract_strided_slice %4 {offsets = [0, 0], sizes = [512, 64], strides = [1, 1]} : vector<592x64xbf16> to vector<512x64xbf16>
    %6 = vector.extract_strided_slice %4 {offsets = [1, 0], sizes = [512, 64], strides = [1, 1]} : vector<592x64xbf16> to vector<512x64xbf16>
    %7 = vector.extract_strided_slice %4 {offsets = [2, 0], sizes = [512, 64], strides = [1, 1]} : vector<592x64xbf16> to vector<512x64xbf16>
    %8 = vector.extract_strided_slice %4 {offsets = [38, 0], sizes = [512, 64], strides = [1, 1]} : vector<592x64xbf16> to vector<512x64xbf16>
    %9 = vector.extract_strided_slice %4 {offsets = [39, 0], sizes = [512, 64], strides = [1, 1]} : vector<592x64xbf16> to vector<512x64xbf16>
    %10 = vector.extract_strided_slice %4 {offsets = [40, 0], sizes = [512, 64], strides = [1, 1]} : vector<592x64xbf16> to vector<512x64xbf16>
    %11 = vector.extract_strided_slice %4 {offsets = [76, 0], sizes = [512, 64], strides = [1, 1]} : vector<592x64xbf16> to vector<512x64xbf16>
    %12 = vector.extract_strided_slice %4 {offsets = [77, 0], sizes = [512, 64], strides = [1, 1]} : vector<592x64xbf16> to vector<512x64xbf16>
    %13 = vector.extract_strided_slice %4 {offsets = [78, 0], sizes = [512, 64], strides = [1, 1]} : vector<592x64xbf16> to vector<512x64xbf16>
    %14 = tpu.concatenate %5, %6, %7, %8, %9, %10, %11, %12, %13 in 1 : vector<512x64xbf16>, vector<512x64xbf16>, vector<512x64xbf16>, vector<512x64xbf16>, vector<512x64xbf16>, vector<512x64xbf16>, vector<512x64xbf16>, vector<512x64xbf16>, vector<512x64xbf16> -> vector<512x576xbf16>
    %c0_1 = arith.constant 0 : index
    %c0_2 = arith.constant 0 : index
    %15 = vector.load %arg3[%c0_1, %c0_2] : memref<576x510xbf16, #tpu.memory_space<vmem>>, vector<576x510xbf16>
    %cst = arith.constant dense<0.000000e+00> : vector<512x510xf32>
    %16 = tpu.matmul %14, %15, %cst {dimension_numbers = #tpu.dot_dimension_numbers<[1], [0], [0], [1], [0, 0, 1, 1], [], []>} : vector<512x576xbf16>, vector<576x510xbf16>, vector<512x510xf32> -> vector<512x510xf32>
    %c0_3 = arith.constant 0 : index
    %c0_4 = arith.constant 0 : index
    %17 = vector.load %arg4[%c0_3, %c0_4] : memref<1x510xf32, #tpu.memory_space<vmem>>, vector<1x510xf32>
    %18 = vector.broadcast %17 : vector<1x510xf32> to vector<512x510xf32>
    %19 = arith.addf %16, %18 : vector<512x510xf32>
    %c0_5 = arith.constant 0 : index
    %c0_6 = arith.constant 0 : index
    %c0_7 = arith.constant 0 : index
    %20 = vector.load %arg5[%c0_5, %c0_6, %c0_7] : memref<1x512x510xf32, #tpu.memory_space<vmem>>, vector<1x512x510xf32>
    %21 = vector.shape_cast %20 : vector<1x512x510xf32> to vector<512x510xf32>
    %22 = vector.shape_cast %19 : vector<512x510xf32> to vector<1x512x510xf32>
    tpu.vector_store %arg5[%c0_5, %c0_6, %c0_7], %22 {strides = array<i32>} : memref<1x512x510xf32, #tpu.memory_space<vmem>>, vector<1x512x510xf32>,
    return
  }
  func.func @transform_0(%arg0: i32, %arg1: i32) -> (i32, i32, i32) {
    %c0_i32 = arith.constant 0 : i32
    %c0_i32_0 = arith.constant 0 : i32
    %c0_i32_1 = arith.constant 0 : i32
    return %arg0, %c0_i32, %c0_i32_0 : i32, i32, i32
  }
  func.func @transform_1(%arg0: i32, %arg1: i32) -> (i32, i32) {
    %c0_i32 = arith.constant 0 : i32
    %c0_i32_0 = arith.constant 0 : i32
    %c0_i32_1 = arith.constant 0 : i32
    return %c0_i32, %c0_i32_0 : i32, i32
  }
  func.func @transform_2(%arg0: i32, %arg1: i32) -> (i32, i32) {
    %c0_i32 = arith.constant 0 : i32
    %c0_i32_0 = arith.constant 0 : i32
    %c0_i32_1 = arith.constant 0 : i32
    return %c0_i32, %c0_i32_0 : i32, i32
  }
  func.func @transform_3(%arg0: i32, %arg1: i32) -> (i32, i32, i32) {
    %c0_i32 = arith.constant 0 : i32
    %c0_i32_0 = arith.constant 0 : i32
    return %arg0, %arg1, %c0_i32 : i32, i32, i32
  }
}

module attributes {stable_mosaic.version = 11 : i64} {
  func.func @_conv1_kernel(%arg0: i32, %arg1: i32, %arg2: memref<1x1296x64xbf16, #tpu.memory_space<vmem>>, %arg3: memref<64x16xbf16, #tpu.memory_space<vmem>>, %arg4: memref<1x16xf32, #tpu.memory_space<vmem>>, %arg5: memref<1x1296x16xbf16, #tpu.memory_space<vmem>>) attributes {dimension_semantics = [#tpu.dimension_semantics<parallel>, #tpu.dimension_semantics<parallel>], iteration_bounds = array<i64: 2, 1>, scalar_prefetch = 0 : i64, scratch_operands = 0 : i64, tpu.core_type = #tpu.core_type<tc>, window_params = [{transform_indices = @transform_0, window_bounds = array<i64: 1, 1296, 64>}, {pipeline_mode = #tpu.pipeline_mode<synchronous>, transform_indices = @transform_1, window_bounds = array<i64: 64, 16>}, {pipeline_mode = #tpu.pipeline_mode<synchronous>, transform_indices = @transform_2, window_bounds = array<i64: 1, 16>}, {transform_indices = @transform_3, window_bounds = array<i64: 1, 1296, 16>}]} {
    %c0 = arith.constant 0 : index
    %c0_0 = arith.constant 0 : index
    %c0_1 = arith.constant 0 : index
    %0 = vector.load %arg2[%c0, %c0_0, %c0_1] : memref<1x1296x64xbf16, #tpu.memory_space<vmem>>, vector<1x1296x64xbf16>
    %1 = vector.shape_cast %0 : vector<1x1296x64xbf16> to vector<1296x64xbf16>
    %c0_2 = arith.constant 0 : index
    %c0_3 = arith.constant 0 : index
    %2 = vector.load %arg3[%c0_2, %c0_3] : memref<64x16xbf16, #tpu.memory_space<vmem>>, vector<64x16xbf16>
    %cst = arith.constant dense<0.000000e+00> : vector<1296x16xf32>
    %3 = tpu.matmul %1, %2, %cst {dimension_numbers = #tpu.dot_dimension_numbers<[1], [0], [0], [1], [0, 0, 1, 1], [], []>} : vector<1296x64xbf16>, vector<64x16xbf16>, vector<1296x16xf32> -> vector<1296x16xf32>
    %c0_4 = arith.constant 0 : index
    %c0_5 = arith.constant 0 : index
    %4 = vector.load %arg4[%c0_4, %c0_5] : memref<1x16xf32, #tpu.memory_space<vmem>>, vector<1x16xf32>
    %5 = vector.broadcast %4 : vector<1x16xf32> to vector<1296x16xf32>
    %6 = arith.addf %3, %5 : vector<1296x16xf32>
    %cst_6 = arith.constant 0.000000e+00 : f32
    %7 = vector.broadcast %cst_6 : f32 to vector<1296x16xf32>
    %8 = arith.maximumf %6, %7 : vector<1296x16xf32>
    %9 = arith.truncf %8 : vector<1296x16xf32> to vector<1296x16xbf16>
    %c0_7 = arith.constant 0 : index
    %c0_8 = arith.constant 0 : index
    %c0_9 = arith.constant 0 : index
    %10 = vector.load %arg5[%c0_7, %c0_8, %c0_9] : memref<1x1296x16xbf16, #tpu.memory_space<vmem>>, vector<1x1296x16xbf16>
    %11 = vector.shape_cast %10 : vector<1x1296x16xbf16> to vector<1296x16xbf16>
    %12 = vector.shape_cast %9 : vector<1296x16xbf16> to vector<1x1296x16xbf16>
    tpu.vector_store %arg5[%c0_7, %c0_8, %c0_9], %12 {strides = array<i32>} : memref<1x1296x16xbf16, #tpu.memory_space<vmem>>, vector<1x1296x16xbf16>,
    return
  }
  func.func @transform_0(%arg0: i32, %arg1: i32) -> (i32, i32, i32) {
    %c0_i32 = arith.constant 0 : i32
    %c0_i32_0 = arith.constant 0 : i32
    return %arg0, %arg1, %c0_i32 : i32, i32, i32
  }
  func.func @transform_1(%arg0: i32, %arg1: i32) -> (i32, i32) {
    %c0_i32 = arith.constant 0 : i32
    %c0_i32_0 = arith.constant 0 : i32
    %c0_i32_1 = arith.constant 0 : i32
    return %c0_i32, %c0_i32_0 : i32, i32
  }
  func.func @transform_2(%arg0: i32, %arg1: i32) -> (i32, i32) {
    %c0_i32 = arith.constant 0 : i32
    %c0_i32_0 = arith.constant 0 : i32
    %c0_i32_1 = arith.constant 0 : i32
    return %c0_i32, %c0_i32_0 : i32, i32
  }
  func.func @transform_3(%arg0: i32, %arg1: i32) -> (i32, i32, i32) {
    %c0_i32 = arith.constant 0 : i32
    %c0_i32_0 = arith.constant 0 : i32
    return %arg0, %arg1, %c0_i32 : i32, i32, i32
  }
}

module attributes {stable_mosaic.version = 11 : i64} {
  func.func @_conv_tap_kernel(%arg0: i32, %arg1: i32, %arg2: memref<1x368x64xbf16, #tpu.memory_space<vmem>>, %arg3: memref<256x32xbf16, #tpu.memory_space<vmem>>, %arg4: memref<1x32xf32, #tpu.memory_space<vmem>>, %arg5: memref<1x344x32xbf16, #tpu.memory_space<vmem>>) attributes {dimension_semantics = [#tpu.dimension_semantics<parallel>, #tpu.dimension_semantics<parallel>], iteration_bounds = array<i64: 2, 1>, scalar_prefetch = 0 : i64, scratch_operands = 0 : i64, tpu.core_type = #tpu.core_type<tc>, window_params = [{transform_indices = @transform_0, window_bounds = array<i64: 1, 368, 64>}, {pipeline_mode = #tpu.pipeline_mode<synchronous>, transform_indices = @transform_1, window_bounds = array<i64: 256, 32>}, {pipeline_mode = #tpu.pipeline_mode<synchronous>, transform_indices = @transform_2, window_bounds = array<i64: 1, 32>}, {transform_indices = @transform_3, window_bounds = array<i64: 1, 344, 32>}]} {
    %c344_i32 = arith.constant 344 : i32
    %0 = arith.muli %arg1, %c344_i32 : i32
    %1 = tpu.assume_multiple %0, 8 : i32
    %c0 = arith.constant 0 : index
    %2 = arith.index_cast %1 : i32 to index
    %c0_0 = arith.constant 0 : index
    %3 = vector.load %arg2[%c0, %2, %c0_0] : memref<1x368x64xbf16, #tpu.memory_space<vmem>>, vector<1x368x64xbf16>
    %4 = vector.shape_cast %3 : vector<1x368x64xbf16> to vector<368x64xbf16>
    %5 = vector.extract_strided_slice %4 {offsets = [0, 0], sizes = [344, 64], strides = [1, 1]} : vector<368x64xbf16> to vector<344x64xbf16>
    %6 = vector.extract_strided_slice %4 {offsets = [1, 0], sizes = [344, 64], strides = [1, 1]} : vector<368x64xbf16> to vector<344x64xbf16>
    %7 = vector.extract_strided_slice %4 {offsets = [19, 0], sizes = [344, 64], strides = [1, 1]} : vector<368x64xbf16> to vector<344x64xbf16>
    %8 = vector.extract_strided_slice %4 {offsets = [20, 0], sizes = [344, 64], strides = [1, 1]} : vector<368x64xbf16> to vector<344x64xbf16>
    %9 = tpu.concatenate %5, %6, %7, %8 in 1 : vector<344x64xbf16>, vector<344x64xbf16>, vector<344x64xbf16>, vector<344x64xbf16> -> vector<344x256xbf16>
    %c0_1 = arith.constant 0 : index
    %c0_2 = arith.constant 0 : index
    %10 = vector.load %arg3[%c0_1, %c0_2] : memref<256x32xbf16, #tpu.memory_space<vmem>>, vector<256x32xbf16>
    %cst = arith.constant dense<0.000000e+00> : vector<344x32xf32>
    %11 = tpu.matmul %9, %10, %cst {dimension_numbers = #tpu.dot_dimension_numbers<[1], [0], [0], [1], [0, 0, 1, 1], [], []>} : vector<344x256xbf16>, vector<256x32xbf16>, vector<344x32xf32> -> vector<344x32xf32>
    %c0_3 = arith.constant 0 : index
    %c0_4 = arith.constant 0 : index
    %12 = vector.load %arg4[%c0_3, %c0_4] : memref<1x32xf32, #tpu.memory_space<vmem>>, vector<1x32xf32>
    %13 = vector.broadcast %12 : vector<1x32xf32> to vector<344x32xf32>
    %14 = arith.addf %11, %13 : vector<344x32xf32>
    %cst_5 = arith.constant 0.000000e+00 : f32
    %15 = vector.broadcast %cst_5 : f32 to vector<344x32xf32>
    %16 = arith.maximumf %14, %15 : vector<344x32xf32>
    %17 = arith.truncf %16 : vector<344x32xf32> to vector<344x32xbf16>
    %c0_6 = arith.constant 0 : index
    %c0_7 = arith.constant 0 : index
    %c0_8 = arith.constant 0 : index
    %18 = vector.load %arg5[%c0_6, %c0_7, %c0_8] : memref<1x344x32xbf16, #tpu.memory_space<vmem>>, vector<1x344x32xbf16>
    %19 = vector.shape_cast %18 : vector<1x344x32xbf16> to vector<344x32xbf16>
    %20 = vector.shape_cast %17 : vector<344x32xbf16> to vector<1x344x32xbf16>
    tpu.vector_store %arg5[%c0_6, %c0_7, %c0_8], %20 {strides = array<i32>} : memref<1x344x32xbf16, #tpu.memory_space<vmem>>, vector<1x344x32xbf16>,
    return
  }
  func.func @transform_0(%arg0: i32, %arg1: i32) -> (i32, i32, i32) {
    %c0_i32 = arith.constant 0 : i32
    %c0_i32_0 = arith.constant 0 : i32
    %c0_i32_1 = arith.constant 0 : i32
    return %arg0, %c0_i32, %c0_i32_0 : i32, i32, i32
  }
  func.func @transform_1(%arg0: i32, %arg1: i32) -> (i32, i32) {
    %c0_i32 = arith.constant 0 : i32
    %c0_i32_0 = arith.constant 0 : i32
    %c0_i32_1 = arith.constant 0 : i32
    return %c0_i32, %c0_i32_0 : i32, i32
  }
  func.func @transform_2(%arg0: i32, %arg1: i32) -> (i32, i32) {
    %c0_i32 = arith.constant 0 : i32
    %c0_i32_0 = arith.constant 0 : i32
    %c0_i32_1 = arith.constant 0 : i32
    return %c0_i32, %c0_i32_0 : i32, i32
  }
  func.func @transform_3(%arg0: i32, %arg1: i32) -> (i32, i32, i32) {
    %c0_i32 = arith.constant 0 : i32
    %c0_i32_0 = arith.constant 0 : i32
    return %arg0, %arg1, %c0_i32 : i32, i32, i32
  }
}

module attributes {stable_mosaic.version = 11 : i64} {
  func.func @_conv_tap_kernel(%arg0: i32, %arg1: i32, %arg2: memref<1x408x32xbf16, #tpu.memory_space<vmem>>, %arg3: memref<288x510xbf16, #tpu.memory_space<vmem>>, %arg4: memref<1x510xf32, #tpu.memory_space<vmem>>, %arg5: memref<1x360x510xf32, #tpu.memory_space<vmem>>) attributes {dimension_semantics = [#tpu.dimension_semantics<parallel>, #tpu.dimension_semantics<parallel>], iteration_bounds = array<i64: 2, 1>, scalar_prefetch = 0 : i64, scratch_operands = 0 : i64, tpu.core_type = #tpu.core_type<tc>, window_params = [{transform_indices = @transform_0, window_bounds = array<i64: 1, 408, 32>}, {pipeline_mode = #tpu.pipeline_mode<synchronous>, transform_indices = @transform_1, window_bounds = array<i64: 288, 510>}, {pipeline_mode = #tpu.pipeline_mode<synchronous>, transform_indices = @transform_2, window_bounds = array<i64: 1, 510>}, {transform_indices = @transform_3, window_bounds = array<i64: 1, 360, 510>}]} {
    %c360_i32 = arith.constant 360 : i32
    %0 = arith.muli %arg1, %c360_i32 : i32
    %1 = tpu.assume_multiple %0, 8 : i32
    %c0 = arith.constant 0 : index
    %2 = arith.index_cast %1 : i32 to index
    %c0_0 = arith.constant 0 : index
    %3 = vector.load %arg2[%c0, %2, %c0_0] : memref<1x408x32xbf16, #tpu.memory_space<vmem>>, vector<1x408x32xbf16>
    %4 = vector.shape_cast %3 : vector<1x408x32xbf16> to vector<408x32xbf16>
    %5 = vector.extract_strided_slice %4 {offsets = [0, 0], sizes = [360, 32], strides = [1, 1]} : vector<408x32xbf16> to vector<360x32xbf16>
    %6 = vector.extract_strided_slice %4 {offsets = [1, 0], sizes = [360, 32], strides = [1, 1]} : vector<408x32xbf16> to vector<360x32xbf16>
    %7 = vector.extract_strided_slice %4 {offsets = [2, 0], sizes = [360, 32], strides = [1, 1]} : vector<408x32xbf16> to vector<360x32xbf16>
    %8 = vector.extract_strided_slice %4 {offsets = [20, 0], sizes = [360, 32], strides = [1, 1]} : vector<408x32xbf16> to vector<360x32xbf16>
    %9 = vector.extract_strided_slice %4 {offsets = [21, 0], sizes = [360, 32], strides = [1, 1]} : vector<408x32xbf16> to vector<360x32xbf16>
    %10 = vector.extract_strided_slice %4 {offsets = [22, 0], sizes = [360, 32], strides = [1, 1]} : vector<408x32xbf16> to vector<360x32xbf16>
    %11 = vector.extract_strided_slice %4 {offsets = [40, 0], sizes = [360, 32], strides = [1, 1]} : vector<408x32xbf16> to vector<360x32xbf16>
    %12 = vector.extract_strided_slice %4 {offsets = [41, 0], sizes = [360, 32], strides = [1, 1]} : vector<408x32xbf16> to vector<360x32xbf16>
    %13 = vector.extract_strided_slice %4 {offsets = [42, 0], sizes = [360, 32], strides = [1, 1]} : vector<408x32xbf16> to vector<360x32xbf16>
    %14 = tpu.concatenate %5, %6, %7, %8, %9, %10, %11, %12, %13 in 1 : vector<360x32xbf16>, vector<360x32xbf16>, vector<360x32xbf16>, vector<360x32xbf16>, vector<360x32xbf16>, vector<360x32xbf16>, vector<360x32xbf16>, vector<360x32xbf16>, vector<360x32xbf16> -> vector<360x288xbf16>
    %c0_1 = arith.constant 0 : index
    %c0_2 = arith.constant 0 : index
    %15 = vector.load %arg3[%c0_1, %c0_2] : memref<288x510xbf16, #tpu.memory_space<vmem>>, vector<288x510xbf16>
    %cst = arith.constant dense<0.000000e+00> : vector<360x510xf32>
    %16 = tpu.matmul %14, %15, %cst {dimension_numbers = #tpu.dot_dimension_numbers<[1], [0], [0], [1], [0, 0, 1, 1], [], []>} : vector<360x288xbf16>, vector<288x510xbf16>, vector<360x510xf32> -> vector<360x510xf32>
    %c0_3 = arith.constant 0 : index
    %c0_4 = arith.constant 0 : index
    %17 = vector.load %arg4[%c0_3, %c0_4] : memref<1x510xf32, #tpu.memory_space<vmem>>, vector<1x510xf32>
    %18 = vector.broadcast %17 : vector<1x510xf32> to vector<360x510xf32>
    %19 = arith.addf %16, %18 : vector<360x510xf32>
    %c0_5 = arith.constant 0 : index
    %c0_6 = arith.constant 0 : index
    %c0_7 = arith.constant 0 : index
    %20 = vector.load %arg5[%c0_5, %c0_6, %c0_7] : memref<1x360x510xf32, #tpu.memory_space<vmem>>, vector<1x360x510xf32>
    %21 = vector.shape_cast %20 : vector<1x360x510xf32> to vector<360x510xf32>
    %22 = vector.shape_cast %19 : vector<360x510xf32> to vector<1x360x510xf32>
    tpu.vector_store %arg5[%c0_5, %c0_6, %c0_7], %22 {strides = array<i32>} : memref<1x360x510xf32, #tpu.memory_space<vmem>>, vector<1x360x510xf32>,
    return
  }
  func.func @transform_0(%arg0: i32, %arg1: i32) -> (i32, i32, i32) {
    %c0_i32 = arith.constant 0 : i32
    %c0_i32_0 = arith.constant 0 : i32
    %c0_i32_1 = arith.constant 0 : i32
    return %arg0, %c0_i32, %c0_i32_0 : i32, i32, i32
  }
  func.func @transform_1(%arg0: i32, %arg1: i32) -> (i32, i32) {
    %c0_i32 = arith.constant 0 : i32
    %c0_i32_0 = arith.constant 0 : i32
    %c0_i32_1 = arith.constant 0 : i32
    return %c0_i32, %c0_i32_0 : i32, i32
  }
  func.func @transform_2(%arg0: i32, %arg1: i32) -> (i32, i32) {
    %c0_i32 = arith.constant 0 : i32
    %c0_i32_0 = arith.constant 0 : i32
    %c0_i32_1 = arith.constant 0 : i32
    return %c0_i32, %c0_i32_0 : i32, i32
  }
  func.func @transform_3(%arg0: i32, %arg1: i32) -> (i32, i32, i32) {
    %c0_i32 = arith.constant 0 : i32
    %c0_i32_0 = arith.constant 0 : i32
    return %arg0, %arg1, %c0_i32 : i32, i32, i32
  }
}

module attributes {stable_mosaic.version = 11 : i64} {
  func.func @_conv1_kernel(%arg0: i32, %arg1: i32, %arg2: memref<1x328x32xbf16, #tpu.memory_space<vmem>>, %arg3: memref<32x16xbf16, #tpu.memory_space<vmem>>, %arg4: memref<1x16xf32, #tpu.memory_space<vmem>>, %arg5: memref<1x328x16xbf16, #tpu.memory_space<vmem>>) attributes {dimension_semantics = [#tpu.dimension_semantics<parallel>, #tpu.dimension_semantics<parallel>], iteration_bounds = array<i64: 2, 1>, scalar_prefetch = 0 : i64, scratch_operands = 0 : i64, tpu.core_type = #tpu.core_type<tc>, window_params = [{transform_indices = @transform_0, window_bounds = array<i64: 1, 328, 32>}, {pipeline_mode = #tpu.pipeline_mode<synchronous>, transform_indices = @transform_1, window_bounds = array<i64: 32, 16>}, {pipeline_mode = #tpu.pipeline_mode<synchronous>, transform_indices = @transform_2, window_bounds = array<i64: 1, 16>}, {transform_indices = @transform_3, window_bounds = array<i64: 1, 328, 16>}]} {
    %c0 = arith.constant 0 : index
    %c0_0 = arith.constant 0 : index
    %c0_1 = arith.constant 0 : index
    %0 = vector.load %arg2[%c0, %c0_0, %c0_1] : memref<1x328x32xbf16, #tpu.memory_space<vmem>>, vector<1x328x32xbf16>
    %1 = vector.shape_cast %0 : vector<1x328x32xbf16> to vector<328x32xbf16>
    %c0_2 = arith.constant 0 : index
    %c0_3 = arith.constant 0 : index
    %2 = vector.load %arg3[%c0_2, %c0_3] : memref<32x16xbf16, #tpu.memory_space<vmem>>, vector<32x16xbf16>
    %cst = arith.constant dense<0.000000e+00> : vector<328x16xf32>
    %3 = tpu.matmul %1, %2, %cst {dimension_numbers = #tpu.dot_dimension_numbers<[1], [0], [0], [1], [0, 0, 1, 1], [], []>} : vector<328x32xbf16>, vector<32x16xbf16>, vector<328x16xf32> -> vector<328x16xf32>
    %c0_4 = arith.constant 0 : index
    %c0_5 = arith.constant 0 : index
    %4 = vector.load %arg4[%c0_4, %c0_5] : memref<1x16xf32, #tpu.memory_space<vmem>>, vector<1x16xf32>
    %5 = vector.broadcast %4 : vector<1x16xf32> to vector<328x16xf32>
    %6 = arith.addf %3, %5 : vector<328x16xf32>
    %cst_6 = arith.constant 0.000000e+00 : f32
    %7 = vector.broadcast %cst_6 : f32 to vector<328x16xf32>
    %8 = arith.maximumf %6, %7 : vector<328x16xf32>
    %9 = arith.truncf %8 : vector<328x16xf32> to vector<328x16xbf16>
    %c0_7 = arith.constant 0 : index
    %c0_8 = arith.constant 0 : index
    %c0_9 = arith.constant 0 : index
    %10 = vector.load %arg5[%c0_7, %c0_8, %c0_9] : memref<1x328x16xbf16, #tpu.memory_space<vmem>>, vector<1x328x16xbf16>
    %11 = vector.shape_cast %10 : vector<1x328x16xbf16> to vector<328x16xbf16>
    %12 = vector.shape_cast %9 : vector<328x16xbf16> to vector<1x328x16xbf16>
    tpu.vector_store %arg5[%c0_7, %c0_8, %c0_9], %12 {strides = array<i32>} : memref<1x328x16xbf16, #tpu.memory_space<vmem>>, vector<1x328x16xbf16>,
    return
  }
  func.func @transform_0(%arg0: i32, %arg1: i32) -> (i32, i32, i32) {
    %c0_i32 = arith.constant 0 : i32
    %c0_i32_0 = arith.constant 0 : i32
    return %arg0, %arg1, %c0_i32 : i32, i32, i32
  }
  func.func @transform_1(%arg0: i32, %arg1: i32) -> (i32, i32) {
    %c0_i32 = arith.constant 0 : i32
    %c0_i32_0 = arith.constant 0 : i32
    %c0_i32_1 = arith.constant 0 : i32
    return %c0_i32, %c0_i32_0 : i32, i32
  }
  func.func @transform_2(%arg0: i32, %arg1: i32) -> (i32, i32) {
    %c0_i32 = arith.constant 0 : i32
    %c0_i32_0 = arith.constant 0 : i32
    %c0_i32_1 = arith.constant 0 : i32
    return %c0_i32, %c0_i32_0 : i32, i32
  }
  func.func @transform_3(%arg0: i32, %arg1: i32) -> (i32, i32, i32) {
    %c0_i32 = arith.constant 0 : i32
    %c0_i32_0 = arith.constant 0 : i32
    return %arg0, %arg1, %c0_i32 : i32, i32, i32
  }
}

module attributes {stable_mosaic.version = 11 : i64} {
  func.func @_conv_tap_kernel(%arg0: i32, %arg1: i32, %arg2: memref<1x112x64xbf16, #tpu.memory_space<vmem>>, %arg3: memref<256x32xbf16, #tpu.memory_space<vmem>>, %arg4: memref<1x32xf32, #tpu.memory_space<vmem>>, %arg5: memref<1x96x32xbf16, #tpu.memory_space<vmem>>) attributes {dimension_semantics = [#tpu.dimension_semantics<parallel>, #tpu.dimension_semantics<parallel>], iteration_bounds = array<i64: 2, 1>, scalar_prefetch = 0 : i64, scratch_operands = 0 : i64, tpu.core_type = #tpu.core_type<tc>, window_params = [{transform_indices = @transform_0, window_bounds = array<i64: 1, 112, 64>}, {pipeline_mode = #tpu.pipeline_mode<synchronous>, transform_indices = @transform_1, window_bounds = array<i64: 256, 32>}, {pipeline_mode = #tpu.pipeline_mode<synchronous>, transform_indices = @transform_2, window_bounds = array<i64: 1, 32>}, {transform_indices = @transform_3, window_bounds = array<i64: 1, 96, 32>}]} {
    %c96_i32 = arith.constant 96 : i32
    %0 = arith.muli %arg1, %c96_i32 : i32
    %1 = tpu.assume_multiple %0, 8 : i32
    %c0 = arith.constant 0 : index
    %2 = arith.index_cast %1 : i32 to index
    %c0_0 = arith.constant 0 : index
    %3 = vector.load %arg2[%c0, %2, %c0_0] : memref<1x112x64xbf16, #tpu.memory_space<vmem>>, vector<1x112x64xbf16>
    %4 = vector.shape_cast %3 : vector<1x112x64xbf16> to vector<112x64xbf16>
    %5 = vector.extract_strided_slice %4 {offsets = [0, 0], sizes = [96, 64], strides = [1, 1]} : vector<112x64xbf16> to vector<96x64xbf16>
    %6 = vector.extract_strided_slice %4 {offsets = [1, 0], sizes = [96, 64], strides = [1, 1]} : vector<112x64xbf16> to vector<96x64xbf16>
    %7 = vector.extract_strided_slice %4 {offsets = [10, 0], sizes = [96, 64], strides = [1, 1]} : vector<112x64xbf16> to vector<96x64xbf16>
    %8 = vector.extract_strided_slice %4 {offsets = [11, 0], sizes = [96, 64], strides = [1, 1]} : vector<112x64xbf16> to vector<96x64xbf16>
    %9 = tpu.concatenate %5, %6, %7, %8 in 1 : vector<96x64xbf16>, vector<96x64xbf16>, vector<96x64xbf16>, vector<96x64xbf16> -> vector<96x256xbf16>
    %c0_1 = arith.constant 0 : index
    %c0_2 = arith.constant 0 : index
    %10 = vector.load %arg3[%c0_1, %c0_2] : memref<256x32xbf16, #tpu.memory_space<vmem>>, vector<256x32xbf16>
    %cst = arith.constant dense<0.000000e+00> : vector<96x32xf32>
    %11 = tpu.matmul %9, %10, %cst {dimension_numbers = #tpu.dot_dimension_numbers<[1], [0], [0], [1], [0, 0, 1, 1], [], []>} : vector<96x256xbf16>, vector<256x32xbf16>, vector<96x32xf32> -> vector<96x32xf32>
    %c0_3 = arith.constant 0 : index
    %c0_4 = arith.constant 0 : index
    %12 = vector.load %arg4[%c0_3, %c0_4] : memref<1x32xf32, #tpu.memory_space<vmem>>, vector<1x32xf32>
    %13 = vector.broadcast %12 : vector<1x32xf32> to vector<96x32xf32>
    %14 = arith.addf %11, %13 : vector<96x32xf32>
    %cst_5 = arith.constant 0.000000e+00 : f32
    %15 = vector.broadcast %cst_5 : f32 to vector<96x32xf32>
    %16 = arith.maximumf %14, %15 : vector<96x32xf32>
    %17 = arith.truncf %16 : vector<96x32xf32> to vector<96x32xbf16>
    %c0_6 = arith.constant 0 : index
    %c0_7 = arith.constant 0 : index
    %c0_8 = arith.constant 0 : index
    %18 = vector.load %arg5[%c0_6, %c0_7, %c0_8] : memref<1x96x32xbf16, #tpu.memory_space<vmem>>, vector<1x96x32xbf16>
    %19 = vector.shape_cast %18 : vector<1x96x32xbf16> to vector<96x32xbf16>
    %20 = vector.shape_cast %17 : vector<96x32xbf16> to vector<1x96x32xbf16>
    tpu.vector_store %arg5[%c0_6, %c0_7, %c0_8], %20 {strides = array<i32>} : memref<1x96x32xbf16, #tpu.memory_space<vmem>>, vector<1x96x32xbf16>,
    return
  }
  func.func @transform_0(%arg0: i32, %arg1: i32) -> (i32, i32, i32) {
    %c0_i32 = arith.constant 0 : i32
    %c0_i32_0 = arith.constant 0 : i32
    %c0_i32_1 = arith.constant 0 : i32
    return %arg0, %c0_i32, %c0_i32_0 : i32, i32, i32
  }
  func.func @transform_1(%arg0: i32, %arg1: i32) -> (i32, i32) {
    %c0_i32 = arith.constant 0 : i32
    %c0_i32_0 = arith.constant 0 : i32
    %c0_i32_1 = arith.constant 0 : i32
    return %c0_i32, %c0_i32_0 : i32, i32
  }
  func.func @transform_2(%arg0: i32, %arg1: i32) -> (i32, i32) {
    %c0_i32 = arith.constant 0 : i32
    %c0_i32_0 = arith.constant 0 : i32
    %c0_i32_1 = arith.constant 0 : i32
    return %c0_i32, %c0_i32_0 : i32, i32
  }
  func.func @transform_3(%arg0: i32, %arg1: i32) -> (i32, i32, i32) {
    %c0_i32 = arith.constant 0 : i32
    %c0_i32_0 = arith.constant 0 : i32
    return %arg0, %arg1, %c0_i32 : i32, i32, i32
  }
}

module attributes {stable_mosaic.version = 11 : i64} {
  func.func @_conv_tap_kernel(%arg0: i32, %arg1: i32, %arg2: memref<1x128x32xbf16, #tpu.memory_space<vmem>>, %arg3: memref<288x510xbf16, #tpu.memory_space<vmem>>, %arg4: memref<1x510xf32, #tpu.memory_space<vmem>>, %arg5: memref<1x104x510xf32, #tpu.memory_space<vmem>>) attributes {dimension_semantics = [#tpu.dimension_semantics<parallel>, #tpu.dimension_semantics<parallel>], iteration_bounds = array<i64: 2, 1>, scalar_prefetch = 0 : i64, scratch_operands = 0 : i64, tpu.core_type = #tpu.core_type<tc>, window_params = [{transform_indices = @transform_0, window_bounds = array<i64: 1, 128, 32>}, {pipeline_mode = #tpu.pipeline_mode<synchronous>, transform_indices = @transform_1, window_bounds = array<i64: 288, 510>}, {pipeline_mode = #tpu.pipeline_mode<synchronous>, transform_indices = @transform_2, window_bounds = array<i64: 1, 510>}, {transform_indices = @transform_3, window_bounds = array<i64: 1, 104, 510>}]} {
    %c104_i32 = arith.constant 104 : i32
    %0 = arith.muli %arg1, %c104_i32 : i32
    %1 = tpu.assume_multiple %0, 8 : i32
    %c0 = arith.constant 0 : index
    %2 = arith.index_cast %1 : i32 to index
    %c0_0 = arith.constant 0 : index
    %3 = vector.load %arg2[%c0, %2, %c0_0] : memref<1x128x32xbf16, #tpu.memory_space<vmem>>, vector<1x128x32xbf16>
    %4 = vector.shape_cast %3 : vector<1x128x32xbf16> to vector<128x32xbf16>
    %5 = vector.extract_strided_slice %4 {offsets = [0, 0], sizes = [104, 32], strides = [1, 1]} : vector<128x32xbf16> to vector<104x32xbf16>
    %6 = vector.extract_strided_slice %4 {offsets = [1, 0], sizes = [104, 32], strides = [1, 1]} : vector<128x32xbf16> to vector<104x32xbf16>
    %7 = vector.extract_strided_slice %4 {offsets = [2, 0], sizes = [104, 32], strides = [1, 1]} : vector<128x32xbf16> to vector<104x32xbf16>
    %8 = vector.extract_strided_slice %4 {offsets = [11, 0], sizes = [104, 32], strides = [1, 1]} : vector<128x32xbf16> to vector<104x32xbf16>
    %9 = vector.extract_strided_slice %4 {offsets = [12, 0], sizes = [104, 32], strides = [1, 1]} : vector<128x32xbf16> to vector<104x32xbf16>
    %10 = vector.extract_strided_slice %4 {offsets = [13, 0], sizes = [104, 32], strides = [1, 1]} : vector<128x32xbf16> to vector<104x32xbf16>
    %11 = vector.extract_strided_slice %4 {offsets = [22, 0], sizes = [104, 32], strides = [1, 1]} : vector<128x32xbf16> to vector<104x32xbf16>
    %12 = vector.extract_strided_slice %4 {offsets = [23, 0], sizes = [104, 32], strides = [1, 1]} : vector<128x32xbf16> to vector<104x32xbf16>
    %13 = vector.extract_strided_slice %4 {offsets = [24, 0], sizes = [104, 32], strides = [1, 1]} : vector<128x32xbf16> to vector<104x32xbf16>
    %14 = tpu.concatenate %5, %6, %7, %8, %9, %10, %11, %12, %13 in 1 : vector<104x32xbf16>, vector<104x32xbf16>, vector<104x32xbf16>, vector<104x32xbf16>, vector<104x32xbf16>, vector<104x32xbf16>, vector<104x32xbf16>, vector<104x32xbf16>, vector<104x32xbf16> -> vector<104x288xbf16>
    %c0_1 = arith.constant 0 : index
    %c0_2 = arith.constant 0 : index
    %15 = vector.load %arg3[%c0_1, %c0_2] : memref<288x510xbf16, #tpu.memory_space<vmem>>, vector<288x510xbf16>
    %cst = arith.constant dense<0.000000e+00> : vector<104x510xf32>
    %16 = tpu.matmul %14, %15, %cst {dimension_numbers = #tpu.dot_dimension_numbers<[1], [0], [0], [1], [0, 0, 1, 1], [], []>} : vector<104x288xbf16>, vector<288x510xbf16>, vector<104x510xf32> -> vector<104x510xf32>
    %c0_3 = arith.constant 0 : index
    %c0_4 = arith.constant 0 : index
    %17 = vector.load %arg4[%c0_3, %c0_4] : memref<1x510xf32, #tpu.memory_space<vmem>>, vector<1x510xf32>
    %18 = vector.broadcast %17 : vector<1x510xf32> to vector<104x510xf32>
    %19 = arith.addf %16, %18 : vector<104x510xf32>
    %c0_5 = arith.constant 0 : index
    %c0_6 = arith.constant 0 : index
    %c0_7 = arith.constant 0 : index
    %20 = vector.load %arg5[%c0_5, %c0_6, %c0_7] : memref<1x104x510xf32, #tpu.memory_space<vmem>>, vector<1x104x510xf32>
    %21 = vector.shape_cast %20 : vector<1x104x510xf32> to vector<104x510xf32>
    %22 = vector.shape_cast %19 : vector<104x510xf32> to vector<1x104x510xf32>
    tpu.vector_store %arg5[%c0_5, %c0_6, %c0_7], %22 {strides = array<i32>} : memref<1x104x510xf32, #tpu.memory_space<vmem>>, vector<1x104x510xf32>,
    return
  }
  func.func @transform_0(%arg0: i32, %arg1: i32) -> (i32, i32, i32) {
    %c0_i32 = arith.constant 0 : i32
    %c0_i32_0 = arith.constant 0 : i32
    %c0_i32_1 = arith.constant 0 : i32
    return %arg0, %c0_i32, %c0_i32_0 : i32, i32, i32
  }
  func.func @transform_1(%arg0: i32, %arg1: i32) -> (i32, i32) {
    %c0_i32 = arith.constant 0 : i32
    %c0_i32_0 = arith.constant 0 : i32
    %c0_i32_1 = arith.constant 0 : i32
    return %c0_i32, %c0_i32_0 : i32, i32
  }
  func.func @transform_2(%arg0: i32, %arg1: i32) -> (i32, i32) {
    %c0_i32 = arith.constant 0 : i32
    %c0_i32_0 = arith.constant 0 : i32
    %c0_i32_1 = arith.constant 0 : i32
    return %c0_i32, %c0_i32_0 : i32, i32
  }
  func.func @transform_3(%arg0: i32, %arg1: i32) -> (i32, i32, i32) {
    %c0_i32 = arith.constant 0 : i32
    %c0_i32_0 = arith.constant 0 : i32
    return %arg0, %arg1, %c0_i32 : i32, i32, i32
  }
}

module attributes {stable_mosaic.version = 11 : i64} {
  func.func @_conv1_kernel(%arg0: i32, %arg1: i32, %arg2: memref<1x88x32xbf16, #tpu.memory_space<vmem>>, %arg3: memref<32x8xbf16, #tpu.memory_space<vmem>>, %arg4: memref<1x8xf32, #tpu.memory_space<vmem>>, %arg5: memref<1x88x8xbf16, #tpu.memory_space<vmem>>) attributes {dimension_semantics = [#tpu.dimension_semantics<parallel>, #tpu.dimension_semantics<parallel>], iteration_bounds = array<i64: 2, 1>, scalar_prefetch = 0 : i64, scratch_operands = 0 : i64, tpu.core_type = #tpu.core_type<tc>, window_params = [{transform_indices = @transform_0, window_bounds = array<i64: 1, 88, 32>}, {pipeline_mode = #tpu.pipeline_mode<synchronous>, transform_indices = @transform_1, window_bounds = array<i64: 32, 8>}, {pipeline_mode = #tpu.pipeline_mode<synchronous>, transform_indices = @transform_2, window_bounds = array<i64: 1, 8>}, {transform_indices = @transform_3, window_bounds = array<i64: 1, 88, 8>}]} {
    %c0 = arith.constant 0 : index
    %c0_0 = arith.constant 0 : index
    %c0_1 = arith.constant 0 : index
    %0 = vector.load %arg2[%c0, %c0_0, %c0_1] : memref<1x88x32xbf16, #tpu.memory_space<vmem>>, vector<1x88x32xbf16>
    %1 = vector.shape_cast %0 : vector<1x88x32xbf16> to vector<88x32xbf16>
    %c0_2 = arith.constant 0 : index
    %c0_3 = arith.constant 0 : index
    %2 = vector.load %arg3[%c0_2, %c0_3] : memref<32x8xbf16, #tpu.memory_space<vmem>>, vector<32x8xbf16>
    %cst = arith.constant dense<0.000000e+00> : vector<88x8xf32>
    %3 = tpu.matmul %1, %2, %cst {dimension_numbers = #tpu.dot_dimension_numbers<[1], [0], [0], [1], [0, 0, 1, 1], [], []>} : vector<88x32xbf16>, vector<32x8xbf16>, vector<88x8xf32> -> vector<88x8xf32>
    %c0_4 = arith.constant 0 : index
    %c0_5 = arith.constant 0 : index
    %4 = vector.load %arg4[%c0_4, %c0_5] : memref<1x8xf32, #tpu.memory_space<vmem>>, vector<1x8xf32>
    %5 = vector.broadcast %4 : vector<1x8xf32> to vector<88x8xf32>
    %6 = arith.addf %3, %5 : vector<88x8xf32>
    %cst_6 = arith.constant 0.000000e+00 : f32
    %7 = vector.broadcast %cst_6 : f32 to vector<88x8xf32>
    %8 = arith.maximumf %6, %7 : vector<88x8xf32>
    %9 = arith.truncf %8 : vector<88x8xf32> to vector<88x8xbf16>
    %c0_7 = arith.constant 0 : index
    %c0_8 = arith.constant 0 : index
    %c0_9 = arith.constant 0 : index
    %10 = vector.load %arg5[%c0_7, %c0_8, %c0_9] : memref<1x88x8xbf16, #tpu.memory_space<vmem>>, vector<1x88x8xbf16>
    %11 = vector.shape_cast %10 : vector<1x88x8xbf16> to vector<88x8xbf16>
    %12 = vector.shape_cast %9 : vector<88x8xbf16> to vector<1x88x8xbf16>
    tpu.vector_store %arg5[%c0_7, %c0_8, %c0_9], %12 {strides = array<i32>} : memref<1x88x8xbf16, #tpu.memory_space<vmem>>, vector<1x88x8xbf16>,
    return
  }
  func.func @transform_0(%arg0: i32, %arg1: i32) -> (i32, i32, i32) {
    %c0_i32 = arith.constant 0 : i32
    %c0_i32_0 = arith.constant 0 : i32
    return %arg0, %arg1, %c0_i32 : i32, i32, i32
  }
  func.func @transform_1(%arg0: i32, %arg1: i32) -> (i32, i32) {
    %c0_i32 = arith.constant 0 : i32
    %c0_i32_0 = arith.constant 0 : i32
    %c0_i32_1 = arith.constant 0 : i32
    return %c0_i32, %c0_i32_0 : i32, i32
  }
  func.func @transform_2(%arg0: i32, %arg1: i32) -> (i32, i32) {
    %c0_i32 = arith.constant 0 : i32
    %c0_i32_0 = arith.constant 0 : i32
    %c0_i32_1 = arith.constant 0 : i32
    return %c0_i32, %c0_i32_0 : i32, i32
  }
  func.func @transform_3(%arg0: i32, %arg1: i32) -> (i32, i32, i32) {
    %c0_i32 = arith.constant 0 : i32
    %c0_i32_0 = arith.constant 0 : i32
    return %arg0, %arg1, %c0_i32 : i32, i32, i32
  }
}

module attributes {stable_mosaic.version = 11 : i64} {
  func.func @_conv_tap_kernel(%arg0: i32, %arg1: i32, %arg2: memref<1x40x32xbf16, #tpu.memory_space<vmem>>, %arg3: memref<128x16xbf16, #tpu.memory_space<vmem>>, %arg4: memref<1x16xf32, #tpu.memory_space<vmem>>, %arg5: memref<1x32x16xbf16, #tpu.memory_space<vmem>>) attributes {dimension_semantics = [#tpu.dimension_semantics<parallel>, #tpu.dimension_semantics<parallel>], iteration_bounds = array<i64: 2, 1>, scalar_prefetch = 0 : i64, scratch_operands = 0 : i64, tpu.core_type = #tpu.core_type<tc>, window_params = [{transform_indices = @transform_0, window_bounds = array<i64: 1, 40, 32>}, {pipeline_mode = #tpu.pipeline_mode<synchronous>, transform_indices = @transform_1, window_bounds = array<i64: 128, 16>}, {pipeline_mode = #tpu.pipeline_mode<synchronous>, transform_indices = @transform_2, window_bounds = array<i64: 1, 16>}, {transform_indices = @transform_3, window_bounds = array<i64: 1, 32, 16>}]} {
    %c32_i32 = arith.constant 32 : i32
    %0 = arith.muli %arg1, %c32_i32 : i32
    %1 = tpu.assume_multiple %0, 8 : i32
    %c0 = arith.constant 0 : index
    %2 = arith.index_cast %1 : i32 to index
    %c0_0 = arith.constant 0 : index
    %3 = vector.load %arg2[%c0, %2, %c0_0] : memref<1x40x32xbf16, #tpu.memory_space<vmem>>, vector<1x40x32xbf16>
    %4 = vector.shape_cast %3 : vector<1x40x32xbf16> to vector<40x32xbf16>
    %5 = vector.extract_strided_slice %4 {offsets = [0, 0], sizes = [32, 32], strides = [1, 1]} : vector<40x32xbf16> to vector<32x32xbf16>
    %6 = vector.extract_strided_slice %4 {offsets = [1, 0], sizes = [32, 32], strides = [1, 1]} : vector<40x32xbf16> to vector<32x32xbf16>
    %7 = vector.extract_strided_slice %4 {offsets = [6, 0], sizes = [32, 32], strides = [1, 1]} : vector<40x32xbf16> to vector<32x32xbf16>
    %8 = vector.extract_strided_slice %4 {offsets = [7, 0], sizes = [32, 32], strides = [1, 1]} : vector<40x32xbf16> to vector<32x32xbf16>
    %9 = tpu.concatenate %5, %6, %7, %8 in 1 : vector<32x32xbf16>, vector<32x32xbf16>, vector<32x32xbf16>, vector<32x32xbf16> -> vector<32x128xbf16>
    %c0_1 = arith.constant 0 : index
    %c0_2 = arith.constant 0 : index
    %10 = vector.load %arg3[%c0_1, %c0_2] : memref<128x16xbf16, #tpu.memory_space<vmem>>, vector<128x16xbf16>
    %cst = arith.constant dense<0.000000e+00> : vector<32x16xf32>
    %11 = tpu.matmul %9, %10, %cst {dimension_numbers = #tpu.dot_dimension_numbers<[1], [0], [0], [1], [0, 0, 1, 1], [], []>} : vector<32x128xbf16>, vector<128x16xbf16>, vector<32x16xf32> -> vector<32x16xf32>
    %c0_3 = arith.constant 0 : index
    %c0_4 = arith.constant 0 : index
    %12 = vector.load %arg4[%c0_3, %c0_4] : memref<1x16xf32, #tpu.memory_space<vmem>>, vector<1x16xf32>
    %13 = vector.broadcast %12 : vector<1x16xf32> to vector<32x16xf32>
    %14 = arith.addf %11, %13 : vector<32x16xf32>
    %cst_5 = arith.constant 0.000000e+00 : f32
    %15 = vector.broadcast %cst_5 : f32 to vector<32x16xf32>
    %16 = arith.maximumf %14, %15 : vector<32x16xf32>
    %17 = arith.truncf %16 : vector<32x16xf32> to vector<32x16xbf16>
    %c0_6 = arith.constant 0 : index
    %c0_7 = arith.constant 0 : index
    %c0_8 = arith.constant 0 : index
    %18 = vector.load %arg5[%c0_6, %c0_7, %c0_8] : memref<1x32x16xbf16, #tpu.memory_space<vmem>>, vector<1x32x16xbf16>
    %19 = vector.shape_cast %18 : vector<1x32x16xbf16> to vector<32x16xbf16>
    %20 = vector.shape_cast %17 : vector<32x16xbf16> to vector<1x32x16xbf16>
    tpu.vector_store %arg5[%c0_6, %c0_7, %c0_8], %20 {strides = array<i32>} : memref<1x32x16xbf16, #tpu.memory_space<vmem>>, vector<1x32x16xbf16>,
    return
  }
  func.func @transform_0(%arg0: i32, %arg1: i32) -> (i32, i32, i32) {
    %c0_i32 = arith.constant 0 : i32
    %c0_i32_0 = arith.constant 0 : i32
    %c0_i32_1 = arith.constant 0 : i32
    return %arg0, %c0_i32, %c0_i32_0 : i32, i32, i32
  }
  func.func @transform_1(%arg0: i32, %arg1: i32) -> (i32, i32) {
    %c0_i32 = arith.constant 0 : i32
    %c0_i32_0 = arith.constant 0 : i32
    %c0_i32_1 = arith.constant 0 : i32
    return %c0_i32, %c0_i32_0 : i32, i32
  }
  func.func @transform_2(%arg0: i32, %arg1: i32) -> (i32, i32) {
    %c0_i32 = arith.constant 0 : i32
    %c0_i32_0 = arith.constant 0 : i32
    %c0_i32_1 = arith.constant 0 : i32
    return %c0_i32, %c0_i32_0 : i32, i32
  }
  func.func @transform_3(%arg0: i32, %arg1: i32) -> (i32, i32, i32) {
    %c0_i32 = arith.constant 0 : i32
    %c0_i32_0 = arith.constant 0 : i32
    return %arg0, %arg1, %c0_i32 : i32, i32, i32
  }
}

module attributes {stable_mosaic.version = 11 : i64} {
  func.func @_conv_tap_kernel(%arg0: i32, %arg1: i32, %arg2: memref<1x56x16xbf16, #tpu.memory_space<vmem>>, %arg3: memref<144x340xbf16, #tpu.memory_space<vmem>>, %arg4: memref<1x340xf32, #tpu.memory_space<vmem>>, %arg5: memref<1x40x340xf32, #tpu.memory_space<vmem>>) attributes {dimension_semantics = [#tpu.dimension_semantics<parallel>, #tpu.dimension_semantics<parallel>], iteration_bounds = array<i64: 2, 1>, scalar_prefetch = 0 : i64, scratch_operands = 0 : i64, tpu.core_type = #tpu.core_type<tc>, window_params = [{transform_indices = @transform_0, window_bounds = array<i64: 1, 56, 16>}, {pipeline_mode = #tpu.pipeline_mode<synchronous>, transform_indices = @transform_1, window_bounds = array<i64: 144, 340>}, {pipeline_mode = #tpu.pipeline_mode<synchronous>, transform_indices = @transform_2, window_bounds = array<i64: 1, 340>}, {transform_indices = @transform_3, window_bounds = array<i64: 1, 40, 340>}]} {
    %c40_i32 = arith.constant 40 : i32
    %0 = arith.muli %arg1, %c40_i32 : i32
    %1 = tpu.assume_multiple %0, 8 : i32
    %c0 = arith.constant 0 : index
    %2 = arith.index_cast %1 : i32 to index
    %c0_0 = arith.constant 0 : index
    %3 = vector.load %arg2[%c0, %2, %c0_0] : memref<1x56x16xbf16, #tpu.memory_space<vmem>>, vector<1x56x16xbf16>
    %4 = vector.shape_cast %3 : vector<1x56x16xbf16> to vector<56x16xbf16>
    %5 = vector.extract_strided_slice %4 {offsets = [0, 0], sizes = [40, 16], strides = [1, 1]} : vector<56x16xbf16> to vector<40x16xbf16>
    %6 = vector.extract_strided_slice %4 {offsets = [1, 0], sizes = [40, 16], strides = [1, 1]} : vector<56x16xbf16> to vector<40x16xbf16>
    %7 = vector.extract_strided_slice %4 {offsets = [2, 0], sizes = [40, 16], strides = [1, 1]} : vector<56x16xbf16> to vector<40x16xbf16>
    %8 = vector.extract_strided_slice %4 {offsets = [7, 0], sizes = [40, 16], strides = [1, 1]} : vector<56x16xbf16> to vector<40x16xbf16>
    %9 = vector.extract_strided_slice %4 {offsets = [8, 0], sizes = [40, 16], strides = [1, 1]} : vector<56x16xbf16> to vector<40x16xbf16>
    %10 = vector.extract_strided_slice %4 {offsets = [9, 0], sizes = [40, 16], strides = [1, 1]} : vector<56x16xbf16> to vector<40x16xbf16>
    %11 = vector.extract_strided_slice %4 {offsets = [14, 0], sizes = [40, 16], strides = [1, 1]} : vector<56x16xbf16> to vector<40x16xbf16>
    %12 = vector.extract_strided_slice %4 {offsets = [15, 0], sizes = [40, 16], strides = [1, 1]} : vector<56x16xbf16> to vector<40x16xbf16>
    %13 = vector.extract_strided_slice %4 {offsets = [16, 0], sizes = [40, 16], strides = [1, 1]} : vector<56x16xbf16> to vector<40x16xbf16>
    %14 = tpu.concatenate %5, %6, %7, %8, %9, %10, %11, %12, %13 in 1 : vector<40x16xbf16>, vector<40x16xbf16>, vector<40x16xbf16>, vector<40x16xbf16>, vector<40x16xbf16>, vector<40x16xbf16>, vector<40x16xbf16>, vector<40x16xbf16>, vector<40x16xbf16> -> vector<40x144xbf16>
    %c0_1 = arith.constant 0 : index
    %c0_2 = arith.constant 0 : index
    %15 = vector.load %arg3[%c0_1, %c0_2] : memref<144x340xbf16, #tpu.memory_space<vmem>>, vector<144x340xbf16>
    %cst = arith.constant dense<0.000000e+00> : vector<40x340xf32>
    %16 = tpu.matmul %14, %15, %cst {dimension_numbers = #tpu.dot_dimension_numbers<[1], [0], [0], [1], [0, 0, 1, 1], [], []>} : vector<40x144xbf16>, vector<144x340xbf16>, vector<40x340xf32> -> vector<40x340xf32>
    %c0_3 = arith.constant 0 : index
    %c0_4 = arith.constant 0 : index
    %17 = vector.load %arg4[%c0_3, %c0_4] : memref<1x340xf32, #tpu.memory_space<vmem>>, vector<1x340xf32>
    %18 = vector.broadcast %17 : vector<1x340xf32> to vector<40x340xf32>
    %19 = arith.addf %16, %18 : vector<40x340xf32>
    %c0_5 = arith.constant 0 : index
    %c0_6 = arith.constant 0 : index
    %c0_7 = arith.constant 0 : index
    %20 = vector.load %arg5[%c0_5, %c0_6, %c0_7] : memref<1x40x340xf32, #tpu.memory_space<vmem>>, vector<1x40x340xf32>
    %21 = vector.shape_cast %20 : vector<1x40x340xf32> to vector<40x340xf32>
    %22 = vector.shape_cast %19 : vector<40x340xf32> to vector<1x40x340xf32>
    tpu.vector_store %arg5[%c0_5, %c0_6, %c0_7], %22 {strides = array<i32>} : memref<1x40x340xf32, #tpu.memory_space<vmem>>, vector<1x40x340xf32>,
    return
  }
  func.func @transform_0(%arg0: i32, %arg1: i32) -> (i32, i32, i32) {
    %c0_i32 = arith.constant 0 : i32
    %c0_i32_0 = arith.constant 0 : i32
    %c0_i32_1 = arith.constant 0 : i32
    return %arg0, %c0_i32, %c0_i32_0 : i32, i32, i32
  }
  func.func @transform_1(%arg0: i32, %arg1: i32) -> (i32, i32) {
    %c0_i32 = arith.constant 0 : i32
    %c0_i32_0 = arith.constant 0 : i32
    %c0_i32_1 = arith.constant 0 : i32
    return %c0_i32, %c0_i32_0 : i32, i32
  }
  func.func @transform_2(%arg0: i32, %arg1: i32) -> (i32, i32) {
    %c0_i32 = arith.constant 0 : i32
    %c0_i32_0 = arith.constant 0 : i32
    %c0_i32_1 = arith.constant 0 : i32
    return %c0_i32, %c0_i32_0 : i32, i32
  }
  func.func @transform_3(%arg0: i32, %arg1: i32) -> (i32, i32, i32) {
    %c0_i32 = arith.constant 0 : i32
    %c0_i32_0 = arith.constant 0 : i32
    return %arg0, %arg1, %c0_i32 : i32, i32, i32
  }
}

module attributes {stable_mosaic.version = 11 : i64} {
  func.func @_conv1_kernel(%arg0: i32, %arg1: i32, %arg2: memref<1x32x16xbf16, #tpu.memory_space<vmem>>, %arg3: memref<16x8xbf16, #tpu.memory_space<vmem>>, %arg4: memref<1x8xf32, #tpu.memory_space<vmem>>, %arg5: memref<1x32x8xbf16, #tpu.memory_space<vmem>>) attributes {dimension_semantics = [#tpu.dimension_semantics<parallel>, #tpu.dimension_semantics<parallel>], iteration_bounds = array<i64: 2, 1>, scalar_prefetch = 0 : i64, scratch_operands = 0 : i64, tpu.core_type = #tpu.core_type<tc>, window_params = [{transform_indices = @transform_0, window_bounds = array<i64: 1, 32, 16>}, {pipeline_mode = #tpu.pipeline_mode<synchronous>, transform_indices = @transform_1, window_bounds = array<i64: 16, 8>}, {pipeline_mode = #tpu.pipeline_mode<synchronous>, transform_indices = @transform_2, window_bounds = array<i64: 1, 8>}, {transform_indices = @transform_3, window_bounds = array<i64: 1, 32, 8>}]} {
    %c0 = arith.constant 0 : index
    %c0_0 = arith.constant 0 : index
    %c0_1 = arith.constant 0 : index
    %0 = vector.load %arg2[%c0, %c0_0, %c0_1] : memref<1x32x16xbf16, #tpu.memory_space<vmem>>, vector<1x32x16xbf16>
    %1 = vector.shape_cast %0 : vector<1x32x16xbf16> to vector<32x16xbf16>
    %c0_2 = arith.constant 0 : index
    %c0_3 = arith.constant 0 : index
    %2 = vector.load %arg3[%c0_2, %c0_3] : memref<16x8xbf16, #tpu.memory_space<vmem>>, vector<16x8xbf16>
    %cst = arith.constant dense<0.000000e+00> : vector<32x8xf32>
    %3 = tpu.matmul %1, %2, %cst {dimension_numbers = #tpu.dot_dimension_numbers<[1], [0], [0], [1], [0, 0, 1, 1], [], []>} : vector<32x16xbf16>, vector<16x8xbf16>, vector<32x8xf32> -> vector<32x8xf32>
    %c0_4 = arith.constant 0 : index
    %c0_5 = arith.constant 0 : index
    %4 = vector.load %arg4[%c0_4, %c0_5] : memref<1x8xf32, #tpu.memory_space<vmem>>, vector<1x8xf32>
    %5 = vector.broadcast %4 : vector<1x8xf32> to vector<32x8xf32>
    %6 = arith.addf %3, %5 : vector<32x8xf32>
    %cst_6 = arith.constant 0.000000e+00 : f32
    %7 = vector.broadcast %cst_6 : f32 to vector<32x8xf32>
    %8 = arith.maximumf %6, %7 : vector<32x8xf32>
    %9 = arith.truncf %8 : vector<32x8xf32> to vector<32x8xbf16>
    %c0_7 = arith.constant 0 : index
    %c0_8 = arith.constant 0 : index
    %c0_9 = arith.constant 0 : index
    %10 = vector.load %arg5[%c0_7, %c0_8, %c0_9] : memref<1x32x8xbf16, #tpu.memory_space<vmem>>, vector<1x32x8xbf16>
    %11 = vector.shape_cast %10 : vector<1x32x8xbf16> to vector<32x8xbf16>
    %12 = vector.shape_cast %9 : vector<32x8xbf16> to vector<1x32x8xbf16>
    tpu.vector_store %arg5[%c0_7, %c0_8, %c0_9], %12 {strides = array<i32>} : memref<1x32x8xbf16, #tpu.memory_space<vmem>>, vector<1x32x8xbf16>,
    return
  }
  func.func @transform_0(%arg0: i32, %arg1: i32) -> (i32, i32, i32) {
    %c0_i32 = arith.constant 0 : i32
    %c0_i32_0 = arith.constant 0 : i32
    return %arg0, %arg1, %c0_i32 : i32, i32, i32
  }
  func.func @transform_1(%arg0: i32, %arg1: i32) -> (i32, i32) {
    %c0_i32 = arith.constant 0 : i32
    %c0_i32_0 = arith.constant 0 : i32
    %c0_i32_1 = arith.constant 0 : i32
    return %c0_i32, %c0_i32_0 : i32, i32
  }
  func.func @transform_2(%arg0: i32, %arg1: i32) -> (i32, i32) {
    %c0_i32 = arith.constant 0 : i32
    %c0_i32_0 = arith.constant 0 : i32
    %c0_i32_1 = arith.constant 0 : i32
    return %c0_i32, %c0_i32_0 : i32, i32
  }
  func.func @transform_3(%arg0: i32, %arg1: i32) -> (i32, i32, i32) {
    %c0_i32 = arith.constant 0 : i32
    %c0_i32_0 = arith.constant 0 : i32
    return %arg0, %arg1, %c0_i32 : i32, i32, i32
  }
}

module attributes {stable_mosaic.version = 11 : i64} {
  func.func @_conv_tap_kernel(%arg0: i32, %arg1: i32, %arg2: memref<1x32x8xbf16, #tpu.memory_space<vmem>>, %arg3: memref<72x16xbf16, #tpu.memory_space<vmem>>, %arg4: memref<1x16xf32, #tpu.memory_space<vmem>>, %arg5: memref<1x16x16xbf16, #tpu.memory_space<vmem>>) attributes {dimension_semantics = [#tpu.dimension_semantics<parallel>, #tpu.dimension_semantics<parallel>], iteration_bounds = array<i64: 2, 1>, scalar_prefetch = 0 : i64, scratch_operands = 0 : i64, tpu.core_type = #tpu.core_type<tc>, window_params = [{transform_indices = @transform_0, window_bounds = array<i64: 1, 32, 8>}, {pipeline_mode = #tpu.pipeline_mode<synchronous>, transform_indices = @transform_1, window_bounds = array<i64: 72, 16>}, {pipeline_mode = #tpu.pipeline_mode<synchronous>, transform_indices = @transform_2, window_bounds = array<i64: 1, 16>}, {transform_indices = @transform_3, window_bounds = array<i64: 1, 16, 16>}]} {
    %c16_i32 = arith.constant 16 : i32
    %0 = arith.muli %arg1, %c16_i32 : i32
    %1 = tpu.assume_multiple %0, 8 : i32
    %c0 = arith.constant 0 : index
    %2 = arith.index_cast %1 : i32 to index
    %c0_0 = arith.constant 0 : index
    %3 = vector.load %arg2[%c0, %2, %c0_0] : memref<1x32x8xbf16, #tpu.memory_space<vmem>>, vector<1x32x8xbf16>
    %4 = vector.shape_cast %3 : vector<1x32x8xbf16> to vector<32x8xbf16>
    %5 = vector.extract_strided_slice %4 {offsets = [0, 0], sizes = [16, 8], strides = [1, 1]} : vector<32x8xbf16> to vector<16x8xbf16>
    %6 = vector.extract_strided_slice %4 {offsets = [1, 0], sizes = [16, 8], strides = [1, 1]} : vector<32x8xbf16> to vector<16x8xbf16>
    %7 = vector.extract_strided_slice %4 {offsets = [2, 0], sizes = [16, 8], strides = [1, 1]} : vector<32x8xbf16> to vector<16x8xbf16>
    %8 = vector.extract_strided_slice %4 {offsets = [5, 0], sizes = [16, 8], strides = [1, 1]} : vector<32x8xbf16> to vector<16x8xbf16>
    %9 = vector.extract_strided_slice %4 {offsets = [6, 0], sizes = [16, 8], strides = [1, 1]} : vector<32x8xbf16> to vector<16x8xbf16>
    %10 = vector.extract_strided_slice %4 {offsets = [7, 0], sizes = [16, 8], strides = [1, 1]} : vector<32x8xbf16> to vector<16x8xbf16>
    %11 = vector.extract_strided_slice %4 {offsets = [10, 0], sizes = [16, 8], strides = [1, 1]} : vector<32x8xbf16> to vector<16x8xbf16>
    %12 = vector.extract_strided_slice %4 {offsets = [11, 0], sizes = [16, 8], strides = [1, 1]} : vector<32x8xbf16> to vector<16x8xbf16>
    %13 = vector.extract_strided_slice %4 {offsets = [12, 0], sizes = [16, 8], strides = [1, 1]} : vector<32x8xbf16> to vector<16x8xbf16>
    %14 = tpu.concatenate %5, %6, %7, %8, %9, %10, %11, %12, %13 in 1 : vector<16x8xbf16>, vector<16x8xbf16>, vector<16x8xbf16>, vector<16x8xbf16>, vector<16x8xbf16>, vector<16x8xbf16>, vector<16x8xbf16>, vector<16x8xbf16>, vector<16x8xbf16> -> vector<16x72xbf16>
    %c0_1 = arith.constant 0 : index
    %c0_2 = arith.constant 0 : index
    %15 = vector.load %arg3[%c0_1, %c0_2] : memref<72x16xbf16, #tpu.memory_space<vmem>>, vector<72x16xbf16>
    %cst = arith.constant dense<0.000000e+00> : vector<16x16xf32>
    %16 = tpu.matmul %14, %15, %cst {dimension_numbers = #tpu.dot_dimension_numbers<[1], [0], [0], [1], [0, 0, 1, 1], [], []>} : vector<16x72xbf16>, vector<72x16xbf16>, vector<16x16xf32> -> vector<16x16xf32>
    %c0_3 = arith.constant 0 : index
    %c0_4 = arith.constant 0 : index
    %17 = vector.load %arg4[%c0_3, %c0_4] : memref<1x16xf32, #tpu.memory_space<vmem>>, vector<1x16xf32>
    %18 = vector.broadcast %17 : vector<1x16xf32> to vector<16x16xf32>
    %19 = arith.addf %16, %18 : vector<16x16xf32>
    %cst_5 = arith.constant 0.000000e+00 : f32
    %20 = vector.broadcast %cst_5 : f32 to vector<16x16xf32>
    %21 = arith.maximumf %19, %20 : vector<16x16xf32>
    %22 = arith.truncf %21 : vector<16x16xf32> to vector<16x16xbf16>
    %c0_6 = arith.constant 0 : index
    %c0_7 = arith.constant 0 : index
    %c0_8 = arith.constant 0 : index
    %23 = vector.load %arg5[%c0_6, %c0_7, %c0_8] : memref<1x16x16xbf16, #tpu.memory_space<vmem>>, vector<1x16x16xbf16>
    %24 = vector.shape_cast %23 : vector<1x16x16xbf16> to vector<16x16xbf16>
    %25 = vector.shape_cast %22 : vector<16x16xbf16> to vector<1x16x16xbf16>
    tpu.vector_store %arg5[%c0_6, %c0_7, %c0_8], %25 {strides = array<i32>} : memref<1x16x16xbf16, #tpu.memory_space<vmem>>, vector<1x16x16xbf16>,
    return
  }
  func.func @transform_0(%arg0: i32, %arg1: i32) -> (i32, i32, i32) {
    %c0_i32 = arith.constant 0 : i32
    %c0_i32_0 = arith.constant 0 : i32
    %c0_i32_1 = arith.constant 0 : i32
    return %arg0, %c0_i32, %c0_i32_0 : i32, i32, i32
  }
  func.func @transform_1(%arg0: i32, %arg1: i32) -> (i32, i32) {
    %c0_i32 = arith.constant 0 : i32
    %c0_i32_0 = arith.constant 0 : i32
    %c0_i32_1 = arith.constant 0 : i32
    return %c0_i32, %c0_i32_0 : i32, i32
  }
  func.func @transform_2(%arg0: i32, %arg1: i32) -> (i32, i32) {
    %c0_i32 = arith.constant 0 : i32
    %c0_i32_0 = arith.constant 0 : i32
    %c0_i32_1 = arith.constant 0 : i32
    return %c0_i32, %c0_i32_0 : i32, i32
  }
  func.func @transform_3(%arg0: i32, %arg1: i32) -> (i32, i32, i32) {
    %c0_i32 = arith.constant 0 : i32
    %c0_i32_0 = arith.constant 0 : i32
    return %arg0, %arg1, %c0_i32 : i32, i32, i32
  }
}

module attributes {stable_mosaic.version = 11 : i64} {
  func.func @_conv_tap_kernel(%arg0: i32, %arg1: i32, %arg2: memref<1x32x16xbf16, #tpu.memory_space<vmem>>, %arg3: memref<144x340xbf16, #tpu.memory_space<vmem>>, %arg4: memref<1x340xf32, #tpu.memory_space<vmem>>, %arg5: memref<1x16x340xf32, #tpu.memory_space<vmem>>) attributes {dimension_semantics = [#tpu.dimension_semantics<parallel>, #tpu.dimension_semantics<parallel>], iteration_bounds = array<i64: 2, 1>, scalar_prefetch = 0 : i64, scratch_operands = 0 : i64, tpu.core_type = #tpu.core_type<tc>, window_params = [{transform_indices = @transform_0, window_bounds = array<i64: 1, 32, 16>}, {pipeline_mode = #tpu.pipeline_mode<synchronous>, transform_indices = @transform_1, window_bounds = array<i64: 144, 340>}, {pipeline_mode = #tpu.pipeline_mode<synchronous>, transform_indices = @transform_2, window_bounds = array<i64: 1, 340>}, {transform_indices = @transform_3, window_bounds = array<i64: 1, 16, 340>}]} {
    %c16_i32 = arith.constant 16 : i32
    %0 = arith.muli %arg1, %c16_i32 : i32
    %1 = tpu.assume_multiple %0, 8 : i32
    %c0 = arith.constant 0 : index
    %2 = arith.index_cast %1 : i32 to index
    %c0_0 = arith.constant 0 : index
    %3 = vector.load %arg2[%c0, %2, %c0_0] : memref<1x32x16xbf16, #tpu.memory_space<vmem>>, vector<1x32x16xbf16>
    %4 = vector.shape_cast %3 : vector<1x32x16xbf16> to vector<32x16xbf16>
    %5 = vector.extract_strided_slice %4 {offsets = [0, 0], sizes = [16, 16], strides = [1, 1]} : vector<32x16xbf16> to vector<16x16xbf16>
    %6 = vector.extract_strided_slice %4 {offsets = [1, 0], sizes = [16, 16], strides = [1, 1]} : vector<32x16xbf16> to vector<16x16xbf16>
    %7 = vector.extract_strided_slice %4 {offsets = [2, 0], sizes = [16, 16], strides = [1, 1]} : vector<32x16xbf16> to vector<16x16xbf16>
    %8 = vector.extract_strided_slice %4 {offsets = [5, 0], sizes = [16, 16], strides = [1, 1]} : vector<32x16xbf16> to vector<16x16xbf16>
    %9 = vector.extract_strided_slice %4 {offsets = [6, 0], sizes = [16, 16], strides = [1, 1]} : vector<32x16xbf16> to vector<16x16xbf16>
    %10 = vector.extract_strided_slice %4 {offsets = [7, 0], sizes = [16, 16], strides = [1, 1]} : vector<32x16xbf16> to vector<16x16xbf16>
    %11 = vector.extract_strided_slice %4 {offsets = [10, 0], sizes = [16, 16], strides = [1, 1]} : vector<32x16xbf16> to vector<16x16xbf16>
    %12 = vector.extract_strided_slice %4 {offsets = [11, 0], sizes = [16, 16], strides = [1, 1]} : vector<32x16xbf16> to vector<16x16xbf16>
    %13 = vector.extract_strided_slice %4 {offsets = [12, 0], sizes = [16, 16], strides = [1, 1]} : vector<32x16xbf16> to vector<16x16xbf16>
    %14 = tpu.concatenate %5, %6, %7, %8, %9, %10, %11, %12, %13 in 1 : vector<16x16xbf16>, vector<16x16xbf16>, vector<16x16xbf16>, vector<16x16xbf16>, vector<16x16xbf16>, vector<16x16xbf16>, vector<16x16xbf16>, vector<16x16xbf16>, vector<16x16xbf16> -> vector<16x144xbf16>
    %c0_1 = arith.constant 0 : index
    %c0_2 = arith.constant 0 : index
    %15 = vector.load %arg3[%c0_1, %c0_2] : memref<144x340xbf16, #tpu.memory_space<vmem>>, vector<144x340xbf16>
    %cst = arith.constant dense<0.000000e+00> : vector<16x340xf32>
    %16 = tpu.matmul %14, %15, %cst {dimension_numbers = #tpu.dot_dimension_numbers<[1], [0], [0], [1], [0, 0, 1, 1], [], []>} : vector<16x144xbf16>, vector<144x340xbf16>, vector<16x340xf32> -> vector<16x340xf32>
    %c0_3 = arith.constant 0 : index
    %c0_4 = arith.constant 0 : index
    %17 = vector.load %arg4[%c0_3, %c0_4] : memref<1x340xf32, #tpu.memory_space<vmem>>, vector<1x340xf32>
    %18 = vector.broadcast %17 : vector<1x340xf32> to vector<16x340xf32>
    %19 = arith.addf %16, %18 : vector<16x340xf32>
    %c0_5 = arith.constant 0 : index
    %c0_6 = arith.constant 0 : index
    %c0_7 = arith.constant 0 : index
    %20 = vector.load %arg5[%c0_5, %c0_6, %c0_7] : memref<1x16x340xf32, #tpu.memory_space<vmem>>, vector<1x16x340xf32>
    %21 = vector.shape_cast %20 : vector<1x16x340xf32> to vector<16x340xf32>
    %22 = vector.shape_cast %19 : vector<16x340xf32> to vector<1x16x340xf32>
    tpu.vector_store %arg5[%c0_5, %c0_6, %c0_7], %22 {strides = array<i32>} : memref<1x16x340xf32, #tpu.memory_space<vmem>>, vector<1x16x340xf32>,
    return
  }
  func.func @transform_0(%arg0: i32, %arg1: i32) -> (i32, i32, i32) {
    %c0_i32 = arith.constant 0 : i32
    %c0_i32_0 = arith.constant 0 : i32
    %c0_i32_1 = arith.constant 0 : i32
    return %arg0, %c0_i32, %c0_i32_0 : i32, i32, i32
  }
  func.func @transform_1(%arg0: i32, %arg1: i32) -> (i32, i32) {
    %c0_i32 = arith.constant 0 : i32
    %c0_i32_0 = arith.constant 0 : i32
    %c0_i32_1 = arith.constant 0 : i32
    return %c0_i32, %c0_i32_0 : i32, i32
  }
  func.func @transform_2(%arg0: i32, %arg1: i32) -> (i32, i32) {
    %c0_i32 = arith.constant 0 : i32
    %c0_i32_0 = arith.constant 0 : i32
    %c0_i32_1 = arith.constant 0 : i32
    return %c0_i32, %c0_i32_0 : i32, i32
  }
  func.func @transform_3(%arg0: i32, %arg1: i32) -> (i32, i32, i32) {
    %c0_i32 = arith.constant 0 : i32
    %c0_i32_0 = arith.constant 0 : i32
    return %arg0, %arg1, %c0_i32 : i32, i32, i32
  }
}

</mosaic_0001>

<llo_original>
// kernel: tile.8
$region0: #{tile.8}
  #allocation0 [shape = 's32[1]{0}', space=sflag, size = 0x4, scoped, tag = 'scoped memory for tile.8']
  %s0 = inlined_call_operand.vmem [shape: f32[16], index: 0, kind: input, shape index: {}]
  %s1 = inlined_call_operand.vmem [shape: f32[4,16], index: 1, kind: output, shape index: {}]
  // Predicated region
  $region2: #{tile.8} parent=0 // pred_check
    _
  $region3: #{tile.8} parent=0 // pred_check_branch
    %3 = sbr.rel (0) target = $region5
  $region4: #{tile.8} parent=0 // pred_region
    _
  $region5: #{tile.8} parent=0 // pred_fallthru
    _
  %v4 = vld [vmem:[%s0] ss:$0 sm:$0xff]
  %5 = vst [vmem:[%s1] sm:$0xf] %v4

// kernel: tile.9
$region0: #{tile.9}
  %s0 = inlined_call_operand.vmem [shape: f32[4,16], index: 0, kind: input, shape index: {}]
  %s1 = inlined_call_operand.vmem [shape: f32[1,64], index: 1, kind: output, shape index: {}]
  $region1: #{tile.9} parent=0
    #allocation0 [shape = 'u8[4096]{0}', space=vmem, size = 0x1000, scoped, tag = 'scoped mem for output reshape']
    #allocation1 [shape = 'u8[4096]{0}', space=vmem, size = 0x1000, scoped, tag = 'scoped mem for input reshape']
    %s3 = sshllo.u32 0, 4
    %v4 = vld [vmem:[%s0] sm:%s3]
    %5 = vst [vmem:[#allocation1] sm:%s3] %v4
    %v6 = vld [vmem:[#allocation1] sm:$0x1]
    %vm7 = vcmask 130048
    %8 = vst.msk [vmem:[#allocation0] sm:$0x1] %vm7, %v6
    %s9 = scalar_lea.vmem [#allocation1], 3
    %v10 = vld [vmem:[%s9] sm:$0x1]
    %11 = vrot.lane.b32.xlu0 %v10, 48
    %v12 = vpop.permute.xlu0 %11
    %vm13 = vcmask 523648
    %14 = vst.msk [vmem:[#allocation0] sm:$0x1] %vm13, %v12
    %s15 = scalar_lea.vmem [#allocation1], 2
    %v16 = vld [vmem:[%s15] sm:$0x1]
    %17 = vrot.lane.b32.xlu0 %v16, 32
    %v18 = vpop.permute.xlu0 %17
    %vm19 = vcmask 392448
    %20 = vst.msk [vmem:[#allocation0] sm:$0x1] %vm19, %v18
    %s21 = scalar_lea.vmem [#allocation1], 1
    %v22 = vld [vmem:[%s21] sm:$0x1]
    %23 = vrot.lane.b32.xlu0 %v22, 16
    %v24 = vpop.permute.xlu0 %23
    %vm25 = vcmask 261248
    %26 = vst.msk [vmem:[#allocation0] sm:$0x1] %vm25, %v24
    %s28 = sshllo.u32 0, 1
    %v30 = vld [vmem:[#allocation0] sm:%s28]
    %s31 = sshllo.u32 0, 1
    %32 = vst [vmem:[%s1] sm:%s31] %v30

</llo_original>
